<compile_context>
chip_gen: v7x
topology: tpu7x:2x2x1
jax: 0.10.0
libtpu: 0.0.40
codegen_flags: <defaults>
</compile_context>

<pallas_src>
import functools

import jax
import jax.numpy as jnp
import numpy as np
from jax import lax
from jax.experimental import pallas as pl
from jax.experimental.pallas import tpu as pltpu


def _out_size(s, K, p):      # stride = 1
    return s + 2 * p - K + 1


# ----------------------------- Pallas kernel -------------------------------- #

def _conv_relu(pad_ref, slab_ref, w_ref, b_ref, mask, *, K, C, Wc, Lout):
    """One conv layer, transposed / lane-dense orientation.

    pad_ref:  (C, N*Hc*Wc)     padded activation canvas (channel-major, flat spatial)
    slab_ref: (K*K*Cmax, Lout) VMEM scratch for the im2col slab (rows :K*K*C used)
    w_ref:    (Cout, K*K*C)    transposed im2col conv weight
    b_ref:    (Cout, 1)
    mask:     (1, Lout)        1.0 where the lane is a real (ho<Ho, wo<Wo) output
    returns:  (Cout, Lout)     relu(conv + bias), garbage lanes zeroed
    """
    for kh in range(K):
        for kw in range(K):
            r = (kh * K + kw) * C
            s = kh * Wc + kw
            # Shifted window -> its (8-aligned for C=8) sublane slot of the slab.
            slab_ref[r:r + C, :] = pad_ref[:, s:s + Lout]
    y = jnp.dot(w_ref[...], slab_ref[:K * K * C, :],
                preferred_element_type=jnp.float32)      # (Cout, Lout): lane-dense
    return jnp.maximum(y + b_ref[...], 0.0) * mask


def convnet_kernel(x_ref, w1_ref, b1_ref, w2_ref, b2_ref, w3_ref, b3_ref,
                   wfc_ref, bfc_ref, mask_ref, o_ref,
                   slab_ref, pad1_ref, pad2_ref,
                   *, K, Cin, Cout, Wc, Sc, N, p, Lout, Sq):
    L = N * Sc
    OFF = p * Wc + p   # constant canvas shift: layer output grid -> next layer's
                       # padded-input interior (same for every layer)

    def handoff(y, dst_ref):
        # Halo-only zeroing: the validity-masked store below already writes 0 to
        # every halo lane it covers; only the two edge strips it cannot reach
        # need an explicit memset.
        dst_ref[:, 0:OFF] = jnp.zeros((Cout, OFF), jnp.float32)
        dst_ref[:, OFF + Lout:L] = jnp.zeros((Cout, L - OFF - Lout), jnp.float32)
        dst_ref[:, OFF:OFF + Lout] = y       # one contiguous lane-shifted store

    a1 = _conv_relu(x_ref, slab_ref, w1_ref, b1_ref, mask_ref[0:1, :],
                    K=K, C=Cin, Wc=Wc, Lout=Lout)
    handoff(a1, pad1_ref)
    a2 = _conv_relu(pad1_ref, slab_ref, w2_ref, b2_ref, mask_ref[1:2, :],
                    K=K, C=Cout, Wc=Wc, Lout=Lout)
    handoff(a2, pad2_ref)
    a3 = _conv_relu(pad2_ref, slab_ref, w3_ref, b3_ref, mask_ref[2:3, :],
                    K=K, C=Cout, Wc=Wc, Lout=Lout)

    # ---- FC: out[n, j] = bfc[j] + sum_{c, q} a3[c, n*Sc + q] * wfc[c, q, j] ----
    # wfc was pre-laid-out on the same canvas stride (prep_params), so the
    # contraction runs directly over the lane axis: 8 tiny MXU dots, no
    # transpose / flatten / XLU reduction of the activation.
    slab_ref[:Cout, :] = a3            # park a3 in VMEM so the FC slices a ref
    acc = jnp.zeros((N, 10), jnp.float32)
    for c in range(Cout):
        rows = jnp.concatenate(
            [slab_ref[c:c + 1, n * Sc:n * Sc + Sq] for n in range(N)], axis=0)
        acc = acc + jnp.dot(rows, wfc_ref[c], preferred_element_type=jnp.float32)
    o_ref[...] = acc + bfc_ref[...]


# ------------------------------ JAX wrappers --------------------------------- #

def prep_params(params, *, kernel_size, padding, pixel):
    """One-time repack of HWIO conv weights and the NCHW-flatten FC weight into
    the transposed / canvas layouts the fused kernel consumes (free at setup)."""
    K, p = kernel_size, padding
    w1 = params["w1"]
    cin, cout = w1.shape[2], w1.shape[3]
    Wc = pixel + 2 * p
    H1 = _out_size(pixel, K, p)
    H2 = _out_size(H1, K, p)
    H3 = _out_size(H2, K, p)
    Sq = (H3 - 1) * Wc + H3

    def conv_w(w):   # HWIO (K,K,Ci,Co) -> (Co, K*K*Ci), col order (kh, kw, ci)
        return jnp.transpose(w, (3, 0, 1, 2)).reshape(w.shape[3], -1)

    # FC weight: (F, 10) rows in PyTorch NCHW flatten order (c, h, w) ->
    # (Cout, Sq, 10) laid out with the canvas row stride Wc (zero where w >= W3).
    wfc = params["wfc"].reshape(cout, H3, H3, 10)
    wfc = jnp.pad(wfc, ((0, 0), (0, 0), (0, Wc - H3), (0, 0)))
    wfc = wfc.reshape(cout, H3 * Wc, 10)[:, :Sq, :]

    return {
        "w1": conv_w(params["w1"]), "b1": params["b1"].reshape(cout, 1),
        "w2": conv_w(params["w2"]), "b2": params["b2"].reshape(cout, 1),
        "w3": conv_w(params["w3"]), "b3": params["b3"].reshape(cout, 1),
        "wfc": wfc, "bfc": params["bfc"].reshape(1, 10),
    }


@functools.partial(jax.jit, static_argnames=("kernel_size", "padding"))
def convnet_forward(x_nchw, kp, *, kernel_size, padding):
    """Full ConvNet forward.  x_nchw: (N, Cin, H, W) float32."""
    N, Cin, H, W = x_nchw.shape
    K, p = kernel_size, padding
    Hc, Wc = H + 2 * p, W + 2 * p             # fixed canvas geometry, all layers
    Sc = Hc * Wc
    L = N * Sc
    Lout = L - ((K - 1) * Wc + (K - 1))       # lanes fed to every conv matmul
    Cout = kp["b1"].shape[0]
    H1 = _out_size(H, K, p)
    H2 = _out_size(H1, K, p)
    H3 = _out_size(H2, K, p)
    Sq = (H3 - 1) * Wc + H3                   # per-sample lane span of conv3 out

    # Input -> channel-major zero-padded canvas (Cin, N*Hc*Wc). One tiny pad of
    # the ~2 KiB input; all intermediate activations stay in VMEM.
    x_pad = jnp.pad(x_nchw, ((0, 0), (0, 0), (p, p), (p, p)))
    x_canvas = jnp.transpose(x_pad, (1, 0, 2, 3)).reshape(Cin, L)

    # Per-layer validity masks over the Lout conv-output lanes (0/1 float).
    o = jnp.arange(Lout)
    ho, wo = (o % Sc) // Wc, o % Wc
    masks = jnp.stack([((ho < s) & (wo < s)).astype(jnp.float32)
                       for s in (H1, H2, H3)])          # (3, Lout)

    kernel = functools.partial(convnet_kernel, K=K, Cin=Cin, Cout=Cout,
                               Wc=Wc, Sc=Sc, N=N, p=p, Lout=Lout, Sq=Sq)
    # grid=(): whole net in one invocation; total VMEM footprint < 0.6 MiB.
    return pl.pallas_call(
        kernel,
        out_shape=jax.ShapeDtypeStruct((N, 10), jnp.float32),
        scratch_shapes=[
            pltpu.VMEM((K * K * max(Cin, Cout), Lout), jnp.float32),  # shared im2col slab
            pltpu.VMEM((Cout, L), jnp.float32),   # padded canvas: conv2 input
            pltpu.VMEM((Cout, L), jnp.float32),   # padded canvas: conv3 input
        ],
    )(x_canvas, kp["w1"], kp["b1"], kp["w2"], kp["b2"], kp["w3"], kp["b3"],
      kp["wfc"], kp["bfc"], masks)


# ------------------------------- reference ----------------------------------- #

def convnet_reference(x_nchw, params, *, padding):
    """Pure-JAX reference (lax conv) for numerical verification."""
    def conv(x, w, b):  # x NHWC, w HWIO
        y = lax.conv_general_dilated(
            x, w, window_strides=(1, 1),
            padding=[(padding, padding), (padding, padding)],
            dimension_numbers=("NHWC", "HWIO", "NHWC"))
        return jax.nn.relu(y + b[None, None, None, :])

    x = jnp.transpose(x_nchw, (0, 2, 3, 1))
    x = conv(x, params["w1"], params["b1"])
    x = conv(x, params["w2"], params["b2"])
    x = conv(x, params["w3"], params["b3"])
    x = jnp.transpose(x, (0, 3, 1, 2)).reshape(x.shape[0], -1)  # PyTorch view order
    return (jnp.dot(x, params["wfc"], precision=lax.Precision.HIGHEST)
            + params["bfc"][None, :])


# --------------------------------- main --------------------------------------- #

if __name__ == "__main__":
    # Small, module-consistent shapes: in_channels=1, pixel=16, out_channels=8,
    # kernel=5, stride=1, padding=1, batch=2.
    batch, in_ch, pixel = 2, 1, 16
    out_channels, kernel_size, stride, padding = 8, 5, 1, 1

    p1 = _out_size(pixel, kernel_size, padding)   # 14
    p2 = _out_size(p1, kernel_size, padding)      # 12
    p3 = _out_size(p2, kernel_size, padding)      # 10
    fc_in = p3 * p3 * out_channels

    key = jax.random.PRNGKey(0)
    k = jax.random.split(key, 9)
    params = {
        # conv weights stored HWIO: (K, K, Cin, Cout)
        "w1": 0.1 * jax.random.normal(k[0], (kernel_size, kernel_size, in_ch, out_channels), jnp.float32),
        "b1": 0.1 * jax.random.normal(k[1], (out_channels,), jnp.float32),
        "w2": 0.1 * jax.random.normal(k[2], (kernel_size, kernel_size, out_channels, out_channels), jnp.float32),
        "b2": 0.1 * jax.random.normal(k[3], (out_channels,), jnp.float32),
        "w3": 0.1 * jax.random.normal(k[4], (kernel_size, kernel_size, out_channels, out_channels), jnp.float32),
        "b3": 0.1 * jax.random.normal(k[5], (out_channels,), jnp.float32),
        # fc weight stored (F, 10); F ordering matches PyTorch's NCHW flatten
        "wfc": 0.1 * jax.random.normal(k[6], (fc_in, 10), jnp.float32),
        "bfc": 0.1 * jax.random.normal(k[7], (10,), jnp.float32),
    }
    x = jax.random.normal(k[8], (batch, in_ch, pixel, pixel), jnp.float32)

    kparams = prep_params(params, kernel_size=kernel_size, padding=padding, pixel=pixel)

    out = convnet_forward(x, kparams, kernel_size=kernel_size, padding=padding)
    out = jax.block_until_ready(out)

    ref = jax.block_until_ready(convnet_reference(x, params, padding=padding))

    assert out.shape == (batch, 10), out.shape
    np.testing.assert_allclose(np.asarray(out), np.asarray(ref), rtol=1e-3, atol=1e-3)

    print("KERNEL_OK")
</pallas_src>

<mosaic_0001>
module attributes {stable_mosaic.version = 11 : i64} {
  func.func @convnet_kernel(%arg0: memref<1x648xf32, #tpu.memory_space<vmem>>, %arg1: memref<8x25xf32, #tpu.memory_space<vmem>>, %arg2: memref<8x1xf32, #tpu.memory_space<vmem>>, %arg3: memref<8x200xf32, #tpu.memory_space<vmem>>, %arg4: memref<8x1xf32, #tpu.memory_space<vmem>>, %arg5: memref<8x200xf32, #tpu.memory_space<vmem>>, %arg6: memref<8x1xf32, #tpu.memory_space<vmem>>, %arg7: memref<8x172x10xf32, #tpu.memory_space<vmem>>, %arg8: memref<1x10xf32, #tpu.memory_space<vmem>>, %arg9: memref<3x572xf32, #tpu.memory_space<vmem>>, %arg10: memref<2x10xf32, #tpu.memory_space<vmem>>, %arg11: memref<200x572xf32, #tpu.memory_space<vmem>>, %arg12: memref<8x648xf32, #tpu.memory_space<vmem>>, %arg13: memref<8x648xf32, #tpu.memory_space<vmem>>) attributes {dimension_semantics = [], scalar_prefetch = 0 : i64, scratch_operands = 3 : i64, tpu.core_type = #tpu.core_type<tc>} {
    %c0 = arith.constant 0 : index
    %c0_0 = arith.constant 0 : index
    %0 = vector.load %arg9[%c0, %c0_0] : memref<3x572xf32, #tpu.memory_space<vmem>>, vector<1x572xf32>
    %c0_1 = arith.constant 0 : index
    %c0_2 = arith.constant 0 : index
    %1 = vector.load %arg0[%c0_1, %c0_2] : memref<1x648xf32, #tpu.memory_space<vmem>>, vector<1x572xf32>
    %c0_3 = arith.constant 0 : index
    %c0_4 = arith.constant 0 : index
    %2 = vector.load %arg11[%c0_3, %c0_4] : memref<200x572xf32, #tpu.memory_space<vmem>>, vector<1x572xf32>
    tpu.vector_store %arg11[%c0_3, %c0_4], %1 {strides = array<i32>} : memref<200x572xf32, #tpu.memory_space<vmem>>, vector<1x572xf32>,
    %c0_5 = arith.constant 0 : index
    %c1 = arith.constant 1 : index
    %3 = vector.load %arg0[%c0_5, %c1] : memref<1x648xf32, #tpu.memory_space<vmem>>, vector<1x572xf32>
    %c1_6 = arith.constant 1 : index
    %c0_7 = arith.constant 0 : index
    %4 = vector.load %arg11[%c1_6, %c0_7] : memref<200x572xf32, #tpu.memory_space<vmem>>, vector<1x572xf32>
    tpu.vector_store %arg11[%c1_6, %c0_7], %3 {strides = array<i32>} : memref<200x572xf32, #tpu.memory_space<vmem>>, vector<1x572xf32>,
    %c0_8 = arith.constant 0 : index
    %c2 = arith.constant 2 : index
    %5 = vector.load %arg0[%c0_8, %c2] : memref<1x648xf32, #tpu.memory_space<vmem>>, vector<1x572xf32>
    %c2_9 = arith.constant 2 : index
    %c0_10 = arith.constant 0 : index
    %6 = vector.load %arg11[%c2_9, %c0_10] : memref<200x572xf32, #tpu.memory_space<vmem>>, vector<1x572xf32>
    tpu.vector_store %arg11[%c2_9, %c0_10], %5 {strides = array<i32>} : memref<200x572xf32, #tpu.memory_space<vmem>>, vector<1x572xf32>,
    %c0_11 = arith.constant 0 : index
    %c3 = arith.constant 3 : index
    %7 = vector.load %arg0[%c0_11, %c3] : memref<1x648xf32, #tpu.memory_space<vmem>>, vector<1x572xf32>
    %c3_12 = arith.constant 3 : index
    %c0_13 = arith.constant 0 : index
    %8 = vector.load %arg11[%c3_12, %c0_13] : memref<200x572xf32, #tpu.memory_space<vmem>>, vector<1x572xf32>
    tpu.vector_store %arg11[%c3_12, %c0_13], %7 {strides = array<i32>} : memref<200x572xf32, #tpu.memory_space<vmem>>, vector<1x572xf32>,
    %c0_14 = arith.constant 0 : index
    %c4 = arith.constant 4 : index
    %9 = vector.load %arg0[%c0_14, %c4] : memref<1x648xf32, #tpu.memory_space<vmem>>, vector<1x572xf32>
    %c4_15 = arith.constant 4 : index
    %c0_16 = arith.constant 0 : index
    %10 = vector.load %arg11[%c4_15, %c0_16] : memref<200x572xf32, #tpu.memory_space<vmem>>, vector<1x572xf32>
    tpu.vector_store %arg11[%c4_15, %c0_16], %9 {strides = array<i32>} : memref<200x572xf32, #tpu.memory_space<vmem>>, vector<1x572xf32>,
    %c0_17 = arith.constant 0 : index
    %c18 = arith.constant 18 : index
    %11 = vector.load %arg0[%c0_17, %c18] : memref<1x648xf32, #tpu.memory_space<vmem>>, vector<1x572xf32>
    %c5 = arith.constant 5 : index
    %c0_18 = arith.constant 0 : index
    %12 = vector.load %arg11[%c5, %c0_18] : memref<200x572xf32, #tpu.memory_space<vmem>>, vector<1x572xf32>
    tpu.vector_store %arg11[%c5, %c0_18], %11 {strides = array<i32>} : memref<200x572xf32, #tpu.memory_space<vmem>>, vector<1x572xf32>,
    %c0_19 = arith.constant 0 : index
    %c19 = arith.constant 19 : index
    %13 = vector.load %arg0[%c0_19, %c19] : memref<1x648xf32, #tpu.memory_space<vmem>>, vector<1x572xf32>
    %c6 = arith.constant 6 : index
    %c0_20 = arith.constant 0 : index
    %14 = vector.load %arg11[%c6, %c0_20] : memref<200x572xf32, #tpu.memory_space<vmem>>, vector<1x572xf32>
    tpu.vector_store %arg11[%c6, %c0_20], %13 {strides = array<i32>} : memref<200x572xf32, #tpu.memory_space<vmem>>, vector<1x572xf32>,
    %c0_21 = arith.constant 0 : index
    %c20 = arith.constant 20 : index
    %15 = vector.load %arg0[%c0_21, %c20] : memref<1x648xf32, #tpu.memory_space<vmem>>, vector<1x572xf32>
    %c7 = arith.constant 7 : index
    %c0_22 = arith.constant 0 : index
    %16 = vector.load %arg11[%c7, %c0_22] : memref<200x572xf32, #tpu.memory_space<vmem>>, vector<1x572xf32>
    tpu.vector_store %arg11[%c7, %c0_22], %15 {strides = array<i32>} : memref<200x572xf32, #tpu.memory_space<vmem>>, vector<1x572xf32>,
    %c0_23 = arith.constant 0 : index
    %c21 = arith.constant 21 : index
    %17 = vector.load %arg0[%c0_23, %c21] : memref<1x648xf32, #tpu.memory_space<vmem>>, vector<1x572xf32>
    %c8 = arith.constant 8 : index
    %c0_24 = arith.constant 0 : index
    %18 = vector.load %arg11[%c8, %c0_24] : memref<200x572xf32, #tpu.memory_space<vmem>>, vector<1x572xf32>
    tpu.vector_store %arg11[%c8, %c0_24], %17 {strides = array<i32>} : memref<200x572xf32, #tpu.memory_space<vmem>>, vector<1x572xf32>,
    %c0_25 = arith.constant 0 : index
    %c22 = arith.constant 22 : index
    %19 = vector.load %arg0[%c0_25, %c22] : memref<1x648xf32, #tpu.memory_space<vmem>>, vector<1x572xf32>
    %c9 = arith.constant 9 : index
    %c0_26 = arith.constant 0 : index
    %20 = vector.load %arg11[%c9, %c0_26] : memref<200x572xf32, #tpu.memory_space<vmem>>, vector<1x572xf32>
    tpu.vector_store %arg11[%c9, %c0_26], %19 {strides = array<i32>} : memref<200x572xf32, #tpu.memory_space<vmem>>, vector<1x572xf32>,
    %c0_27 = arith.constant 0 : index
    %c36 = arith.constant 36 : index
    %21 = vector.load %arg0[%c0_27, %c36] : memref<1x648xf32, #tpu.memory_space<vmem>>, vector<1x572xf32>
    %c10 = arith.constant 10 : index
    %c0_28 = arith.constant 0 : index
    %22 = vector.load %arg11[%c10, %c0_28] : memref<200x572xf32, #tpu.memory_space<vmem>>, vector<1x572xf32>
    tpu.vector_store %arg11[%c10, %c0_28], %21 {strides = array<i32>} : memref<200x572xf32, #tpu.memory_space<vmem>>, vector<1x572xf32>,
    %c0_29 = arith.constant 0 : index
    %c37 = arith.constant 37 : index
    %23 = vector.load %arg0[%c0_29, %c37] : memref<1x648xf32, #tpu.memory_space<vmem>>, vector<1x572xf32>
    %c11 = arith.constant 11 : index
    %c0_30 = arith.constant 0 : index
    %24 = vector.load %arg11[%c11, %c0_30] : memref<200x572xf32, #tpu.memory_space<vmem>>, vector<1x572xf32>
    tpu.vector_store %arg11[%c11, %c0_30], %23 {strides = array<i32>} : memref<200x572xf32, #tpu.memory_space<vmem>>, vector<1x572xf32>,
    %c0_31 = arith.constant 0 : index
    %c38 = arith.constant 38 : index
    %25 = vector.load %arg0[%c0_31, %c38] : memref<1x648xf32, #tpu.memory_space<vmem>>, vector<1x572xf32>
    %c12 = arith.constant 12 : index
    %c0_32 = arith.constant 0 : index
    %26 = vector.load %arg11[%c12, %c0_32] : memref<200x572xf32, #tpu.memory_space<vmem>>, vector<1x572xf32>
    tpu.vector_store %arg11[%c12, %c0_32], %25 {strides = array<i32>} : memref<200x572xf32, #tpu.memory_space<vmem>>, vector<1x572xf32>,
    %c0_33 = arith.constant 0 : index
    %c39 = arith.constant 39 : index
    %27 = vector.load %arg0[%c0_33, %c39] : memref<1x648xf32, #tpu.memory_space<vmem>>, vector<1x572xf32>
    %c13 = arith.constant 13 : index
    %c0_34 = arith.constant 0 : index
    %28 = vector.load %arg11[%c13, %c0_34] : memref<200x572xf32, #tpu.memory_space<vmem>>, vector<1x572xf32>
    tpu.vector_store %arg11[%c13, %c0_34], %27 {strides = array<i32>} : memref<200x572xf32, #tpu.memory_space<vmem>>, vector<1x572xf32>,
    %c0_35 = arith.constant 0 : index
    %c40 = arith.constant 40 : index
    %29 = vector.load %arg0[%c0_35, %c40] : memref<1x648xf32, #tpu.memory_space<vmem>>, vector<1x572xf32>
    %c14 = arith.constant 14 : index
    %c0_36 = arith.constant 0 : index
    %30 = vector.load %arg11[%c14, %c0_36] : memref<200x572xf32, #tpu.memory_space<vmem>>, vector<1x572xf32>
    tpu.vector_store %arg11[%c14, %c0_36], %29 {strides = array<i32>} : memref<200x572xf32, #tpu.memory_space<vmem>>, vector<1x572xf32>,
    %c0_37 = arith.constant 0 : index
    %c54 = arith.constant 54 : index
    %31 = vector.load %arg0[%c0_37, %c54] : memref<1x648xf32, #tpu.memory_space<vmem>>, vector<1x572xf32>
    %c15 = arith.constant 15 : index
    %c0_38 = arith.constant 0 : index
    %32 = vector.load %arg11[%c15, %c0_38] : memref<200x572xf32, #tpu.memory_space<vmem>>, vector<1x572xf32>
    tpu.vector_store %arg11[%c15, %c0_38], %31 {strides = array<i32>} : memref<200x572xf32, #tpu.memory_space<vmem>>, vector<1x572xf32>,
    %c0_39 = arith.constant 0 : index
    %c55 = arith.constant 55 : index
    %33 = vector.load %arg0[%c0_39, %c55] : memref<1x648xf32, #tpu.memory_space<vmem>>, vector<1x572xf32>
    %c16 = arith.constant 16 : index
    %c0_40 = arith.constant 0 : index
    %34 = vector.load %arg11[%c16, %c0_40] : memref<200x572xf32, #tpu.memory_space<vmem>>, vector<1x572xf32>
    tpu.vector_store %arg11[%c16, %c0_40], %33 {strides = array<i32>} : memref<200x572xf32, #tpu.memory_space<vmem>>, vector<1x572xf32>,
    %c0_41 = arith.constant 0 : index
    %c56 = arith.constant 56 : index
    %35 = vector.load %arg0[%c0_41, %c56] : memref<1x648xf32, #tpu.memory_space<vmem>>, vector<1x572xf32>
    %c17 = arith.constant 17 : index
    %c0_42 = arith.constant 0 : index
    %36 = vector.load %arg11[%c17, %c0_42] : memref<200x572xf32, #tpu.memory_space<vmem>>, vector<1x572xf32>
    tpu.vector_store %arg11[%c17, %c0_42], %35 {strides = array<i32>} : memref<200x572xf32, #tpu.memory_space<vmem>>, vector<1x572xf32>,
    %c0_43 = arith.constant 0 : index
    %c57 = arith.constant 57 : index
    %37 = vector.load %arg0[%c0_43, %c57] : memref<1x648xf32, #tpu.memory_space<vmem>>, vector<1x572xf32>
    %c18_44 = arith.constant 18 : index
    %c0_45 = arith.constant 0 : index
    %38 = vector.load %arg11[%c18_44, %c0_45] : memref<200x572xf32, #tpu.memory_space<vmem>>, vector<1x572xf32>
    tpu.vector_store %arg11[%c18_44, %c0_45], %37 {strides = array<i32>} : memref<200x572xf32, #tpu.memory_space<vmem>>, vector<1x572xf32>,
    %c0_46 = arith.constant 0 : index
    %c58 = arith.constant 58 : index
    %39 = vector.load %arg0[%c0_46, %c58] : memref<1x648xf32, #tpu.memory_space<vmem>>, vector<1x572xf32>
    %c19_47 = arith.constant 19 : index
    %c0_48 = arith.constant 0 : index
    %40 = vector.load %arg11[%c19_47, %c0_48] : memref<200x572xf32, #tpu.memory_space<vmem>>, vector<1x572xf32>
    tpu.vector_store %arg11[%c19_47, %c0_48], %39 {strides = array<i32>} : memref<200x572xf32, #tpu.memory_space<vmem>>, vector<1x572xf32>,
    %c0_49 = arith.constant 0 : index
    %c72 = arith.constant 72 : index
    %41 = vector.load %arg0[%c0_49, %c72] : memref<1x648xf32, #tpu.memory_space<vmem>>, vector<1x572xf32>
    %c20_50 = arith.constant 20 : index
    %c0_51 = arith.constant 0 : index
    %42 = vector.load %arg11[%c20_50, %c0_51] : memref<200x572xf32, #tpu.memory_space<vmem>>, vector<1x572xf32>
    tpu.vector_store %arg11[%c20_50, %c0_51], %41 {strides = array<i32>} : memref<200x572xf32, #tpu.memory_space<vmem>>, vector<1x572xf32>,
    %c0_52 = arith.constant 0 : index
    %c73 = arith.constant 73 : index
    %43 = vector.load %arg0[%c0_52, %c73] : memref<1x648xf32, #tpu.memory_space<vmem>>, vector<1x572xf32>
    %c21_53 = arith.constant 21 : index
    %c0_54 = arith.constant 0 : index
    %44 = vector.load %arg11[%c21_53, %c0_54] : memref<200x572xf32, #tpu.memory_space<vmem>>, vector<1x572xf32>
    tpu.vector_store %arg11[%c21_53, %c0_54], %43 {strides = array<i32>} : memref<200x572xf32, #tpu.memory_space<vmem>>, vector<1x572xf32>,
    %c0_55 = arith.constant 0 : index
    %c74 = arith.constant 74 : index
    %45 = vector.load %arg0[%c0_55, %c74] : memref<1x648xf32, #tpu.memory_space<vmem>>, vector<1x572xf32>
    %c22_56 = arith.constant 22 : index
    %c0_57 = arith.constant 0 : index
    %46 = vector.load %arg11[%c22_56, %c0_57] : memref<200x572xf32, #tpu.memory_space<vmem>>, vector<1x572xf32>
    tpu.vector_store %arg11[%c22_56, %c0_57], %45 {strides = array<i32>} : memref<200x572xf32, #tpu.memory_space<vmem>>, vector<1x572xf32>,
    %c0_58 = arith.constant 0 : index
    %c75 = arith.constant 75 : index
    %47 = vector.load %arg0[%c0_58, %c75] : memref<1x648xf32, #tpu.memory_space<vmem>>, vector<1x572xf32>
    %c23 = arith.constant 23 : index
    %c0_59 = arith.constant 0 : index
    %48 = vector.load %arg11[%c23, %c0_59] : memref<200x572xf32, #tpu.memory_space<vmem>>, vector<1x572xf32>
    tpu.vector_store %arg11[%c23, %c0_59], %47 {strides = array<i32>} : memref<200x572xf32, #tpu.memory_space<vmem>>, vector<1x572xf32>,
    %c0_60 = arith.constant 0 : index
    %c76 = arith.constant 76 : index
    %49 = vector.load %arg0[%c0_60, %c76] : memref<1x648xf32, #tpu.memory_space<vmem>>, vector<1x572xf32>
    %c24 = arith.constant 24 : index
    %c0_61 = arith.constant 0 : index
    %50 = vector.load %arg11[%c24, %c0_61] : memref<200x572xf32, #tpu.memory_space<vmem>>, vector<1x572xf32>
    tpu.vector_store %arg11[%c24, %c0_61], %49 {strides = array<i32>} : memref<200x572xf32, #tpu.memory_space<vmem>>, vector<1x572xf32>,
    %c0_62 = arith.constant 0 : index
    %c0_63 = arith.constant 0 : index
    %51 = vector.load %arg1[%c0_62, %c0_63] : memref<8x25xf32, #tpu.memory_space<vmem>>, vector<8x25xf32>
    %c0_64 = arith.constant 0 : index
    %c0_65 = arith.constant 0 : index
    %52 = vector.load %arg11[%c0_64, %c0_65] : memref<200x572xf32, #tpu.memory_space<vmem>>, vector<25x572xf32>
    %cst = arith.constant dense<0.000000e+00> : vector<8x572xf32>
    %53 = tpu.matmul %51, %52, %cst {dimension_numbers = #tpu.dot_dimension_numbers<[1], [0], [0], [1], [0, 0, 1, 1], [], []>} : vector<8x25xf32>, vector<25x572xf32>, vector<8x572xf32> -> vector<8x572xf32>
    %c0_66 = arith.constant 0 : index
    %c0_67 = arith.constant 0 : index
    %54 = vector.load %arg2[%c0_66, %c0_67] : memref<8x1xf32, #tpu.memory_space<vmem>>, vector<8x1xf32>
    %55 = vector.broadcast %54 : vector<8x1xf32> to vector<8x572xf32>
    %56 = arith.addf %53, %55 : vector<8x572xf32>
    %cst_68 = arith.constant 0.000000e+00 : f32
    %57 = vector.broadcast %cst_68 : f32 to vector<8x572xf32>
    %58 = arith.maximumf %56, %57 : vector<8x572xf32>
    %59 = vector.broadcast %0 : vector<1x572xf32> to vector<8x572xf32>
    %60 = arith.mulf %58, %59 : vector<8x572xf32>
    %cst_69 = arith.constant 0.000000e+00 : f32
    %61 = vector.broadcast %cst_69 : f32 to vector<8x19xf32>
    %c0_70 = arith.constant 0 : index
    %c0_71 = arith.constant 0 : index
    %62 = vector.load %arg12[%c0_70, %c0_71] : memref<8x648xf32, #tpu.memory_space<vmem>>, vector<8x19xf32>
    tpu.vector_store %arg12[%c0_70, %c0_71], %61 {strides = array<i32>} : memref<8x648xf32, #tpu.memory_space<vmem>>, vector<8x19xf32>,
    %cst_72 = arith.constant 0.000000e+00 : f32
    %63 = vector.broadcast %cst_72 : f32 to vector<8x57xf32>
    %c0_73 = arith.constant 0 : index
    %c591 = arith.constant 591 : index
    %64 = vector.load %arg12[%c0_73, %c591] : memref<8x648xf32, #tpu.memory_space<vmem>>, vector<8x57xf32>
    tpu.vector_store %arg12[%c0_73, %c591], %63 {strides = array<i32>} : memref<8x648xf32, #tpu.memory_space<vmem>>, vector<8x57xf32>,
    %c0_74 = arith.constant 0 : index
    %c19_75 = arith.constant 19 : index
    %65 = vector.load %arg12[%c0_74, %c19_75] : memref<8x648xf32, #tpu.memory_space<vmem>>, vector<8x572xf32>
    tpu.vector_store %arg12[%c0_74, %c19_75], %60 {strides = array<i32>} : memref<8x648xf32, #tpu.memory_space<vmem>>, vector<8x572xf32>,
    %c1_76 = arith.constant 1 : index
    %c0_77 = arith.constant 0 : index
    %66 = vector.load %arg9[%c1_76, %c0_77] : memref<3x572xf32, #tpu.memory_space<vmem>>, vector<1x572xf32>
    %c0_78 = arith.constant 0 : index
    %c0_79 = arith.constant 0 : index
    %67 = vector.load %arg12[%c0_78, %c0_79] : memref<8x648xf32, #tpu.memory_space<vmem>>, vector<8x572xf32>
    %c0_80 = arith.constant 0 : index
    %c0_81 = arith.constant 0 : index
    %68 = vector.load %arg11[%c0_80, %c0_81] : memref<200x572xf32, #tpu.memory_space<vmem>>, vector<8x572xf32>
    tpu.vector_store %arg11[%c0_80, %c0_81], %67 {strides = array<i32>} : memref<200x572xf32, #tpu.memory_space<vmem>>, vector<8x572xf32>,
    %c0_82 = arith.constant 0 : index
    %c1_83 = arith.constant 1 : index
    %69 = vector.load %arg12[%c0_82, %c1_83] : memref<8x648xf32, #tpu.memory_space<vmem>>, vector<8x572xf32>
    %c8_84 = arith.constant 8 : index
    %c0_85 = arith.constant 0 : index
    %70 = vector.load %arg11[%c8_84, %c0_85] : memref<200x572xf32, #tpu.memory_space<vmem>>, vector<8x572xf32>
    tpu.vector_store %arg11[%c8_84, %c0_85], %69 {strides = array<i32>} : memref<200x572xf32, #tpu.memory_space<vmem>>, vector<8x572xf32>,
    %c0_86 = arith.constant 0 : index
    %c2_87 = arith.constant 2 : index
    %71 = vector.load %arg12[%c0_86, %c2_87] : memref<8x648xf32, #tpu.memory_space<vmem>>, vector<8x572xf32>
    %c16_88 = arith.constant 16 : index
    %c0_89 = arith.constant 0 : index
    %72 = vector.load %arg11[%c16_88, %c0_89] : memref<200x572xf32, #tpu.memory_space<vmem>>, vector<8x572xf32>
    tpu.vector_store %arg11[%c16_88, %c0_89], %71 {strides = array<i32>} : memref<200x572xf32, #tpu.memory_space<vmem>>, vector<8x572xf32>,
    %c0_90 = arith.constant 0 : index
    %c3_91 = arith.constant 3 : index
    %73 = vector.load %arg12[%c0_90, %c3_91] : memref<8x648xf32, #tpu.memory_space<vmem>>, vector<8x572xf32>
    %c24_92 = arith.constant 24 : index
    %c0_93 = arith.constant 0 : index
    %74 = vector.load %arg11[%c24_92, %c0_93] : memref<200x572xf32, #tpu.memory_space<vmem>>, vector<8x572xf32>
    tpu.vector_store %arg11[%c24_92, %c0_93], %73 {strides = array<i32>} : memref<200x572xf32, #tpu.memory_space<vmem>>, vector<8x572xf32>,
    %c0_94 = arith.constant 0 : index
    %c4_95 = arith.constant 4 : index
    %75 = vector.load %arg12[%c0_94, %c4_95] : memref<8x648xf32, #tpu.memory_space<vmem>>, vector<8x572xf32>
    %c32 = arith.constant 32 : index
    %c0_96 = arith.constant 0 : index
    %76 = vector.load %arg11[%c32, %c0_96] : memref<200x572xf32, #tpu.memory_space<vmem>>, vector<8x572xf32>
    tpu.vector_store %arg11[%c32, %c0_96], %75 {strides = array<i32>} : memref<200x572xf32, #tpu.memory_space<vmem>>, vector<8x572xf32>,
    %c0_97 = arith.constant 0 : index
    %c18_98 = arith.constant 18 : index
    %77 = vector.load %arg12[%c0_97, %c18_98] : memref<8x648xf32, #tpu.memory_space<vmem>>, vector<8x572xf32>
    %c40_99 = arith.constant 40 : index
    %c0_100 = arith.constant 0 : index
    %78 = vector.load %arg11[%c40_99, %c0_100] : memref<200x572xf32, #tpu.memory_space<vmem>>, vector<8x572xf32>
    tpu.vector_store %arg11[%c40_99, %c0_100], %77 {strides = array<i32>} : memref<200x572xf32, #tpu.memory_space<vmem>>, vector<8x572xf32>,
    %c0_101 = arith.constant 0 : index
    %c19_102 = arith.constant 19 : index
    %79 = vector.load %arg12[%c0_101, %c19_102] : memref<8x648xf32, #tpu.memory_space<vmem>>, vector<8x572xf32>
    %c48 = arith.constant 48 : index
    %c0_103 = arith.constant 0 : index
    %80 = vector.load %arg11[%c48, %c0_103] : memref<200x572xf32, #tpu.memory_space<vmem>>, vector<8x572xf32>
    tpu.vector_store %arg11[%c48, %c0_103], %79 {strides = array<i32>} : memref<200x572xf32, #tpu.memory_space<vmem>>, vector<8x572xf32>,
    %c0_104 = arith.constant 0 : index
    %c20_105 = arith.constant 20 : index
    %81 = vector.load %arg12[%c0_104, %c20_105] : memref<8x648xf32, #tpu.memory_space<vmem>>, vector<8x572xf32>
    %c56_106 = arith.constant 56 : index
    %c0_107 = arith.constant 0 : index
    %82 = vector.load %arg11[%c56_106, %c0_107] : memref<200x572xf32, #tpu.memory_space<vmem>>, vector<8x572xf32>
    tpu.vector_store %arg11[%c56_106, %c0_107], %81 {strides = array<i32>} : memref<200x572xf32, #tpu.memory_space<vmem>>, vector<8x572xf32>,
    %c0_108 = arith.constant 0 : index
    %c21_109 = arith.constant 21 : index
    %83 = vector.load %arg12[%c0_108, %c21_109] : memref<8x648xf32, #tpu.memory_space<vmem>>, vector<8x572xf32>
    %c64 = arith.constant 64 : index
    %c0_110 = arith.constant 0 : index
    %84 = vector.load %arg11[%c64, %c0_110] : memref<200x572xf32, #tpu.memory_space<vmem>>, vector<8x572xf32>
    tpu.vector_store %arg11[%c64, %c0_110], %83 {strides = array<i32>} : memref<200x572xf32, #tpu.memory_space<vmem>>, vector<8x572xf32>,
    %c0_111 = arith.constant 0 : index
    %c22_112 = arith.constant 22 : index
    %85 = vector.load %arg12[%c0_111, %c22_112] : memref<8x648xf32, #tpu.memory_space<vmem>>, vector<8x572xf32>
    %c72_113 = arith.constant 72 : index
    %c0_114 = arith.constant 0 : index
    %86 = vector.load %arg11[%c72_113, %c0_114] : memref<200x572xf32, #tpu.memory_space<vmem>>, vector<8x572xf32>
    tpu.vector_store %arg11[%c72_113, %c0_114], %85 {strides = array<i32>} : memref<200x572xf32, #tpu.memory_space<vmem>>, vector<8x572xf32>,
    %c0_115 = arith.constant 0 : index
    %c36_116 = arith.constant 36 : index
    %87 = vector.load %arg12[%c0_115, %c36_116] : memref<8x648xf32, #tpu.memory_space<vmem>>, vector<8x572xf32>
    %c80 = arith.constant 80 : index
    %c0_117 = arith.constant 0 : index
    %88 = vector.load %arg11[%c80, %c0_117] : memref<200x572xf32, #tpu.memory_space<vmem>>, vector<8x572xf32>
    tpu.vector_store %arg11[%c80, %c0_117], %87 {strides = array<i32>} : memref<200x572xf32, #tpu.memory_space<vmem>>, vector<8x572xf32>,
    %c0_118 = arith.constant 0 : index
    %c37_119 = arith.constant 37 : index
    %89 = vector.load %arg12[%c0_118, %c37_119] : memref<8x648xf32, #tpu.memory_space<vmem>>, vector<8x572xf32>
    %c88 = arith.constant 88 : index
    %c0_120 = arith.constant 0 : index
    %90 = vector.load %arg11[%c88, %c0_120] : memref<200x572xf32, #tpu.memory_space<vmem>>, vector<8x572xf32>
    tpu.vector_store %arg11[%c88, %c0_120], %89 {strides = array<i32>} : memref<200x572xf32, #tpu.memory_space<vmem>>, vector<8x572xf32>,
    %c0_121 = arith.constant 0 : index
    %c38_122 = arith.constant 38 : index
    %91 = vector.load %arg12[%c0_121, %c38_122] : memref<8x648xf32, #tpu.memory_space<vmem>>, vector<8x572xf32>
    %c96 = arith.constant 96 : index
    %c0_123 = arith.constant 0 : index
    %92 = vector.load %arg11[%c96, %c0_123] : memref<200x572xf32, #tpu.memory_space<vmem>>, vector<8x572xf32>
    tpu.vector_store %arg11[%c96, %c0_123], %91 {strides = array<i32>} : memref<200x572xf32, #tpu.memory_space<vmem>>, vector<8x572xf32>,
    %c0_124 = arith.constant 0 : index
    %c39_125 = arith.constant 39 : index
    %93 = vector.load %arg12[%c0_124, %c39_125] : memref<8x648xf32, #tpu.memory_space<vmem>>, vector<8x572xf32>
    %c104 = arith.constant 104 : index
    %c0_126 = arith.constant 0 : index
    %94 = vector.load %arg11[%c104, %c0_126] : memref<200x572xf32, #tpu.memory_space<vmem>>, vector<8x572xf32>
    tpu.vector_store %arg11[%c104, %c0_126], %93 {strides = array<i32>} : memref<200x572xf32, #tpu.memory_space<vmem>>, vector<8x572xf32>,
    %c0_127 = arith.constant 0 : index
    %c40_128 = arith.constant 40 : index
    %95 = vector.load %arg12[%c0_127, %c40_128] : memref<8x648xf32, #tpu.memory_space<vmem>>, vector<8x572xf32>
    %c112 = arith.constant 112 : index
    %c0_129 = arith.constant 0 : index
    %96 = vector.load %arg11[%c112, %c0_129] : memref<200x572xf32, #tpu.memory_space<vmem>>, vector<8x572xf32>
    tpu.vector_store %arg11[%c112, %c0_129], %95 {strides = array<i32>} : memref<200x572xf32, #tpu.memory_space<vmem>>, vector<8x572xf32>,
    %c0_130 = arith.constant 0 : index
    %c54_131 = arith.constant 54 : index
    %97 = vector.load %arg12[%c0_130, %c54_131] : memref<8x648xf32, #tpu.memory_space<vmem>>, vector<8x572xf32>
    %c120 = arith.constant 120 : index
    %c0_132 = arith.constant 0 : index
    %98 = vector.load %arg11[%c120, %c0_132] : memref<200x572xf32, #tpu.memory_space<vmem>>, vector<8x572xf32>
    tpu.vector_store %arg11[%c120, %c0_132], %97 {strides = array<i32>} : memref<200x572xf32, #tpu.memory_space<vmem>>, vector<8x572xf32>,
    %c0_133 = arith.constant 0 : index
    %c55_134 = arith.constant 55 : index
    %99 = vector.load %arg12[%c0_133, %c55_134] : memref<8x648xf32, #tpu.memory_space<vmem>>, vector<8x572xf32>
    %c128 = arith.constant 128 : index
    %c0_135 = arith.constant 0 : index
    %100 = vector.load %arg11[%c128, %c0_135] : memref<200x572xf32, #tpu.memory_space<vmem>>, vector<8x572xf32>
    tpu.vector_store %arg11[%c128, %c0_135], %99 {strides = array<i32>} : memref<200x572xf32, #tpu.memory_space<vmem>>, vector<8x572xf32>,
    %c0_136 = arith.constant 0 : index
    %c56_137 = arith.constant 56 : index
    %101 = vector.load %arg12[%c0_136, %c56_137] : memref<8x648xf32, #tpu.memory_space<vmem>>, vector<8x572xf32>
    %c136 = arith.constant 136 : index
    %c0_138 = arith.constant 0 : index
    %102 = vector.load %arg11[%c136, %c0_138] : memref<200x572xf32, #tpu.memory_space<vmem>>, vector<8x572xf32>
    tpu.vector_store %arg11[%c136, %c0_138], %101 {strides = array<i32>} : memref<200x572xf32, #tpu.memory_space<vmem>>, vector<8x572xf32>,
    %c0_139 = arith.constant 0 : index
    %c57_140 = arith.constant 57 : index
    %103 = vector.load %arg12[%c0_139, %c57_140] : memref<8x648xf32, #tpu.memory_space<vmem>>, vector<8x572xf32>
    %c144 = arith.constant 144 : index
    %c0_141 = arith.constant 0 : index
    %104 = vector.load %arg11[%c144, %c0_141] : memref<200x572xf32, #tpu.memory_space<vmem>>, vector<8x572xf32>
    tpu.vector_store %arg11[%c144, %c0_141], %103 {strides = array<i32>} : memref<200x572xf32, #tpu.memory_space<vmem>>, vector<8x572xf32>,
    %c0_142 = arith.constant 0 : index
    %c58_143 = arith.constant 58 : index
    %105 = vector.load %arg12[%c0_142, %c58_143] : memref<8x648xf32, #tpu.memory_space<vmem>>, vector<8x572xf32>
    %c152 = arith.constant 152 : index
    %c0_144 = arith.constant 0 : index
    %106 = vector.load %arg11[%c152, %c0_144] : memref<200x572xf32, #tpu.memory_space<vmem>>, vector<8x572xf32>
    tpu.vector_store %arg11[%c152, %c0_144], %105 {strides = array<i32>} : memref<200x572xf32, #tpu.memory_space<vmem>>, vector<8x572xf32>,
    %c0_145 = arith.constant 0 : index
    %c72_146 = arith.constant 72 : index
    %107 = vector.load %arg12[%c0_145, %c72_146] : memref<8x648xf32, #tpu.memory_space<vmem>>, vector<8x572xf32>
    %c160 = arith.constant 160 : index
    %c0_147 = arith.constant 0 : index
    %108 = vector.load %arg11[%c160, %c0_147] : memref<200x572xf32, #tpu.memory_space<vmem>>, vector<8x572xf32>
    tpu.vector_store %arg11[%c160, %c0_147], %107 {strides = array<i32>} : memref<200x572xf32, #tpu.memory_space<vmem>>, vector<8x572xf32>,
    %c0_148 = arith.constant 0 : index
    %c73_149 = arith.constant 73 : index
    %109 = vector.load %arg12[%c0_148, %c73_149] : memref<8x648xf32, #tpu.memory_space<vmem>>, vector<8x572xf32>
    %c168 = arith.constant 168 : index
    %c0_150 = arith.constant 0 : index
    %110 = vector.load %arg11[%c168, %c0_150] : memref<200x572xf32, #tpu.memory_space<vmem>>, vector<8x572xf32>
    tpu.vector_store %arg11[%c168, %c0_150], %109 {strides = array<i32>} : memref<200x572xf32, #tpu.memory_space<vmem>>, vector<8x572xf32>,
    %c0_151 = arith.constant 0 : index
    %c74_152 = arith.constant 74 : index
    %111 = vector.load %arg12[%c0_151, %c74_152] : memref<8x648xf32, #tpu.memory_space<vmem>>, vector<8x572xf32>
    %c176 = arith.constant 176 : index
    %c0_153 = arith.constant 0 : index
    %112 = vector.load %arg11[%c176, %c0_153] : memref<200x572xf32, #tpu.memory_space<vmem>>, vector<8x572xf32>
    tpu.vector_store %arg11[%c176, %c0_153], %111 {strides = array<i32>} : memref<200x572xf32, #tpu.memory_space<vmem>>, vector<8x572xf32>,
    %c0_154 = arith.constant 0 : index
    %c75_155 = arith.constant 75 : index
    %113 = vector.load %arg12[%c0_154, %c75_155] : memref<8x648xf32, #tpu.memory_space<vmem>>, vector<8x572xf32>
    %c184 = arith.constant 184 : index
    %c0_156 = arith.constant 0 : index
    %114 = vector.load %arg11[%c184, %c0_156] : memref<200x572xf32, #tpu.memory_space<vmem>>, vector<8x572xf32>
    tpu.vector_store %arg11[%c184, %c0_156], %113 {strides = array<i32>} : memref<200x572xf32, #tpu.memory_space<vmem>>, vector<8x572xf32>,
    %c0_157 = arith.constant 0 : index
    %c76_158 = arith.constant 76 : index
    %115 = vector.load %arg12[%c0_157, %c76_158] : memref<8x648xf32, #tpu.memory_space<vmem>>, vector<8x572xf32>
    %c192 = arith.constant 192 : index
    %c0_159 = arith.constant 0 : index
    %116 = vector.load %arg11[%c192, %c0_159] : memref<200x572xf32, #tpu.memory_space<vmem>>, vector<8x572xf32>
    tpu.vector_store %arg11[%c192, %c0_159], %115 {strides = array<i32>} : memref<200x572xf32, #tpu.memory_space<vmem>>, vector<8x572xf32>,
    %c0_160 = arith.constant 0 : index
    %c0_161 = arith.constant 0 : index
    %117 = vector.load %arg3[%c0_160, %c0_161] : memref<8x200xf32, #tpu.memory_space<vmem>>, vector<8x200xf32>
    %c0_162 = arith.constant 0 : index
    %c0_163 = arith.constant 0 : index
    %118 = vector.load %arg11[%c0_162, %c0_163] : memref<200x572xf32, #tpu.memory_space<vmem>>, vector<200x572xf32>
    %cst_164 = arith.constant dense<0.000000e+00> : vector<8x572xf32>
    %119 = tpu.matmul %117, %118, %cst_164 {dimension_numbers = #tpu.dot_dimension_numbers<[1], [0], [0], [1], [0, 0, 1, 1], [], []>} : vector<8x200xf32>, vector<200x572xf32>, vector<8x572xf32> -> vector<8x572xf32>
    %c0_165 = arith.constant 0 : index
    %c0_166 = arith.constant 0 : index
    %120 = vector.load %arg4[%c0_165, %c0_166] : memref<8x1xf32, #tpu.memory_space<vmem>>, vector<8x1xf32>
    %121 = vector.broadcast %120 : vector<8x1xf32> to vector<8x572xf32>
    %122 = arith.addf %119, %121 : vector<8x572xf32>
    %cst_167 = arith.constant 0.000000e+00 : f32
    %123 = vector.broadcast %cst_167 : f32 to vector<8x572xf32>
    %124 = arith.maximumf %122, %123 : vector<8x572xf32>
    %125 = vector.broadcast %66 : vector<1x572xf32> to vector<8x572xf32>
    %126 = arith.mulf %124, %125 : vector<8x572xf32>
    %cst_168 = arith.constant 0.000000e+00 : f32
    %127 = vector.broadcast %cst_168 : f32 to vector<8x19xf32>
    %c0_169 = arith.constant 0 : index
    %c0_170 = arith.constant 0 : index
    %128 = vector.load %arg13[%c0_169, %c0_170] : memref<8x648xf32, #tpu.memory_space<vmem>>, vector<8x19xf32>
    tpu.vector_store %arg13[%c0_169, %c0_170], %127 {strides = array<i32>} : memref<8x648xf32, #tpu.memory_space<vmem>>, vector<8x19xf32>,
    %cst_171 = arith.constant 0.000000e+00 : f32
    %129 = vector.broadcast %cst_171 : f32 to vector<8x57xf32>
    %c0_172 = arith.constant 0 : index
    %c591_173 = arith.constant 591 : index
    %130 = vector.load %arg13[%c0_172, %c591_173] : memref<8x648xf32, #tpu.memory_space<vmem>>, vector<8x57xf32>
    tpu.vector_store %arg13[%c0_172, %c591_173], %129 {strides = array<i32>} : memref<8x648xf32, #tpu.memory_space<vmem>>, vector<8x57xf32>,
    %c0_174 = arith.constant 0 : index
    %c19_175 = arith.constant 19 : index
    %131 = vector.load %arg13[%c0_174, %c19_175] : memref<8x648xf32, #tpu.memory_space<vmem>>, vector<8x572xf32>
    tpu.vector_store %arg13[%c0_174, %c19_175], %126 {strides = array<i32>} : memref<8x648xf32, #tpu.memory_space<vmem>>, vector<8x572xf32>,
    %c2_176 = arith.constant 2 : index
    %c0_177 = arith.constant 0 : index
    %132 = vector.load %arg9[%c2_176, %c0_177] : memref<3x572xf32, #tpu.memory_space<vmem>>, vector<1x572xf32>
    %c0_178 = arith.constant 0 : index
    %c0_179 = arith.constant 0 : index
    %133 = vector.load %arg13[%c0_178, %c0_179] : memref<8x648xf32, #tpu.memory_space<vmem>>, vector<8x572xf32>
    %c0_180 = arith.constant 0 : index
    %c0_181 = arith.constant 0 : index
    %134 = vector.load %arg11[%c0_180, %c0_181] : memref<200x572xf32, #tpu.memory_space<vmem>>, vector<8x572xf32>
    tpu.vector_store %arg11[%c0_180, %c0_181], %133 {strides = array<i32>} : memref<200x572xf32, #tpu.memory_space<vmem>>, vector<8x572xf32>,
    %c0_182 = arith.constant 0 : index
    %c1_183 = arith.constant 1 : index
    %135 = vector.load %arg13[%c0_182, %c1_183] : memref<8x648xf32, #tpu.memory_space<vmem>>, vector<8x572xf32>
    %c8_184 = arith.constant 8 : index
    %c0_185 = arith.constant 0 : index
    %136 = vector.load %arg11[%c8_184, %c0_185] : memref<200x572xf32, #tpu.memory_space<vmem>>, vector<8x572xf32>
    tpu.vector_store %arg11[%c8_184, %c0_185], %135 {strides = array<i32>} : memref<200x572xf32, #tpu.memory_space<vmem>>, vector<8x572xf32>,
    %c0_186 = arith.constant 0 : index
    %c2_187 = arith.constant 2 : index
    %137 = vector.load %arg13[%c0_186, %c2_187] : memref<8x648xf32, #tpu.memory_space<vmem>>, vector<8x572xf32>
    %c16_188 = arith.constant 16 : index
    %c0_189 = arith.constant 0 : index
    %138 = vector.load %arg11[%c16_188, %c0_189] : memref<200x572xf32, #tpu.memory_space<vmem>>, vector<8x572xf32>
    tpu.vector_store %arg11[%c16_188, %c0_189], %137 {strides = array<i32>} : memref<200x572xf32, #tpu.memory_space<vmem>>, vector<8x572xf32>,
    %c0_190 = arith.constant 0 : index
    %c3_191 = arith.constant 3 : index
    %139 = vector.load %arg13[%c0_190, %c3_191] : memref<8x648xf32, #tpu.memory_space<vmem>>, vector<8x572xf32>
    %c24_192 = arith.constant 24 : index
    %c0_193 = arith.constant 0 : index
    %140 = vector.load %arg11[%c24_192, %c0_193] : memref<200x572xf32, #tpu.memory_space<vmem>>, vector<8x572xf32>
    tpu.vector_store %arg11[%c24_192, %c0_193], %139 {strides = array<i32>} : memref<200x572xf32, #tpu.memory_space<vmem>>, vector<8x572xf32>,
    %c0_194 = arith.constant 0 : index
    %c4_195 = arith.constant 4 : index
    %141 = vector.load %arg13[%c0_194, %c4_195] : memref<8x648xf32, #tpu.memory_space<vmem>>, vector<8x572xf32>
    %c32_196 = arith.constant 32 : index
    %c0_197 = arith.constant 0 : index
    %142 = vector.load %arg11[%c32_196, %c0_197] : memref<200x572xf32, #tpu.memory_space<vmem>>, vector<8x572xf32>
    tpu.vector_store %arg11[%c32_196, %c0_197], %141 {strides = array<i32>} : memref<200x572xf32, #tpu.memory_space<vmem>>, vector<8x572xf32>,
    %c0_198 = arith.constant 0 : index
    %c18_199 = arith.constant 18 : index
    %143 = vector.load %arg13[%c0_198, %c18_199] : memref<8x648xf32, #tpu.memory_space<vmem>>, vector<8x572xf32>
    %c40_200 = arith.constant 40 : index
    %c0_201 = arith.constant 0 : index
    %144 = vector.load %arg11[%c40_200, %c0_201] : memref<200x572xf32, #tpu.memory_space<vmem>>, vector<8x572xf32>
    tpu.vector_store %arg11[%c40_200, %c0_201], %143 {strides = array<i32>} : memref<200x572xf32, #tpu.memory_space<vmem>>, vector<8x572xf32>,
    %c0_202 = arith.constant 0 : index
    %c19_203 = arith.constant 19 : index
    %145 = vector.load %arg13[%c0_202, %c19_203] : memref<8x648xf32, #tpu.memory_space<vmem>>, vector<8x572xf32>
    %c48_204 = arith.constant 48 : index
    %c0_205 = arith.constant 0 : index
    %146 = vector.load %arg11[%c48_204, %c0_205] : memref<200x572xf32, #tpu.memory_space<vmem>>, vector<8x572xf32>
    tpu.vector_store %arg11[%c48_204, %c0_205], %145 {strides = array<i32>} : memref<200x572xf32, #tpu.memory_space<vmem>>, vector<8x572xf32>,
    %c0_206 = arith.constant 0 : index
    %c20_207 = arith.constant 20 : index
    %147 = vector.load %arg13[%c0_206, %c20_207] : memref<8x648xf32, #tpu.memory_space<vmem>>, vector<8x572xf32>
    %c56_208 = arith.constant 56 : index
    %c0_209 = arith.constant 0 : index
    %148 = vector.load %arg11[%c56_208, %c0_209] : memref<200x572xf32, #tpu.memory_space<vmem>>, vector<8x572xf32>
    tpu.vector_store %arg11[%c56_208, %c0_209], %147 {strides = array<i32>} : memref<200x572xf32, #tpu.memory_space<vmem>>, vector<8x572xf32>,
    %c0_210 = arith.constant 0 : index
    %c21_211 = arith.constant 21 : index
    %149 = vector.load %arg13[%c0_210, %c21_211] : memref<8x648xf32, #tpu.memory_space<vmem>>, vector<8x572xf32>
    %c64_212 = arith.constant 64 : index
    %c0_213 = arith.constant 0 : index
    %150 = vector.load %arg11[%c64_212, %c0_213] : memref<200x572xf32, #tpu.memory_space<vmem>>, vector<8x572xf32>
    tpu.vector_store %arg11[%c64_212, %c0_213], %149 {strides = array<i32>} : memref<200x572xf32, #tpu.memory_space<vmem>>, vector<8x572xf32>,
    %c0_214 = arith.constant 0 : index
    %c22_215 = arith.constant 22 : index
    %151 = vector.load %arg13[%c0_214, %c22_215] : memref<8x648xf32, #tpu.memory_space<vmem>>, vector<8x572xf32>
    %c72_216 = arith.constant 72 : index
    %c0_217 = arith.constant 0 : index
    %152 = vector.load %arg11[%c72_216, %c0_217] : memref<200x572xf32, #tpu.memory_space<vmem>>, vector<8x572xf32>
    tpu.vector_store %arg11[%c72_216, %c0_217], %151 {strides = array<i32>} : memref<200x572xf32, #tpu.memory_space<vmem>>, vector<8x572xf32>,
    %c0_218 = arith.constant 0 : index
    %c36_219 = arith.constant 36 : index
    %153 = vector.load %arg13[%c0_218, %c36_219] : memref<8x648xf32, #tpu.memory_space<vmem>>, vector<8x572xf32>
    %c80_220 = arith.constant 80 : index
    %c0_221 = arith.constant 0 : index
    %154 = vector.load %arg11[%c80_220, %c0_221] : memref<200x572xf32, #tpu.memory_space<vmem>>, vector<8x572xf32>
    tpu.vector_store %arg11[%c80_220, %c0_221], %153 {strides = array<i32>} : memref<200x572xf32, #tpu.memory_space<vmem>>, vector<8x572xf32>,
    %c0_222 = arith.constant 0 : index
    %c37_223 = arith.constant 37 : index
    %155 = vector.load %arg13[%c0_222, %c37_223] : memref<8x648xf32, #tpu.memory_space<vmem>>, vector<8x572xf32>
    %c88_224 = arith.constant 88 : index
    %c0_225 = arith.constant 0 : index
    %156 = vector.load %arg11[%c88_224, %c0_225] : memref<200x572xf32, #tpu.memory_space<vmem>>, vector<8x572xf32>
    tpu.vector_store %arg11[%c88_224, %c0_225], %155 {strides = array<i32>} : memref<200x572xf32, #tpu.memory_space<vmem>>, vector<8x572xf32>,
    %c0_226 = arith.constant 0 : index
    %c38_227 = arith.constant 38 : index
    %157 = vector.load %arg13[%c0_226, %c38_227] : memref<8x648xf32, #tpu.memory_space<vmem>>, vector<8x572xf32>
    %c96_228 = arith.constant 96 : index
    %c0_229 = arith.constant 0 : index
    %158 = vector.load %arg11[%c96_228, %c0_229] : memref<200x572xf32, #tpu.memory_space<vmem>>, vector<8x572xf32>
    tpu.vector_store %arg11[%c96_228, %c0_229], %157 {strides = array<i32>} : memref<200x572xf32, #tpu.memory_space<vmem>>, vector<8x572xf32>,
    %c0_230 = arith.constant 0 : index
    %c39_231 = arith.constant 39 : index
    %159 = vector.load %arg13[%c0_230, %c39_231] : memref<8x648xf32, #tpu.memory_space<vmem>>, vector<8x572xf32>
    %c104_232 = arith.constant 104 : index
    %c0_233 = arith.constant 0 : index
    %160 = vector.load %arg11[%c104_232, %c0_233] : memref<200x572xf32, #tpu.memory_space<vmem>>, vector<8x572xf32>
    tpu.vector_store %arg11[%c104_232, %c0_233], %159 {strides = array<i32>} : memref<200x572xf32, #tpu.memory_space<vmem>>, vector<8x572xf32>,
    %c0_234 = arith.constant 0 : index
    %c40_235 = arith.constant 40 : index
    %161 = vector.load %arg13[%c0_234, %c40_235] : memref<8x648xf32, #tpu.memory_space<vmem>>, vector<8x572xf32>
    %c112_236 = arith.constant 112 : index
    %c0_237 = arith.constant 0 : index
    %162 = vector.load %arg11[%c112_236, %c0_237] : memref<200x572xf32, #tpu.memory_space<vmem>>, vector<8x572xf32>
    tpu.vector_store %arg11[%c112_236, %c0_237], %161 {strides = array<i32>} : memref<200x572xf32, #tpu.memory_space<vmem>>, vector<8x572xf32>,
    %c0_238 = arith.constant 0 : index
    %c54_239 = arith.constant 54 : index
    %163 = vector.load %arg13[%c0_238, %c54_239] : memref<8x648xf32, #tpu.memory_space<vmem>>, vector<8x572xf32>
    %c120_240 = arith.constant 120 : index
    %c0_241 = arith.constant 0 : index
    %164 = vector.load %arg11[%c120_240, %c0_241] : memref<200x572xf32, #tpu.memory_space<vmem>>, vector<8x572xf32>
    tpu.vector_store %arg11[%c120_240, %c0_241], %163 {strides = array<i32>} : memref<200x572xf32, #tpu.memory_space<vmem>>, vector<8x572xf32>,
    %c0_242 = arith.constant 0 : index
    %c55_243 = arith.constant 55 : index
    %165 = vector.load %arg13[%c0_242, %c55_243] : memref<8x648xf32, #tpu.memory_space<vmem>>, vector<8x572xf32>
    %c128_244 = arith.constant 128 : index
    %c0_245 = arith.constant 0 : index
    %166 = vector.load %arg11[%c128_244, %c0_245] : memref<200x572xf32, #tpu.memory_space<vmem>>, vector<8x572xf32>
    tpu.vector_store %arg11[%c128_244, %c0_245], %165 {strides = array<i32>} : memref<200x572xf32, #tpu.memory_space<vmem>>, vector<8x572xf32>,
    %c0_246 = arith.constant 0 : index
    %c56_247 = arith.constant 56 : index
    %167 = vector.load %arg13[%c0_246, %c56_247] : memref<8x648xf32, #tpu.memory_space<vmem>>, vector<8x572xf32>
    %c136_248 = arith.constant 136 : index
    %c0_249 = arith.constant 0 : index
    %168 = vector.load %arg11[%c136_248, %c0_249] : memref<200x572xf32, #tpu.memory_space<vmem>>, vector<8x572xf32>
    tpu.vector_store %arg11[%c136_248, %c0_249], %167 {strides = array<i32>} : memref<200x572xf32, #tpu.memory_space<vmem>>, vector<8x572xf32>,
    %c0_250 = arith.constant 0 : index
    %c57_251 = arith.constant 57 : index
    %169 = vector.load %arg13[%c0_250, %c57_251] : memref<8x648xf32, #tpu.memory_space<vmem>>, vector<8x572xf32>
    %c144_252 = arith.constant 144 : index
    %c0_253 = arith.constant 0 : index
    %170 = vector.load %arg11[%c144_252, %c0_253] : memref<200x572xf32, #tpu.memory_space<vmem>>, vector<8x572xf32>
    tpu.vector_store %arg11[%c144_252, %c0_253], %169 {strides = array<i32>} : memref<200x572xf32, #tpu.memory_space<vmem>>, vector<8x572xf32>,
    %c0_254 = arith.constant 0 : index
    %c58_255 = arith.constant 58 : index
    %171 = vector.load %arg13[%c0_254, %c58_255] : memref<8x648xf32, #tpu.memory_space<vmem>>, vector<8x572xf32>
    %c152_256 = arith.constant 152 : index
    %c0_257 = arith.constant 0 : index
    %172 = vector.load %arg11[%c152_256, %c0_257] : memref<200x572xf32, #tpu.memory_space<vmem>>, vector<8x572xf32>
    tpu.vector_store %arg11[%c152_256, %c0_257], %171 {strides = array<i32>} : memref<200x572xf32, #tpu.memory_space<vmem>>, vector<8x572xf32>,
    %c0_258 = arith.constant 0 : index
    %c72_259 = arith.constant 72 : index
    %173 = vector.load %arg13[%c0_258, %c72_259] : memref<8x648xf32, #tpu.memory_space<vmem>>, vector<8x572xf32>
    %c160_260 = arith.constant 160 : index
    %c0_261 = arith.constant 0 : index
    %174 = vector.load %arg11[%c160_260, %c0_261] : memref<200x572xf32, #tpu.memory_space<vmem>>, vector<8x572xf32>
    tpu.vector_store %arg11[%c160_260, %c0_261], %173 {strides = array<i32>} : memref<200x572xf32, #tpu.memory_space<vmem>>, vector<8x572xf32>,
    %c0_262 = arith.constant 0 : index
    %c73_263 = arith.constant 73 : index
    %175 = vector.load %arg13[%c0_262, %c73_263] : memref<8x648xf32, #tpu.memory_space<vmem>>, vector<8x572xf32>
    %c168_264 = arith.constant 168 : index
    %c0_265 = arith.constant 0 : index
    %176 = vector.load %arg11[%c168_264, %c0_265] : memref<200x572xf32, #tpu.memory_space<vmem>>, vector<8x572xf32>
    tpu.vector_store %arg11[%c168_264, %c0_265], %175 {strides = array<i32>} : memref<200x572xf32, #tpu.memory_space<vmem>>, vector<8x572xf32>,
    %c0_266 = arith.constant 0 : index
    %c74_267 = arith.constant 74 : index
    %177 = vector.load %arg13[%c0_266, %c74_267] : memref<8x648xf32, #tpu.memory_space<vmem>>, vector<8x572xf32>
    %c176_268 = arith.constant 176 : index
    %c0_269 = arith.constant 0 : index
    %178 = vector.load %arg11[%c176_268, %c0_269] : memref<200x572xf32, #tpu.memory_space<vmem>>, vector<8x572xf32>
    tpu.vector_store %arg11[%c176_268, %c0_269], %177 {strides = array<i32>} : memref<200x572xf32, #tpu.memory_space<vmem>>, vector<8x572xf32>,
    %c0_270 = arith.constant 0 : index
    %c75_271 = arith.constant 75 : index
    %179 = vector.load %arg13[%c0_270, %c75_271] : memref<8x648xf32, #tpu.memory_space<vmem>>, vector<8x572xf32>
    %c184_272 = arith.constant 184 : index
    %c0_273 = arith.constant 0 : index
    %180 = vector.load %arg11[%c184_272, %c0_273] : memref<200x572xf32, #tpu.memory_space<vmem>>, vector<8x572xf32>
    tpu.vector_store %arg11[%c184_272, %c0_273], %179 {strides = array<i32>} : memref<200x572xf32, #tpu.memory_space<vmem>>, vector<8x572xf32>,
    %c0_274 = arith.constant 0 : index
    %c76_275 = arith.constant 76 : index
    %181 = vector.load %arg13[%c0_274, %c76_275] : memref<8x648xf32, #tpu.memory_space<vmem>>, vector<8x572xf32>
    %c192_276 = arith.constant 192 : index
    %c0_277 = arith.constant 0 : index
    %182 = vector.load %arg11[%c192_276, %c0_277] : memref<200x572xf32, #tpu.memory_space<vmem>>, vector<8x572xf32>
    tpu.vector_store %arg11[%c192_276, %c0_277], %181 {strides = array<i32>} : memref<200x572xf32, #tpu.memory_space<vmem>>, vector<8x572xf32>,
    %c0_278 = arith.constant 0 : index
    %c0_279 = arith.constant 0 : index
    %183 = vector.load %arg5[%c0_278, %c0_279] : memref<8x200xf32, #tpu.memory_space<vmem>>, vector<8x200xf32>
    %c0_280 = arith.constant 0 : index
    %c0_281 = arith.constant 0 : index
    %184 = vector.load %arg11[%c0_280, %c0_281] : memref<200x572xf32, #tpu.memory_space<vmem>>, vector<200x572xf32>
    %cst_282 = arith.constant dense<0.000000e+00> : vector<8x572xf32>
    %185 = tpu.matmul %183, %184, %cst_282 {dimension_numbers = #tpu.dot_dimension_numbers<[1], [0], [0], [1], [0, 0, 1, 1], [], []>} : vector<8x200xf32>, vector<200x572xf32>, vector<8x572xf32> -> vector<8x572xf32>
    %c0_283 = arith.constant 0 : index
    %c0_284 = arith.constant 0 : index
    %186 = vector.load %arg6[%c0_283, %c0_284] : memref<8x1xf32, #tpu.memory_space<vmem>>, vector<8x1xf32>
    %187 = vector.broadcast %186 : vector<8x1xf32> to vector<8x572xf32>
    %188 = arith.addf %185, %187 : vector<8x572xf32>
    %cst_285 = arith.constant 0.000000e+00 : f32
    %189 = vector.broadcast %cst_285 : f32 to vector<8x572xf32>
    %190 = arith.maximumf %188, %189 : vector<8x572xf32>
    %191 = vector.broadcast %132 : vector<1x572xf32> to vector<8x572xf32>
    %192 = arith.mulf %190, %191 : vector<8x572xf32>
    %c0_286 = arith.constant 0 : index
    %c0_287 = arith.constant 0 : index
    %193 = vector.load %arg11[%c0_286, %c0_287] : memref<200x572xf32, #tpu.memory_space<vmem>>, vector<8x572xf32>
    tpu.vector_store %arg11[%c0_286, %c0_287], %192 {strides = array<i32>} : memref<200x572xf32, #tpu.memory_space<vmem>>, vector<8x572xf32>,
    %cst_288 = arith.constant 0.000000e+00 : f32
    %194 = vector.broadcast %cst_288 : f32 to vector<2x10xf32>
    %c0_289 = arith.constant 0 : index
    %c0_290 = arith.constant 0 : index
    %195 = vector.load %arg11[%c0_289, %c0_290] : memref<200x572xf32, #tpu.memory_space<vmem>>, vector<1x172xf32>
    %c0_291 = arith.constant 0 : index
    %c324 = arith.constant 324 : index
    %196 = vector.load %arg11[%c0_291, %c324] : memref<200x572xf32, #tpu.memory_space<vmem>>, vector<1x172xf32>
    %197 = tpu.concatenate %195, %196 in 0 : vector<1x172xf32>, vector<1x172xf32> -> vector<2x172xf32>
    %c0_292 = arith.constant 0 : index
    %c0_293 = arith.constant 0 : index
    %c0_294 = arith.constant 0 : index
    %198 = vector.load %arg7[%c0_292, %c0_293, %c0_294] : memref<8x172x10xf32, #tpu.memory_space<vmem>>, vector<1x172x10xf32>
    %199 = vector.shape_cast %198 : vector<1x172x10xf32> to vector<172x10xf32>
    %cst_295 = arith.constant dense<0.000000e+00> : vector<2x10xf32>
    %200 = tpu.matmul %197, %199, %cst_295 {dimension_numbers = #tpu.dot_dimension_numbers<[1], [0], [0], [1], [0, 0, 1, 1], [], []>} : vector<2x172xf32>, vector<172x10xf32>, vector<2x10xf32> -> vector<2x10xf32>
    %201 = arith.addf %194, %200 : vector<2x10xf32>
    %c1_296 = arith.constant 1 : index
    %c0_297 = arith.constant 0 : index
    %202 = vector.load %arg11[%c1_296, %c0_297] : memref<200x572xf32, #tpu.memory_space<vmem>>, vector<1x172xf32>
    %c1_298 = arith.constant 1 : index
    %c324_299 = arith.constant 324 : index
    %203 = vector.load %arg11[%c1_298, %c324_299] : memref<200x572xf32, #tpu.memory_space<vmem>>, vector<1x172xf32>
    %204 = tpu.concatenate %202, %203 in 0 : vector<1x172xf32>, vector<1x172xf32> -> vector<2x172xf32>
    %c1_300 = arith.constant 1 : index
    %c0_301 = arith.constant 0 : index
    %c0_302 = arith.constant 0 : index
    %205 = vector.load %arg7[%c1_300, %c0_301, %c0_302] : memref<8x172x10xf32, #tpu.memory_space<vmem>>, vector<1x172x10xf32>
    %206 = vector.shape_cast %205 : vector<1x172x10xf32> to vector<172x10xf32>
    %cst_303 = arith.constant dense<0.000000e+00> : vector<2x10xf32>
    %207 = tpu.matmul %204, %206, %cst_303 {dimension_numbers = #tpu.dot_dimension_numbers<[1], [0], [0], [1], [0, 0, 1, 1], [], []>} : vector<2x172xf32>, vector<172x10xf32>, vector<2x10xf32> -> vector<2x10xf32>
    %208 = arith.addf %201, %207 : vector<2x10xf32>
    %c2_304 = arith.constant 2 : index
    %c0_305 = arith.constant 0 : index
    %209 = vector.load %arg11[%c2_304, %c0_305] : memref<200x572xf32, #tpu.memory_space<vmem>>, vector<1x172xf32>
    %c2_306 = arith.constant 2 : index
    %c324_307 = arith.constant 324 : index
    %210 = vector.load %arg11[%c2_306, %c324_307] : memref<200x572xf32, #tpu.memory_space<vmem>>, vector<1x172xf32>
    %211 = tpu.concatenate %209, %210 in 0 : vector<1x172xf32>, vector<1x172xf32> -> vector<2x172xf32>
    %c2_308 = arith.constant 2 : index
    %c0_309 = arith.constant 0 : index
    %c0_310 = arith.constant 0 : index
    %212 = vector.load %arg7[%c2_308, %c0_309, %c0_310] : memref<8x172x10xf32, #tpu.memory_space<vmem>>, vector<1x172x10xf32>
    %213 = vector.shape_cast %212 : vector<1x172x10xf32> to vector<172x10xf32>
    %cst_311 = arith.constant dense<0.000000e+00> : vector<2x10xf32>
    %214 = tpu.matmul %211, %213, %cst_311 {dimension_numbers = #tpu.dot_dimension_numbers<[1], [0], [0], [1], [0, 0, 1, 1], [], []>} : vector<2x172xf32>, vector<172x10xf32>, vector<2x10xf32> -> vector<2x10xf32>
    %215 = arith.addf %208, %214 : vector<2x10xf32>
    %c3_312 = arith.constant 3 : index
    %c0_313 = arith.constant 0 : index
    %216 = vector.load %arg11[%c3_312, %c0_313] : memref<200x572xf32, #tpu.memory_space<vmem>>, vector<1x172xf32>
    %c3_314 = arith.constant 3 : index
    %c324_315 = arith.constant 324 : index
    %217 = vector.load %arg11[%c3_314, %c324_315] : memref<200x572xf32, #tpu.memory_space<vmem>>, vector<1x172xf32>
    %218 = tpu.concatenate %216, %217 in 0 : vector<1x172xf32>, vector<1x172xf32> -> vector<2x172xf32>
    %c3_316 = arith.constant 3 : index
    %c0_317 = arith.constant 0 : index
    %c0_318 = arith.constant 0 : index
    %219 = vector.load %arg7[%c3_316, %c0_317, %c0_318] : memref<8x172x10xf32, #tpu.memory_space<vmem>>, vector<1x172x10xf32>
    %220 = vector.shape_cast %219 : vector<1x172x10xf32> to vector<172x10xf32>
    %cst_319 = arith.constant dense<0.000000e+00> : vector<2x10xf32>
    %221 = tpu.matmul %218, %220, %cst_319 {dimension_numbers = #tpu.dot_dimension_numbers<[1], [0], [0], [1], [0, 0, 1, 1], [], []>} : vector<2x172xf32>, vector<172x10xf32>, vector<2x10xf32> -> vector<2x10xf32>
    %222 = arith.addf %215, %221 : vector<2x10xf32>
    %c4_320 = arith.constant 4 : index
    %c0_321 = arith.constant 0 : index
    %223 = vector.load %arg11[%c4_320, %c0_321] : memref<200x572xf32, #tpu.memory_space<vmem>>, vector<1x172xf32>
    %c4_322 = arith.constant 4 : index
    %c324_323 = arith.constant 324 : index
    %224 = vector.load %arg11[%c4_322, %c324_323] : memref<200x572xf32, #tpu.memory_space<vmem>>, vector<1x172xf32>
    %225 = tpu.concatenate %223, %224 in 0 : vector<1x172xf32>, vector<1x172xf32> -> vector<2x172xf32>
    %c4_324 = arith.constant 4 : index
    %c0_325 = arith.constant 0 : index
    %c0_326 = arith.constant 0 : index
    %226 = vector.load %arg7[%c4_324, %c0_325, %c0_326] : memref<8x172x10xf32, #tpu.memory_space<vmem>>, vector<1x172x10xf32>
    %227 = vector.shape_cast %226 : vector<1x172x10xf32> to vector<172x10xf32>
    %cst_327 = arith.constant dense<0.000000e+00> : vector<2x10xf32>
    %228 = tpu.matmul %225, %227, %cst_327 {dimension_numbers = #tpu.dot_dimension_numbers<[1], [0], [0], [1], [0, 0, 1, 1], [], []>} : vector<2x172xf32>, vector<172x10xf32>, vector<2x10xf32> -> vector<2x10xf32>
    %229 = arith.addf %222, %228 : vector<2x10xf32>
    %c5_328 = arith.constant 5 : index
    %c0_329 = arith.constant 0 : index
    %230 = vector.load %arg11[%c5_328, %c0_329] : memref<200x572xf32, #tpu.memory_space<vmem>>, vector<1x172xf32>
    %c5_330 = arith.constant 5 : index
    %c324_331 = arith.constant 324 : index
    %231 = vector.load %arg11[%c5_330, %c324_331] : memref<200x572xf32, #tpu.memory_space<vmem>>, vector<1x172xf32>
    %232 = tpu.concatenate %230, %231 in 0 : vector<1x172xf32>, vector<1x172xf32> -> vector<2x172xf32>
    %c5_332 = arith.constant 5 : index
    %c0_333 = arith.constant 0 : index
    %c0_334 = arith.constant 0 : index
    %233 = vector.load %arg7[%c5_332, %c0_333, %c0_334] : memref<8x172x10xf32, #tpu.memory_space<vmem>>, vector<1x172x10xf32>
    %234 = vector.shape_cast %233 : vector<1x172x10xf32> to vector<172x10xf32>
    %cst_335 = arith.constant dense<0.000000e+00> : vector<2x10xf32>
    %235 = tpu.matmul %232, %234, %cst_335 {dimension_numbers = #tpu.dot_dimension_numbers<[1], [0], [0], [1], [0, 0, 1, 1], [], []>} : vector<2x172xf32>, vector<172x10xf32>, vector<2x10xf32> -> vector<2x10xf32>
    %236 = arith.addf %229, %235 : vector<2x10xf32>
    %c6_336 = arith.constant 6 : index
    %c0_337 = arith.constant 0 : index
    %237 = vector.load %arg11[%c6_336, %c0_337] : memref<200x572xf32, #tpu.memory_space<vmem>>, vector<1x172xf32>
    %c6_338 = arith.constant 6 : index
    %c324_339 = arith.constant 324 : index
    %238 = vector.load %arg11[%c6_338, %c324_339] : memref<200x572xf32, #tpu.memory_space<vmem>>, vector<1x172xf32>
    %239 = tpu.concatenate %237, %238 in 0 : vector<1x172xf32>, vector<1x172xf32> -> vector<2x172xf32>
    %c6_340 = arith.constant 6 : index
    %c0_341 = arith.constant 0 : index
    %c0_342 = arith.constant 0 : index
    %240 = vector.load %arg7[%c6_340, %c0_341, %c0_342] : memref<8x172x10xf32, #tpu.memory_space<vmem>>, vector<1x172x10xf32>
    %241 = vector.shape_cast %240 : vector<1x172x10xf32> to vector<172x10xf32>
    %cst_343 = arith.constant dense<0.000000e+00> : vector<2x10xf32>
    %242 = tpu.matmul %239, %241, %cst_343 {dimension_numbers = #tpu.dot_dimension_numbers<[1], [0], [0], [1], [0, 0, 1, 1], [], []>} : vector<2x172xf32>, vector<172x10xf32>, vector<2x10xf32> -> vector<2x10xf32>
    %243 = arith.addf %236, %242 : vector<2x10xf32>
    %c7_344 = arith.constant 7 : index
    %c0_345 = arith.constant 0 : index
    %244 = vector.load %arg11[%c7_344, %c0_345] : memref<200x572xf32, #tpu.memory_space<vmem>>, vector<1x172xf32>
    %c7_346 = arith.constant 7 : index
    %c324_347 = arith.constant 324 : index
    %245 = vector.load %arg11[%c7_346, %c324_347] : memref<200x572xf32, #tpu.memory_space<vmem>>, vector<1x172xf32>
    %246 = tpu.concatenate %244, %245 in 0 : vector<1x172xf32>, vector<1x172xf32> -> vector<2x172xf32>
    %c7_348 = arith.constant 7 : index
    %c0_349 = arith.constant 0 : index
    %c0_350 = arith.constant 0 : index
    %247 = vector.load %arg7[%c7_348, %c0_349, %c0_350] : memref<8x172x10xf32, #tpu.memory_space<vmem>>, vector<1x172x10xf32>
    %248 = vector.shape_cast %247 : vector<1x172x10xf32> to vector<172x10xf32>
    %cst_351 = arith.constant dense<0.000000e+00> : vector<2x10xf32>
    %249 = tpu.matmul %246, %248, %cst_351 {dimension_numbers = #tpu.dot_dimension_numbers<[1], [0], [0], [1], [0, 0, 1, 1], [], []>} : vector<2x172xf32>, vector<172x10xf32>, vector<2x10xf32> -> vector<2x10xf32>
    %250 = arith.addf %243, %249 : vector<2x10xf32>
    %c0_352 = arith.constant 0 : index
    %c0_353 = arith.constant 0 : index
    %251 = vector.load %arg8[%c0_352, %c0_353] : memref<1x10xf32, #tpu.memory_space<vmem>>, vector<1x10xf32>
    %252 = vector.broadcast %251 : vector<1x10xf32> to vector<2x10xf32>
    %253 = arith.addf %250, %252 : vector<2x10xf32>
    %c0_354 = arith.constant 0 : index
    %c0_355 = arith.constant 0 : index
    %254 = vector.load %arg10[%c0_354, %c0_355] : memref<2x10xf32, #tpu.memory_space<vmem>>, vector<2x10xf32>
    tpu.vector_store %arg10[%c0_354, %c0_355], %253 {strides = array<i32>} : memref<2x10xf32, #tpu.memory_space<vmem>>, vector<2x10xf32>,
    return
  }
}

</mosaic_0001>

<llo_original>
// kernel: convnet_forward.1
$region0: #{convnet_forward.1}
  #allocation0 [shape = 'u32[]', space=smem, size = 0x4, offset = 0x4, fixed_abs, tag = 'smem constant byte address 0x4 - core index']
  #allocation1 [shape = 'u32[144,128]{1,0:T(1,128)}', space=vmem, size = 0x12000, scoped, tag = 'internal scratch']
  #allocation2 [shape = 'f32[200,572]{1,0:T(8,128)}', space=vmem, size = 0x7d000, scoped, tag = 'scratch operand']
  #allocation3 [shape = 'f32[8,648]{1,0:T(8,128)}', space=vmem, size = 0x6000, scoped, tag = 'scratch operand']
  #allocation4 [shape = 'f32[8,648]{1,0:T(8,128)}', space=vmem, size = 0x6000, scoped, tag = 'scratch operand']
  %s0 = inlined_call_operand.vmem [shape: f32[1,648], index: 0, kind: input, shape index: {}]
  %s1 = inlined_call_operand.vmem [shape: f32[8,25], index: 1, kind: input, shape index: {}]
  %s2 = inlined_call_operand.vmem [shape: f32[8,1], index: 2, kind: input, shape index: {}]
  %s3 = inlined_call_operand.vmem [shape: f32[8,200], index: 3, kind: input, shape index: {}]
  %s4 = inlined_call_operand.vmem [shape: f32[8,1], index: 4, kind: input, shape index: {}]
  %s5 = inlined_call_operand.vmem [shape: f32[8,200], index: 5, kind: input, shape index: {}]
  %s6 = inlined_call_operand.vmem [shape: f32[8,1], index: 6, kind: input, shape index: {}]
  %s7 = inlined_call_operand.vmem [shape: f32[8,172,10], index: 7, kind: input, shape index: {}]
  %s8 = inlined_call_operand.vmem [shape: f32[1,10], index: 8, kind: input, shape index: {}]
  %s9 = inlined_call_operand.vmem [shape: f32[3,572], index: 9, kind: input, shape index: {}]
  %s10 = inlined_call_operand.hbm [shape: f32[2,10], index: 10, kind: output, shape index: {}]
  %s11 = sld [smem:[#allocation0]]
  $region50: #{convnet_forward.1} parent=0
    _
  %s13 = ssub.s32 1, %s11
  %s14 = scalar_select 0, %s13, %s11
  $region1: #{convnet_forward.1} parent=0
    #allocation5 [shape = 'u8[1024]{0}', space=vmem, size = 0x400, scoped, tag = 'output window, operand 0, single buffered']
    #allocation6 [shape = 's32[1]{0}', space=sflag, size = 0x4, scoped, tag = 'scoped memory for convnet_forward.1']
    %15 = vsyncpa [#allocation6], 0
    // Predicated region
    $region2: #{convnet_forward.1} parent=1 // pred_check
      _
    $region3: #{convnet_forward.1} parent=1 // pred_check_branch
      %17 = sbr.rel (0) target = $region5
    $region4: #{convnet_forward.1} parent=1 // pred_region
      _
    $region5: #{convnet_forward.1} parent=1 // pred_fallthru
      _
    // Predicated region
    $region6: #{convnet_forward.1} parent=1 // pred_check
      _
    $region7: #{convnet_forward.1} parent=1 // pred_check_branch
      %19 = sbr.rel (0) target = $region9
    $region8: #{convnet_forward.1} parent=1 // pred_region
      _
    $region9: #{convnet_forward.1} parent=1 // pred_fallthru
      _
    // Predicated region
    $region10: #{convnet_forward.1} parent=1 // pred_check
      _
    $region11: #{convnet_forward.1} parent=1 // pred_check_branch
      %21 = sbr.rel (0) target = $region13
    $region12: #{convnet_forward.1} parent=1 // pred_region
      _
    $region13: #{convnet_forward.1} parent=1 // pred_fallthru
      _
    // Predicated region
    $region14: #{convnet_forward.1} parent=1 // pred_check
      _
    $region15: #{convnet_forward.1} parent=1 // pred_check_branch
      %23 = sbr.rel (0) target = $region17
    $region16: #{convnet_forward.1} parent=1 // pred_region
      _
    $region17: #{convnet_forward.1} parent=1 // pred_fallthru
      _
    // Predicated region
    $region18: #{convnet_forward.1} parent=1 // pred_check
      _
    $region19: #{convnet_forward.1} parent=1 // pred_check_branch
      %25 = sbr.rel (0) target = $region21
    $region20: #{convnet_forward.1} parent=1 // pred_region
      _
    $region21: #{convnet_forward.1} parent=1 // pred_fallthru
      _
    // Predicated region
    $region22: #{convnet_forward.1} parent=1 // pred_check
      _
    $region23: #{convnet_forward.1} parent=1 // pred_check_branch
      %27 = sbr.rel (0) target = $region25
    $region24: #{convnet_forward.1} parent=1 // pred_region
      _
    $region25: #{convnet_forward.1} parent=1 // pred_fallthru
      _
    // Predicated region
    $region26: #{convnet_forward.1} parent=1 // pred_check
      _
    $region27: #{convnet_forward.1} parent=1 // pred_check_branch
      %29 = sbr.rel (0) target = $region29
    $region28: #{convnet_forward.1} parent=1 // pred_region
      _
    $region29: #{convnet_forward.1} parent=1 // pred_fallthru
      _
    // Predicated region
    $region30: #{convnet_forward.1} parent=1 // pred_check
      _
    $region31: #{convnet_forward.1} parent=1 // pred_check_branch
      %31 = sbr.rel (0) target = $region33
    $region32: #{convnet_forward.1} parent=1 // pred_region
      _
    $region33: #{convnet_forward.1} parent=1 // pred_fallthru
      _
    // Predicated region
    $region34: #{convnet_forward.1} parent=1 // pred_check
      _
    $region35: #{convnet_forward.1} parent=1 // pred_check_branch
      %33 = sbr.rel (0) target = $region37
    $region36: #{convnet_forward.1} parent=1 // pred_region
      _
    $region37: #{convnet_forward.1} parent=1 // pred_fallthru
      _
    // Predicated region
    $region38: #{convnet_forward.1} parent=1 // pred_check
      _
    $region39: #{convnet_forward.1} parent=1 // pred_check_branch
      %35 = sbr.rel (0) target = $region41
    $region40: #{convnet_forward.1} parent=1 // pred_region
      _
    $region41: #{convnet_forward.1} parent=1 // pred_fallthru
      _
    %v36 = vld [vmem:[%s9] ss:$4 sm:$0x1f]
    %v37 = vld [vmem:[%s0] sm:$0x1f]
    %v38 = vlaneseq
    %vm39 = vcmp.ge.s32.totalorder %v38, 0
    %vm40 = vcmp.lt.s32.totalorder %v38, 572
    %vm41 = vmand %vm39, %vm40
    %42 = vst.msk [vmem:[#allocation2] ss:$8 sm:$0xf] %vm41, %v37
    %43 = vst.msk [vmem:[#allocation2] ss:$8 sm:$0x10] %vm41, %v37
    %v44 = vld [vmem:[%s0] sm:$0x1f]
    %46 = vrot.lane.b32.xlu0 %v44, 127
    %v47 = vpop.permute.xlu0 %46
    %v48 = vrot.slane %v47, 1
    %vm49 = vcmask 1039360
    %v50 = vsel %vm49, %v47, %v48
    %s52 = scalar_lea.vmem [#allocation2], 1
    %53 = vst.msk [vmem:[%s52] ss:$8 sm:$0xf] %vm41, %v50
    %54 = vst.msk [vmem:[%s52] ss:$8 sm:$0x10] %vm41, %v50
    %v55 = vld [vmem:[%s0] sm:$0x1f]
    %57 = vrot.lane.b32.xlu0 %v55, 126
    %v58 = vpop.permute.xlu0 %57
    %v59 = vrot.slane %v58, 1
    %vm60 = vcmask 1031168
    %v61 = vsel %vm60, %v58, %v59
    %s63 = scalar_lea.vmem [#allocation2], 2
    %64 = vst.msk [vmem:[%s63] ss:$8 sm:$0xf] %vm41, %v61
    %65 = vst.msk [vmem:[%s63] ss:$8 sm:$0x10] %vm41, %v61
    %v66 = vld [vmem:[%s0] sm:$0x1f]
    %68 = vrot.lane.b32.xlu0 %v66, 125
    %v69 = vpop.permute.xlu0 %68
    %v70 = vrot.slane %v69, 1
    %vm71 = vcmask 1022976
    %v72 = vsel %vm71, %v69, %v70
    %s74 = scalar_lea.vmem [#allocation2], 3
    %75 = vst.msk [vmem:[%s74] ss:$8 sm:$0xf] %vm41, %v72
    %76 = vst.msk [vmem:[%s74] ss:$8 sm:$0x10] %vm41, %v72
    %v77 = vld [vmem:[%s0] sm:$0x1f]
    %79 = vrot.lane.b32.xlu0 %v77, 124
    %v80 = vpop.permute.xlu0 %79
    %v81 = vrot.slane %v80, 1
    %vm82 = vcmask 1014784
    %v83 = vsel %vm82, %v80, %v81
    %s85 = scalar_lea.vmem [#allocation2], 4
    %86 = vst.msk [vmem:[%s85] ss:$8 sm:$0xf] %vm41, %v83
    %87 = vst.msk [vmem:[%s85] ss:$8 sm:$0x10] %vm41, %v83
    %v88 = vld [vmem:[%s0] sm:$0x1f]
    %90 = vrot.lane.b32.xlu0 %v88, 110
    %v91 = vpop.permute.xlu0 %90
    %v92 = vrot.slane %v91, 1
    %vm93 = vcmask 900096
    %v94 = vsel %vm93, %v91, %v92
    %s96 = scalar_lea.vmem [#allocation2], 5
    %97 = vst.msk [vmem:[%s96] ss:$8 sm:$0xf] %vm41, %v94
    %98 = vst.msk [vmem:[%s96] ss:$8 sm:$0x10] %vm41, %v94
    %v99 = vld [vmem:[%s0] sm:$0x1f]
    %101 = vrot.lane.b32.xlu0 %v99, 109
    %v102 = vpop.permute.xlu0 %101
    %v103 = vrot.slane %v102, 1
    %vm104 = vcmask 891904
    %v105 = vsel %vm104, %v102, %v103
    %s107 = scalar_lea.vmem [#allocation2], 6
    %108 = vst.msk [vmem:[%s107] ss:$8 sm:$0xf] %vm41, %v105
    %109 = vst.msk [vmem:[%s107] ss:$8 sm:$0x10] %vm41, %v105
    %v110 = vld [vmem:[%s0] sm:$0x1f]
    %112 = vrot.lane.b32.xlu0 %v110, 108
    %v113 = vpop.permute.xlu0 %112
    %v114 = vrot.slane %v113, 1
    %vm115 = vcmask 883712
    %v116 = vsel %vm115, %v113, %v114
    %s118 = scalar_lea.vmem [#allocation2], 7
    %119 = vst.msk [vmem:[%s118] ss:$8 sm:$0xf] %vm41, %v116
    %120 = vst.msk [vmem:[%s118] ss:$8 sm:$0x10] %vm41, %v116
    %v121 = vld [vmem:[%s0] sm:$0x1f]
    %123 = vrot.lane.b32.xlu0 %v121, 107
    %v124 = vpop.permute.xlu0 %123
    %v125 = vrot.slane %v124, 1
    %vm126 = vcmask 875520
    %v127 = vsel %vm126, %v124, %v125
    %s129 = scalar_lea.vmem [#allocation2], 40
    %130 = vst.msk [vmem:[%s129] ss:$8 sm:$0xf] %vm41, %v127
    %131 = vst.msk [vmem:[%s129] ss:$8 sm:$0x10] %vm41, %v127
    %v132 = vld [vmem:[%s0] sm:$0x1f]
    %134 = vrot.lane.b32.xlu0 %v132, 106
    %v135 = vpop.permute.xlu0 %134
    %v136 = vrot.slane %v135, 1
    %vm137 = vcmask 867328
    %v138 = vsel %vm137, %v135, %v136
    %s140 = scalar_lea.vmem [#allocation2], 41
    %141 = vst.msk [vmem:[%s140] ss:$8 sm:$0xf] %vm41, %v138
    %142 = vst.msk [vmem:[%s140] ss:$8 sm:$0x10] %vm41, %v138
    %v143 = vld [vmem:[%s0] sm:$0x1f]
    %145 = vrot.lane.b32.xlu0 %v143, 92
    %v146 = vpop.permute.xlu0 %145
    %v147 = vrot.slane %v146, 1
    %vm148 = vcmask 752640
    %v149 = vsel %vm148, %v146, %v147
    %s151 = scalar_lea.vmem [#allocation2], 42
    %152 = vst.msk [vmem:[%s151] ss:$8 sm:$0xf] %vm41, %v149
    %153 = vst.msk [vmem:[%s151] ss:$8 sm:$0x10] %vm41, %v149
    %v154 = vld [vmem:[%s0] sm:$0x1f]
    %156 = vrot.lane.b32.xlu0 %v154, 91
    %v157 = vpop.permute.xlu0 %156
    %v158 = vrot.slane %v157, 1
    %vm159 = vcmask 744448
    %v160 = vsel %vm159, %v157, %v158
    %s162 = scalar_lea.vmem [#allocation2], 43
    %163 = vst.msk [vmem:[%s162] ss:$8 sm:$0xf] %vm41, %v160
    %164 = vst.msk [vmem:[%s162] ss:$8 sm:$0x10] %vm41, %v160
    %v165 = vld [vmem:[%s0] sm:$0x1f]
    %167 = vrot.lane.b32.xlu0 %v165, 90
    %v168 = vpop.permute.xlu0 %167
    %v169 = vrot.slane %v168, 1
    %vm170 = vcmask 736256
    %v171 = vsel %vm170, %v168, %v169
    %s173 = scalar_lea.vmem [#allocation2], 44
    %174 = vst.msk [vmem:[%s173] ss:$8 sm:$0xf] %vm41, %v171
    %175 = vst.msk [vmem:[%s173] ss:$8 sm:$0x10] %vm41, %v171
    %v176 = vld [vmem:[%s0] sm:$0x1f]
    %178 = vrot.lane.b32.xlu0 %v176, 89
    %v179 = vpop.permute.xlu0 %178
    %v180 = vrot.slane %v179, 1
    %vm181 = vcmask 728064
    %v182 = vsel %vm181, %v179, %v180
    %s184 = scalar_lea.vmem [#allocation2], 45
    %185 = vst.msk [vmem:[%s184] ss:$8 sm:$0xf] %vm41, %v182
    %186 = vst.msk [vmem:[%s184] ss:$8 sm:$0x10] %vm41, %v182
    %v187 = vld [vmem:[%s0] sm:$0x1f]
    %189 = vrot.lane.b32.xlu0 %v187, 88
    %v190 = vpop.permute.xlu0 %189
    %v191 = vrot.slane %v190, 1
    %vm192 = vcmask 719872
    %v193 = vsel %vm192, %v190, %v191
    %s195 = scalar_lea.vmem [#allocation2], 46
    %196 = vst.msk [vmem:[%s195] ss:$8 sm:$0xf] %vm41, %v193
    %197 = vst.msk [vmem:[%s195] ss:$8 sm:$0x10] %vm41, %v193
    %v198 = vld [vmem:[%s0] sm:$0x1f]
    %200 = vrot.lane.b32.xlu0 %v198, 74
    %v201 = vpop.permute.xlu0 %200
    %v202 = vrot.slane %v201, 1
    %vm203 = vcmask 605184
    %v204 = vsel %vm203, %v201, %v202
    %s206 = scalar_lea.vmem [#allocation2], 47
    %207 = vst.msk [vmem:[%s206] ss:$8 sm:$0xf] %vm41, %v204
    %208 = vst.msk [vmem:[%s206] ss:$8 sm:$0x10] %vm41, %v204
    %v209 = vld [vmem:[%s0] sm:$0x1f]
    %211 = vrot.lane.b32.xlu0 %v209, 73
    %v212 = vpop.permute.xlu0 %211
    %v213 = vrot.slane %v212, 1
    %vm214 = vcmask 596992
    %v215 = vsel %vm214, %v212, %v213
    %s217 = scalar_lea.vmem [#allocation2], 80
    %218 = vst.msk [vmem:[%s217] ss:$8 sm:$0xf] %vm41, %v215
    %219 = vst.msk [vmem:[%s217] ss:$8 sm:$0x10] %vm41, %v215
    %v220 = vld [vmem:[%s0] sm:$0x1f]
    %222 = vrot.lane.b32.xlu0 %v220, 72
    %v223 = vpop.permute.xlu0 %222
    %v224 = vrot.slane %v223, 1
    %vm225 = vcmask 588800
    %v226 = vsel %vm225, %v223, %v224
    %s228 = scalar_lea.vmem [#allocation2], 81
    %229 = vst.msk [vmem:[%s228] ss:$8 sm:$0xf] %vm41, %v226
    %230 = vst.msk [vmem:[%s228] ss:$8 sm:$0x10] %vm41, %v226
    %v231 = vld [vmem:[%s0] sm:$0x1f]
    %233 = vrot.lane.b32.xlu0 %v231, 71
    %v234 = vpop.permute.xlu0 %233
    %v235 = vrot.slane %v234, 1
    %vm236 = vcmask 580608
    %v237 = vsel %vm236, %v234, %v235
    %s239 = scalar_lea.vmem [#allocation2], 82
    %240 = vst.msk [vmem:[%s239] ss:$8 sm:$0xf] %vm41, %v237
    %241 = vst.msk [vmem:[%s239] ss:$8 sm:$0x10] %vm41, %v237
    %v242 = vld [vmem:[%s0] sm:$0x1f]
    %244 = vrot.lane.b32.xlu0 %v242, 70
    %v245 = vpop.permute.xlu0 %244
    %v246 = vrot.slane %v245, 1
    %vm247 = vcmask 572416
    %v248 = vsel %vm247, %v245, %v246
    %s250 = scalar_lea.vmem [#allocation2], 83
    %251 = vst.msk [vmem:[%s250] ss:$8 sm:$0xf] %vm41, %v248
    %252 = vst.msk [vmem:[%s250] ss:$8 sm:$0x10] %vm41, %v248
    %v253 = vld [vmem:[%s0] sm:$0x3f]
    %255 = vrot.lane.b32.xlu0 %v253, 56
    %v256 = vpop.permute.xlu0 %255
    %v257 = vrot.slane %v256, 1
    %vm258 = vcmask 457728
    %v259 = vsel %vm258, %v256, %v257
    %s261 = scalar_lea.vmem [#allocation2], 84
    %262 = vst.msk [vmem:[%s261] ss:$8 sm:$0xf] %vm41, %v259
    %263 = vst.msk [vmem:[%s261] ss:$8 sm:$0x10] %vm41, %v259
    %v264 = vld [vmem:[%s0] sm:$0x3f]
    %266 = vrot.lane.b32.xlu0 %v264, 55
    %v267 = vpop.permute.xlu0 %266
    %v268 = vrot.slane %v267, 1
    %vm269 = vcmask 449536
    %v270 = vsel %vm269, %v267, %v268
    %s272 = scalar_lea.vmem [#allocation2], 85
    %273 = vst.msk [vmem:[%s272] ss:$8 sm:$0xf] %vm41, %v270
    %274 = vst.msk [vmem:[%s272] ss:$8 sm:$0x10] %vm41, %v270
    %v275 = vld [vmem:[%s0] sm:$0x3f]
    %277 = vrot.lane.b32.xlu0 %v275, 54
    %v278 = vpop.permute.xlu0 %277
    %v279 = vrot.slane %v278, 1
    %vm280 = vcmask 441344
    %v281 = vsel %vm280, %v278, %v279
    %s283 = scalar_lea.vmem [#allocation2], 86
    %284 = vst.msk [vmem:[%s283] ss:$8 sm:$0xf] %vm41, %v281
    %285 = vst.msk [vmem:[%s283] ss:$8 sm:$0x10] %vm41, %v281
    %v286 = vld [vmem:[%s0] sm:$0x3f]
    %288 = vrot.lane.b32.xlu0 %v286, 53
    %v289 = vpop.permute.xlu0 %288
    %v290 = vrot.slane %v289, 1
    %vm291 = vcmask 433152
    %v292 = vsel %vm291, %v289, %v290
    %s294 = scalar_lea.vmem [#allocation2], 87
    %295 = vst.msk [vmem:[%s294] ss:$8 sm:$0xf] %vm41, %v292
    %296 = vst.msk [vmem:[%s294] ss:$8 sm:$0x10] %vm41, %v292
    %v297 = vld [vmem:[%s0] sm:$0x3f]
    %299 = vrot.lane.b32.xlu0 %v297, 52
    %v300 = vpop.permute.xlu0 %299
    %v301 = vrot.slane %v300, 1
    %vm302 = vcmask 424960
    %v303 = vsel %vm302, %v300, %v301
    %s305 = scalar_lea.vmem [#allocation2], 120
    %306 = vst.msk [vmem:[%s305] ss:$8 sm:$0xf] %vm41, %v303
    %307 = vst.msk [vmem:[%s305] ss:$8 sm:$0x10] %vm41, %v303
    %v308 = vld [vmem:[%s1] sm:$0xff]
    %v309 = vld [vmem:[#allocation2] sm:$0xff]
    %v310 = vld [vmem:[#allocation2 + $0x8] sm:$0xff]
    %v311 = vld [vmem:[#allocation2 + $0x10] sm:$0xff]
    %v312 = vld [vmem:[#allocation2 + $0x18] sm:$0xff]
    %v313 = vld [vmem:[#allocation2 + $0x20] sm:$0xff]
    %v314 = vld [vmem:[#allocation2 + $0x28] sm:$0xff]
    %v315 = vld [vmem:[#allocation2 + $0x30] sm:$0xff]
    %v316 = vld [vmem:[#allocation2 + $0x38] sm:$0xff]
    %v317 = vld [vmem:[#allocation2 + $0x40] sm:$0xff]
    %v318 = vld [vmem:[#allocation2 + $0x48] sm:$0xff]
    %v319 = vld [vmem:[#allocation2 + $0x50] sm:$0xff]
    %v320 = vld [vmem:[#allocation2 + $0x58] sm:$0xff]
    %v321 = vld [vmem:[#allocation2 + $0x60] sm:$0xff]
    %v322 = vld [vmem:[#allocation2 + $0x68] sm:$0xff]
    %v323 = vld [vmem:[#allocation2 + $0x70] sm:$0xff]
    %v324 = vld [vmem:[#allocation2 + $0x78] sm:$0x1]
    %v325 = vld [vmem:[#allocation2 + $0x80] sm:$0x1]
    %v326 = vld [vmem:[#allocation2 + $0x88] sm:$0x1]
    %v327 = vld [vmem:[#allocation2 + $0x90] sm:$0x1]
    %v328 = vld [vmem:[#allocation2 + $0x98] sm:$0x1]
    %v329 = vld [vmem:[%s2] sm:$0xff]
    %331 = vset.pattern.permute.xlu0 0
    %332 = vperm.xlu0 %331, %v329
    %v333 = vpop.permute.xlu0 %332
    %vm335 = vcmask 203776
    %v337 = vsel %vm335, %v308, 0
    %vm339 = vcmask 1040384
    %v341 = vsel %vm339, %v324, 0
    %v344 = vsel %vm339, %v325, 0
    %v347 = vsel %vm339, %v326, 0
    %v350 = vsel %vm339, %v327, 0
    %v353 = vsel %vm339, %v328, 0
    %355 = vmatprep.subr.mxu0 %v310
    %356 = vmatpush1.msra.mxu0 %v309
    %357 = vmatprep.subr.mxu0 %v315
    %358 = vmatpush1.msra.mxu0 %v314
    %359 = vmatprep.subr.mxu0 %v320
    %360 = vmatpush1.msra.mxu0 %v319
    %361 = vmatprep.subr.mxu0 %v344
    %362 = vmatpush1.msra.mxu0 %v341
    %363 = vmatprep.subr.mxu0 0.0
    %364 = vmatpush1.msra.mxu0 0.0
    %365 = vmatprep.subr.mxu0 0.0
    %366 = vmatpush1.msra.mxu0 0.0
    %367 = vmatprep.subr.mxu0 0.0
    %368 = vmatpush1.msra.mxu0 0.0
    %369 = vmatprep.subr.mxu0 0.0
    %370 = vmatpush1.msra.mxu0 0.0
    %371 = vmatprep.subr.mxu0 0.0
    %372 = vmatpush1.msra.mxu0 0.0
    %373 = vmatprep.subr.mxu0 0.0
    %374 = vmatpush1.msra.mxu0 0.0
    %375 = vmatprep.subr.mxu0 0.0
    %376 = vmatpush1.msra.mxu0 0.0
    %377 = vmatprep.subr.mxu0 0.0
    %378 = vmatpush1.msra.mxu0 0.0
    %379 = vmatprep.subr.mxu0 0.0
    %380 = vmatpush1.msra.mxu0 0.0
    %381 = vmatprep.subr.mxu0 0.0
    %382 = vmatpush1.msra.mxu0 0.0
    %383 = vmatprep.subr.mxu0 0.0
    %384 = vmatpush1.msra.mxu0 0.0
    %385 = vmatprep.subr.mxu0 0.0
    %386 = vmatpush1.msra.mxu0 0.0
    %387 = vmatprep.subr.mxu0 0.0
    %388 = vmatpush1.msra.mxu0 0.0
    %389 = vmatprep.subr.mxu0 0.0
    %390 = vmatpush1.msra.mxu0 0.0
    %391 = vmatprep.subr.mxu0 0.0
    %392 = vmatpush1.msra.mxu0 0.0
    %393 = vmatprep.subr.mxu0 0.0
    %394 = vmatpush1.msra.mxu0 0.0
    %395 = vmatprep.subr.mxu0 0.0
    %396 = vmatpush1.msra.mxu0 0.0
    %397 = vmatprep.subr.mxu0 0.0
    %398 = vmatpush1.msra.mxu0 0.0
    %399 = vmatprep.subr.mxu0 0.0
    %400 = vmatpush1.msra.mxu0 0.0
    %401 = vmatprep.subr.mxu0 0.0
    %402 = vmatpush1.msra.mxu0 0.0
    %403 = vmatprep.subr.mxu0 0.0
    %404 = vmatpush1.msra.mxu0 0.0
    %405 = vmatprep.subr.mxu0 0.0
    %406 = vmatpush1.msra.mxu0 0.0
    %407 = vmatprep.subr.mxu0 0.0
    %408 = vmatpush1.msra.mxu0 0.0
    %409 = vmatprep.subr.mxu0 0.0
    %410 = vmatpush1.msra.mxu0 0.0
    %411 = vmatprep.subr.mxu0 0.0
    %412 = vmatpush1.msra.mxu0 0.0
    %413 = vmatprep.subr.mxu0 0.0
    %414 = vmatpush1.msra.mxu0 0.0
    %415 = vmatprep.subr.mxu0 0.0
    %416 = vmatpush1.msra.mxu0 0.0
    %417 = vmatprep.subr.mxu0 0.0
    %418 = vmatpush1.msra.mxu0 0.0
    %419 = vmatprep.mubr.f32.mxu0 0.0
    %420 = vmatmul.mubr.f32.gmra.mrb[0].mxu0 %v337
    %v421 = vpop.f32.mrb[0].mxu0
    %v422 = vadd.f32 %v333, %v421
    %v423 = vpop.f32.mrb[0].mxu0
    %v424 = vadd.f32 %v333, %v423
    %425 = vdwg.mxu0
    %426 = vmatprep.subr.mxu0 %v312
    %427 = vmatpush1.msra.mxu0 %v311
    %428 = vmatprep.subr.mxu0 %v317
    %429 = vmatpush1.msra.mxu0 %v316
    %430 = vmatprep.subr.mxu0 %v322
    %431 = vmatpush1.msra.mxu0 %v321
    %432 = vmatprep.subr.mxu0 %v350
    %433 = vmatpush1.msra.mxu0 %v347
    %434 = vmatprep.subr.mxu0 0.0
    %435 = vmatpush1.msra.mxu0 0.0
    %436 = vmatprep.subr.mxu0 0.0
    %437 = vmatpush1.msra.mxu0 0.0
    %438 = vmatprep.subr.mxu0 0.0
    %439 = vmatpush1.msra.mxu0 0.0
    %440 = vmatprep.subr.mxu0 0.0
    %441 = vmatpush1.msra.mxu0 0.0
    %442 = vmatprep.subr.mxu0 0.0
    %443 = vmatpush1.msra.mxu0 0.0
    %444 = vmatprep.subr.mxu0 0.0
    %445 = vmatpush1.msra.mxu0 0.0
    %446 = vmatprep.subr.mxu0 0.0
    %447 = vmatpush1.msra.mxu0 0.0
    %448 = vmatprep.subr.mxu0 0.0
    %449 = vmatpush1.msra.mxu0 0.0
    %450 = vmatprep.subr.mxu0 0.0
    %451 = vmatpush1.msra.mxu0 0.0
    %452 = vmatprep.subr.mxu0 0.0
    %453 = vmatpush1.msra.mxu0 0.0
    %454 = vmatprep.subr.mxu0 0.0
    %455 = vmatpush1.msra.mxu0 0.0
    %456 = vmatprep.subr.mxu0 0.0
    %457 = vmatpush1.msra.mxu0 0.0
    %458 = vmatprep.subr.mxu0 0.0
    %459 = vmatpush1.msra.mxu0 0.0
    %460 = vmatprep.subr.mxu0 0.0
    %461 = vmatpush1.msra.mxu0 0.0
    %462 = vmatprep.subr.mxu0 0.0
    %463 = vmatpush1.msra.mxu0 0.0
    %464 = vmatprep.subr.mxu0 0.0
    %465 = vmatpush1.msra.mxu0 0.0
    %466 = vmatprep.subr.mxu0 0.0
    %467 = vmatpush1.msra.mxu0 0.0
    %468 = vmatprep.subr.mxu0 0.0
    %469 = vmatpush1.msra.mxu0 0.0
    %470 = vmatprep.subr.mxu0 0.0
    %471 = vmatpush1.msra.mxu0 0.0
    %472 = vmatprep.subr.mxu0 0.0
    %473 = vmatpush1.msra.mxu0 0.0
    %474 = vmatprep.subr.mxu0 0.0
    %475 = vmatpush1.msra.mxu0 0.0
    %476 = vmatprep.subr.mxu0 0.0
    %477 = vmatpush1.msra.mxu0 0.0
    %478 = vmatprep.subr.mxu0 0.0
    %479 = vmatpush1.msra.mxu0 0.0
    %480 = vmatprep.subr.mxu0 0.0
    %481 = vmatpush1.msra.mxu0 0.0
    %482 = vmatprep.subr.mxu0 0.0
    %483 = vmatpush1.msra.mxu0 0.0
    %484 = vmatprep.subr.mxu0 0.0
    %485 = vmatpush1.msra.mxu0 0.0
    %486 = vmatprep.subr.mxu0 0.0
    %487 = vmatpush1.msra.mxu0 0.0
    %488 = vmatprep.subr.mxu0 0.0
    %489 = vmatpush1.msra.mxu0 0.0
    %490 = vmatprep.mubr.f32.mxu0 0.0
    %491 = vmatmul.mubr.f32.gmra.mrb[0].mxu0 %v337
    %v492 = vpop.f32.mrb[0].mxu0
    %v493 = vadd.f32 %v333, %v492
    %v494 = vpop.f32.mrb[0].mxu0
    %v495 = vadd.f32 %v333, %v494
    %496 = vdwg.mxu0
    %497 = vmatprep.subr.mxu0 0.0
    %498 = vmatpush1.msra.mxu0 %v313
    %499 = vmatprep.subr.mxu0 0.0
    %500 = vmatpush1.msra.mxu0 %v318
    %501 = vmatprep.subr.mxu0 0.0
    %502 = vmatpush1.msra.mxu0 %v323
    %503 = vmatprep.subr.mxu0 0.0
    %504 = vmatpush1.msra.mxu0 %v353
    %505 = vmatprep.subr.mxu0 0.0
    %506 = vmatpush1.msra.mxu0 0.0
    %507 = vmatprep.subr.mxu0 0.0
    %508 = vmatpush1.msra.mxu0 0.0
    %509 = vmatprep.subr.mxu0 0.0
    %510 = vmatpush1.msra.mxu0 0.0
    %511 = vmatprep.subr.mxu0 0.0
    %512 = vmatpush1.msra.mxu0 0.0
    %513 = vmatprep.subr.mxu0 0.0
    %514 = vmatpush1.msra.mxu0 0.0
    %515 = vmatprep.subr.mxu0 0.0
    %516 = vmatpush1.msra.mxu0 0.0
    %517 = vmatprep.subr.mxu0 0.0
    %518 = vmatpush1.msra.mxu0 0.0
    %519 = vmatprep.subr.mxu0 0.0
    %520 = vmatpush1.msra.mxu0 0.0
    %521 = vmatprep.subr.mxu0 0.0
    %522 = vmatpush1.msra.mxu0 0.0
    %523 = vmatprep.subr.mxu0 0.0
    %524 = vmatpush1.msra.mxu0 0.0
    %525 = vmatprep.subr.mxu0 0.0
    %526 = vmatpush1.msra.mxu0 0.0
    %527 = vmatprep.subr.mxu0 0.0
    %528 = vmatpush1.msra.mxu0 0.0
    %529 = vmatprep.subr.mxu0 0.0
    %530 = vmatpush1.msra.mxu0 0.0
    %531 = vmatprep.subr.mxu0 0.0
    %532 = vmatpush1.msra.mxu0 0.0
    %533 = vmatprep.subr.mxu0 0.0
    %534 = vmatpush1.msra.mxu0 0.0
    %535 = vmatprep.subr.mxu0 0.0
    %536 = vmatpush1.msra.mxu0 0.0
    %537 = vmatprep.subr.mxu0 0.0
    %538 = vmatpush1.msra.mxu0 0.0
    %539 = vmatprep.subr.mxu0 0.0
    %540 = vmatpush1.msra.mxu0 0.0
    %541 = vmatprep.subr.mxu0 0.0
    %542 = vmatpush1.msra.mxu0 0.0
    %543 = vmatprep.subr.mxu0 0.0
    %544 = vmatpush1.msra.mxu0 0.0
    %545 = vmatprep.subr.mxu0 0.0
    %546 = vmatpush1.msra.mxu0 0.0
    %547 = vmatprep.subr.mxu0 0.0
    %548 = vmatpush1.msra.mxu0 0.0
    %549 = vmatprep.subr.mxu0 0.0
    %550 = vmatpush1.msra.mxu0 0.0
    %551 = vmatprep.subr.mxu0 0.0
    %552 = vmatpush1.msra.mxu0 0.0
    %553 = vmatprep.subr.mxu0 0.0
    %554 = vmatpush1.msra.mxu0 0.0
    %555 = vmatprep.subr.mxu0 0.0
    %556 = vmatpush1.msra.mxu0 0.0
    %557 = vmatprep.subr.mxu0 0.0
    %558 = vmatpush1.msra.mxu0 0.0
    %559 = vmatprep.subr.mxu0 0.0
    %560 = vmatpush1.msra.mxu0 0.0
    %561 = vmatprep.mubr.f32.mxu0 0.0
    %562 = vmatmul.mubr.f32.gmra.mrb[0].mxu0 %v337
    %v563 = vpop.f32.mrb[0].mxu0
    %v564 = vadd.f32 %v333, %v563
    %v565 = vpop.f32.mrb[0].mxu0
    %566 = vdwg.mxu0
    %v567 = vmax.f32 %v422, 0.0
    %v568 = vmax.f32 %v424, 0.0
    %v569 = vmax.f32 %v493, 0.0
    %v570 = vmax.f32 %v495, 0.0
    %v571 = vmax.f32 %v564, 0.0
    %v573 = vlaneseq
    %v574 = vshrl.u32 %v573, 7
    %v575 = vsub.s32 0, %v574
    %v576 = vrot.slane %v36, %v575
    %v577 = vlaneseq
    %v578 = vshrl.u32 %v577, 7
    %v579 = vsub.s32 1, %v578
    %v580 = vrot.slane %v36, %v579
    %v581 = vlaneseq
    %v582 = vshrl.u32 %v581, 7
    %v583 = vsub.s32 2, %v582
    %v584 = vrot.slane %v36, %v583
    %v585 = vlaneseq
    %v586 = vshrl.u32 %v585, 7
    %v587 = vsub.s32 3, %v586
    %v588 = vrot.slane %v36, %v587
    %v589 = vlaneseq
    %v590 = vshrl.u32 %v589, 7
    %v591 = vsub.s32 4, %v590
    %v592 = vrot.slane %v36, %v591
    %v598 = vmul.f32 %v567, %v576
    %v599 = vmul.f32 %v568, %v580
    %v600 = vmul.f32 %v569, %v584
    %v601 = vmul.f32 %v570, %v588
    %v602 = vmul.f32 %v571, %v592
    %vm603 = vcmask 154624
    %604 = vst.msk [vmem:[#allocation3] sm:$0xff] %vm603, 0.0
    %vm605 = vcmask 1048184
    %606 = vst.msk [vmem:[#allocation3 + $0x20] sm:$0xff] %vm605, 0.0
    %vm607 = vcmask 64512
    %608 = vst.msk [vmem:[#allocation3 + $0x28] sm:$0xff] %vm607, 0.0
    %614 = vrot.lane.b32.xlu0 %v598, 19
    %v615 = vpop.permute.xlu0 %614
    %616 = vrot.lane.b32.xlu0 %v599, 19
    %v617 = vpop.permute.xlu0 %616
    %618 = vrot.lane.b32.xlu0 %v600, 19
    %v619 = vpop.permute.xlu0 %618
    %620 = vrot.lane.b32.xlu0 %v601, 19
    %v621 = vpop.permute.xlu0 %620
    %622 = vrot.lane.b32.xlu0 %v602, 19
    %v623 = vpop.permute.xlu0 %622
    %v624 = vsel %vm603, %v615, %v617
    %v625 = vsel %vm603, %v617, %v619
    %v626 = vsel %vm603, %v619, %v621
    %v627 = vsel %vm603, %v621, %v623
    %vm633 = vcmask 1047704
    %634 = vst.msk [vmem:[#allocation3] sm:$0xff] %vm633, %v615
    %635 = vst [vmem:[#allocation3 + $0x8] sm:$0xff] %v624
    %636 = vst [vmem:[#allocation3 + $0x10] sm:$0xff] %v625
    %637 = vst [vmem:[#allocation3 + $0x18] sm:$0xff] %v626
    %vm638 = vcmask 646144
    %639 = vst.msk [vmem:[#allocation3 + $0x20] sm:$0xff] %vm638, %v627
    %s640 = scalar_lea.vmem %s9, 1
    %v641 = vld [vmem:[%s640] ss:$4 sm:$0x1f]
    %v642 = vld [vmem:[#allocation3] sm:$0xff]
    %v643 = vld [vmem:[#allocation3 + $0x8] sm:$0xff]
    %v644 = vld [vmem:[#allocation3 + $0x10] sm:$0xff]
    %v645 = vld [vmem:[#allocation3 + $0x18] sm:$0xff]
    %v646 = vld [vmem:[#allocation3 + $0x20] sm:$0xff]
    %647 = vst [vmem:[#allocation2] sm:$0xff] %v642
    %648 = vst [vmem:[#allocation2 + $0x8] sm:$0xff] %v643
    %649 = vst [vmem:[#allocation2 + $0x10] sm:$0xff] %v644
    %650 = vst [vmem:[#allocation2 + $0x18] sm:$0xff] %v645
    %vm651 = vcmask 490496
    %652 = vst.msk [vmem:[#allocation2 + $0x20] sm:$0xff] %vm651, %v646
    %v653 = vld [vmem:[#allocation3] sm:$0xff]
    %v654 = vld [vmem:[#allocation3 + $0x8] sm:$0xff]
    %v655 = vld [vmem:[#allocation3 + $0x10] sm:$0xff]
    %v656 = vld [vmem:[#allocation3 + $0x18] sm:$0xff]
    %v657 = vld [vmem:[#allocation3 + $0x20] sm:$0xff]
    %663 = vrot.lane.b32.xlu0 %v653, 127
    %v664 = vpop.permute.xlu0 %663
    %665 = vrot.lane.b32.xlu0 %v654, 127
    %v666 = vpop.permute.xlu0 %665
    %667 = vrot.lane.b32.xlu0 %v655, 127
    %v668 = vpop.permute.xlu0 %667
    %669 = vrot.lane.b32.xlu0 %v656, 127
    %v670 = vpop.permute.xlu0 %669
    %671 = vrot.lane.b32.xlu0 %v657, 127
    %v672 = vpop.permute.xlu0 %671
    %v673 = vsel %vm49, %v664, %v666
    %v674 = vsel %vm49, %v666, %v668
    %v675 = vsel %vm49, %v668, %v670
    %v676 = vsel %vm49, %v670, %v672
    %682 = vst [vmem:[#allocation2 + $0x28] sm:$0xff] %v673
    %683 = vst [vmem:[#allocation2 + $0x30] sm:$0xff] %v674
    %684 = vst [vmem:[#allocation2 + $0x38] sm:$0xff] %v675
    %685 = vst [vmem:[#allocation2 + $0x40] sm:$0xff] %v676
    %686 = vst.msk [vmem:[#allocation2 + $0x48] sm:$0xff] %vm651, %v672
    %v687 = vld [vmem:[#allocation3] sm:$0xff]
    %v688 = vld [vmem:[#allocation3 + $0x8] sm:$0xff]
    %v689 = vld [vmem:[#allocation3 + $0x10] sm:$0xff]
    %v690 = vld [vmem:[#allocation3 + $0x18] sm:$0xff]
    %v691 = vld [vmem:[#allocation3 + $0x20] sm:$0xff]
    %697 = vrot.lane.b32.xlu0 %v687, 126
    %v698 = vpop.permute.xlu0 %697
    %699 = vrot.lane.b32.xlu0 %v688, 126
    %v700 = vpop.permute.xlu0 %699
    %701 = vrot.lane.b32.xlu0 %v689, 126
    %v702 = vpop.permute.xlu0 %701
    %703 = vrot.lane.b32.xlu0 %v690, 126
    %v704 = vpop.permute.xlu0 %703
    %705 = vrot.lane.b32.xlu0 %v691, 126
    %v706 = vpop.permute.xlu0 %705
    %v707 = vsel %vm60, %v698, %v700
    %v708 = vsel %vm60, %v700, %v702
    %v709 = vsel %vm60, %v702, %v704
    %v710 = vsel %vm60, %v704, %v706
    %716 = vst [vmem:[#allocation2 + $0x50] sm:$0xff] %v707
    %717 = vst [vmem:[#allocation2 + $0x58] sm:$0xff] %v708
    %718 = vst [vmem:[#allocation2 + $0x60] sm:$0xff] %v709
    %719 = vst [vmem:[#allocation2 + $0x68] sm:$0xff] %v710
    %720 = vst.msk [vmem:[#allocation2 + $0x70] sm:$0xff] %vm651, %v706
    %v721 = vld [vmem:[#allocation3] sm:$0xff]
    %v722 = vld [vmem:[#allocation3 + $0x8] sm:$0xff]
    %v723 = vld [vmem:[#allocation3 + $0x10] sm:$0xff]
    %v724 = vld [vmem:[#allocation3 + $0x18] sm:$0xff]
    %v725 = vld [vmem:[#allocation3 + $0x20] sm:$0xff]
    %731 = vrot.lane.b32.xlu0 %v721, 125
    %v732 = vpop.permute.xlu0 %731
    %733 = vrot.lane.b32.xlu0 %v722, 125
    %v734 = vpop.permute.xlu0 %733
    %735 = vrot.lane.b32.xlu0 %v723, 125
    %v736 = vpop.permute.xlu0 %735
    %737 = vrot.lane.b32.xlu0 %v724, 125
    %v738 = vpop.permute.xlu0 %737
    %739 = vrot.lane.b32.xlu0 %v725, 125
    %v740 = vpop.permute.xlu0 %739
    %v741 = vsel %vm71, %v732, %v734
    %v742 = vsel %vm71, %v734, %v736
    %v743 = vsel %vm71, %v736, %v738
    %v744 = vsel %vm71, %v738, %v740
    %750 = vst [vmem:[#allocation2 + $0x78] sm:$0xff] %v741
    %751 = vst [vmem:[#allocation2 + $0x80] sm:$0xff] %v742
    %752 = vst [vmem:[#allocation2 + $0x88] sm:$0xff] %v743
    %753 = vst [vmem:[#allocation2 + $0x90] sm:$0xff] %v744
    %754 = vst.msk [vmem:[#allocation2 + $0x98] sm:$0xff] %vm651, %v740
    %v755 = vld [vmem:[#allocation3] sm:$0xff]
    %v756 = vld [vmem:[#allocation3 + $0x8] sm:$0xff]
    %v757 = vld [vmem:[#allocation3 + $0x10] sm:$0xff]
    %v758 = vld [vmem:[#allocation3 + $0x18] sm:$0xff]
    %v759 = vld [vmem:[#allocation3 + $0x20] sm:$0xff]
    %765 = vrot.lane.b32.xlu0 %v755, 124
    %v766 = vpop.permute.xlu0 %765
    %767 = vrot.lane.b32.xlu0 %v756, 124
    %v768 = vpop.permute.xlu0 %767
    %769 = vrot.lane.b32.xlu0 %v757, 124
    %v770 = vpop.permute.xlu0 %769
    %771 = vrot.lane.b32.xlu0 %v758, 124
    %v772 = vpop.permute.xlu0 %771
    %773 = vrot.lane.b32.xlu0 %v759, 124
    %v774 = vpop.permute.xlu0 %773
    %v775 = vsel %vm82, %v766, %v768
    %v776 = vsel %vm82, %v768, %v770
    %v777 = vsel %vm82, %v770, %v772
    %v778 = vsel %vm82, %v772, %v774
    %784 = vst [vmem:[#allocation2 + $0xa0] sm:$0xff] %v775
    %785 = vst [vmem:[#allocation2 + $0xa8] sm:$0xff] %v776
    %786 = vst [vmem:[#allocation2 + $0xb0] sm:$0xff] %v777
    %787 = vst [vmem:[#allocation2 + $0xb8] sm:$0xff] %v778
    %788 = vst.msk [vmem:[#allocation2 + $0xc0] sm:$0xff] %vm651, %v774
    %v789 = vld [vmem:[#allocation3] sm:$0xff]
    %v790 = vld [vmem:[#allocation3 + $0x8] sm:$0xff]
    %v791 = vld [vmem:[#allocation3 + $0x10] sm:$0xff]
    %v792 = vld [vmem:[#allocation3 + $0x18] sm:$0xff]
    %v793 = vld [vmem:[#allocation3 + $0x20] sm:$0xff]
    %799 = vrot.lane.b32.xlu0 %v789, 110
    %v800 = vpop.permute.xlu0 %799
    %801 = vrot.lane.b32.xlu0 %v790, 110
    %v802 = vpop.permute.xlu0 %801
    %803 = vrot.lane.b32.xlu0 %v791, 110
    %v804 = vpop.permute.xlu0 %803
    %805 = vrot.lane.b32.xlu0 %v792, 110
    %v806 = vpop.permute.xlu0 %805
    %807 = vrot.lane.b32.xlu0 %v793, 110
    %v808 = vpop.permute.xlu0 %807
    %v809 = vsel %vm93, %v800, %v802
    %v810 = vsel %vm93, %v802, %v804
    %v811 = vsel %vm93, %v804, %v806
    %v812 = vsel %vm93, %v806, %v808
    %818 = vst [vmem:[#allocation2 + $0xc8] sm:$0xff] %v809
    %819 = vst [vmem:[#allocation2 + $0xd0] sm:$0xff] %v810
    %820 = vst [vmem:[#allocation2 + $0xd8] sm:$0xff] %v811
    %821 = vst [vmem:[#allocation2 + $0xe0] sm:$0xff] %v812
    %822 = vst.msk [vmem:[#allocation2 + $0xe8] sm:$0xff] %vm651, %v808
    %v823 = vld [vmem:[#allocation3] sm:$0xff]
    %v824 = vld [vmem:[#allocation3 + $0x8] sm:$0xff]
    %v825 = vld [vmem:[#allocation3 + $0x10] sm:$0xff]
    %v826 = vld [vmem:[#allocation3 + $0x18] sm:$0xff]
    %v827 = vld [vmem:[#allocation3 + $0x20] sm:$0xff]
    %833 = vrot.lane.b32.xlu0 %v823, 109
    %v834 = vpop.permute.xlu0 %833
    %835 = vrot.lane.b32.xlu0 %v824, 109
    %v836 = vpop.permute.xlu0 %835
    %837 = vrot.lane.b32.xlu0 %v825, 109
    %v838 = vpop.permute.xlu0 %837
    %839 = vrot.lane.b32.xlu0 %v826, 109
    %v840 = vpop.permute.xlu0 %839
    %841 = vrot.lane.b32.xlu0 %v827, 109
    %v842 = vpop.permute.xlu0 %841
    %v843 = vsel %vm104, %v834, %v836
    %v844 = vsel %vm104, %v836, %v838
    %v845 = vsel %vm104, %v838, %v840
    %v846 = vsel %vm104, %v840, %v842
    %852 = vst [vmem:[#allocation2 + $0xf0] sm:$0xff] %v843
    %853 = vst [vmem:[#allocation2 + $0xf8] sm:$0xff] %v844
    %854 = vst [vmem:[#allocation2 + $0x100] sm:$0xff] %v845
    %855 = vst [vmem:[#allocation2 + $0x108] sm:$0xff] %v846
    %856 = vst.msk [vmem:[#allocation2 + $0x110] sm:$0xff] %vm651, %v842
    %v857 = vld [vmem:[#allocation3] sm:$0xff]
    %v858 = vld [vmem:[#allocation3 + $0x8] sm:$0xff]
    %v859 = vld [vmem:[#allocation3 + $0x10] sm:$0xff]
    %v860 = vld [vmem:[#allocation3 + $0x18] sm:$0xff]
    %v861 = vld [vmem:[#allocation3 + $0x20] sm:$0xff]
    %867 = vrot.lane.b32.xlu0 %v857, 108
    %v868 = vpop.permute.xlu0 %867
    %869 = vrot.lane.b32.xlu0 %v858, 108
    %v870 = vpop.permute.xlu0 %869
    %871 = vrot.lane.b32.xlu0 %v859, 108
    %v872 = vpop.permute.xlu0 %871
    %873 = vrot.lane.b32.xlu0 %v860, 108
    %v874 = vpop.permute.xlu0 %873
    %875 = vrot.lane.b32.xlu0 %v861, 108
    %v876 = vpop.permute.xlu0 %875
    %v877 = vsel %vm115, %v868, %v870
    %v878 = vsel %vm115, %v870, %v872
    %v879 = vsel %vm115, %v872, %v874
    %v880 = vsel %vm115, %v874, %v876
    %886 = vst [vmem:[#allocation2 + $0x118] sm:$0xff] %v877
    %887 = vst [vmem:[#allocation2 + $0x120] sm:$0xff] %v878
    %888 = vst [vmem:[#allocation2 + $0x128] sm:$0xff] %v879
    %889 = vst [vmem:[#allocation2 + $0x130] sm:$0xff] %v880
    %890 = vst.msk [vmem:[#allocation2 + $0x138] sm:$0xff] %vm651, %v876
    %v891 = vld [vmem:[#allocation3] sm:$0xff]
    %v892 = vld [vmem:[#allocation3 + $0x8] sm:$0xff]
    %v893 = vld [vmem:[#allocation3 + $0x10] sm:$0xff]
    %v894 = vld [vmem:[#allocation3 + $0x18] sm:$0xff]
    %v895 = vld [vmem:[#allocation3 + $0x20] sm:$0xff]
    %901 = vrot.lane.b32.xlu0 %v891, 107
    %v902 = vpop.permute.xlu0 %901
    %903 = vrot.lane.b32.xlu0 %v892, 107
    %v904 = vpop.permute.xlu0 %903
    %905 = vrot.lane.b32.xlu0 %v893, 107
    %v906 = vpop.permute.xlu0 %905
    %907 = vrot.lane.b32.xlu0 %v894, 107
    %v908 = vpop.permute.xlu0 %907
    %909 = vrot.lane.b32.xlu0 %v895, 107
    %v910 = vpop.permute.xlu0 %909
    %v911 = vsel %vm126, %v902, %v904
    %v912 = vsel %vm126, %v904, %v906
    %v913 = vsel %vm126, %v906, %v908
    %v914 = vsel %vm126, %v908, %v910
    %920 = vst [vmem:[#allocation2 + $0x140] sm:$0xff] %v911
    %921 = vst [vmem:[#allocation2 + $0x148] sm:$0xff] %v912
    %922 = vst [vmem:[#allocation2 + $0x150] sm:$0xff] %v913
    %923 = vst [vmem:[#allocation2 + $0x158] sm:$0xff] %v914
    %924 = vst.msk [vmem:[#allocation2 + $0x160] sm:$0xff] %vm651, %v910
    %v925 = vld [vmem:[#allocation3] sm:$0xff]
    %v926 = vld [vmem:[#allocation3 + $0x8] sm:$0xff]
    %v927 = vld [vmem:[#allocation3 + $0x10] sm:$0xff]
    %v928 = vld [vmem:[#allocation3 + $0x18] sm:$0xff]
    %v929 = vld [vmem:[#allocation3 + $0x20] sm:$0xff]
    %935 = vrot.lane.b32.xlu0 %v925, 106
    %v936 = vpop.permute.xlu0 %935
    %937 = vrot.lane.b32.xlu0 %v926, 106
    %v938 = vpop.permute.xlu0 %937
    %939 = vrot.lane.b32.xlu0 %v927, 106
    %v940 = vpop.permute.xlu0 %939
    %941 = vrot.lane.b32.xlu0 %v928, 106
    %v942 = vpop.permute.xlu0 %941
    %943 = vrot.lane.b32.xlu0 %v929, 106
    %v944 = vpop.permute.xlu0 %943
    %v945 = vsel %vm137, %v936, %v938
    %v946 = vsel %vm137, %v938, %v940
    %v947 = vsel %vm137, %v940, %v942
    %v948 = vsel %vm137, %v942, %v944
    %954 = vst [vmem:[#allocation2 + $0x168] sm:$0xff] %v945
    %955 = vst [vmem:[#allocation2 + $0x170] sm:$0xff] %v946
    %956 = vst [vmem:[#allocation2 + $0x178] sm:$0xff] %v947
    %957 = vst [vmem:[#allocation2 + $0x180] sm:$0xff] %v948
    %958 = vst.msk [vmem:[#allocation2 + $0x188] sm:$0xff] %vm651, %v944
    %v959 = vld [vmem:[#allocation3] sm:$0xff]
    %v960 = vld [vmem:[#allocation3 + $0x8] sm:$0xff]
    %v961 = vld [vmem:[#allocation3 + $0x10] sm:$0xff]
    %v962 = vld [vmem:[#allocation3 + $0x18] sm:$0xff]
    %v963 = vld [vmem:[#allocation3 + $0x20] sm:$0xff]
    %969 = vrot.lane.b32.xlu0 %v959, 92
    %v970 = vpop.permute.xlu0 %969
    %971 = vrot.lane.b32.xlu0 %v960, 92
    %v972 = vpop.permute.xlu0 %971
    %973 = vrot.lane.b32.xlu0 %v961, 92
    %v974 = vpop.permute.xlu0 %973
    %975 = vrot.lane.b32.xlu0 %v962, 92
    %v976 = vpop.permute.xlu0 %975
    %977 = vrot.lane.b32.xlu0 %v963, 92
    %v978 = vpop.permute.xlu0 %977
    %v979 = vsel %vm148, %v970, %v972
    %v980 = vsel %vm148, %v972, %v974
    %v981 = vsel %vm148, %v974, %v976
    %v982 = vsel %vm148, %v976, %v978
    %988 = vst [vmem:[#allocation2 + $0x190] sm:$0xff] %v979
    %989 = vst [vmem:[#allocation2 + $0x198] sm:$0xff] %v980
    %990 = vst [vmem:[#allocation2 + $0x1a0] sm:$0xff] %v981
    %991 = vst [vmem:[#allocation2 + $0x1a8] sm:$0xff] %v982
    %992 = vst.msk [vmem:[#allocation2 + $0x1b0] sm:$0xff] %vm651, %v978
    %v993 = vld [vmem:[#allocation3] sm:$0xff]
    %v994 = vld [vmem:[#allocation3 + $0x8] sm:$0xff]
    %v995 = vld [vmem:[#allocation3 + $0x10] sm:$0xff]
    %v996 = vld [vmem:[#allocation3 + $0x18] sm:$0xff]
    %v997 = vld [vmem:[#allocation3 + $0x20] sm:$0xff]
    %1003 = vrot.lane.b32.xlu0 %v993, 91
    %v1004 = vpop.permute.xlu0 %1003
    %1005 = vrot.lane.b32.xlu0 %v994, 91
    %v1006 = vpop.permute.xlu0 %1005
    %1007 = vrot.lane.b32.xlu0 %v995, 91
    %v1008 = vpop.permute.xlu0 %1007
    %1009 = vrot.lane.b32.xlu0 %v996, 91
    %v1010 = vpop.permute.xlu0 %1009
    %1011 = vrot.lane.b32.xlu0 %v997, 91
    %v1012 = vpop.permute.xlu0 %1011
    %v1013 = vsel %vm159, %v1004, %v1006
    %v1014 = vsel %vm159, %v1006, %v1008
    %v1015 = vsel %vm159, %v1008, %v1010
    %v1016 = vsel %vm159, %v1010, %v1012
    %1022 = vst [vmem:[#allocation2 + $0x1b8] sm:$0xff] %v1013
    %1023 = vst [vmem:[#allocation2 + $0x1c0] sm:$0xff] %v1014
    %1024 = vst [vmem:[#allocation2 + $0x1c8] sm:$0xff] %v1015
    %1025 = vst [vmem:[#allocation2 + $0x1d0] sm:$0xff] %v1016
    %1026 = vst.msk [vmem:[#allocation2 + $0x1d8] sm:$0xff] %vm651, %v1012
    %v1027 = vld [vmem:[#allocation3] sm:$0xff]
    %v1028 = vld [vmem:[#allocation3 + $0x8] sm:$0xff]
    %v1029 = vld [vmem:[#allocation3 + $0x10] sm:$0xff]
    %v1030 = vld [vmem:[#allocation3 + $0x18] sm:$0xff]
    %v1031 = vld [vmem:[#allocation3 + $0x20] sm:$0xff]
    %1037 = vrot.lane.b32.xlu0 %v1027, 90
    %v1038 = vpop.permute.xlu0 %1037
    %1039 = vrot.lane.b32.xlu0 %v1028, 90
    %v1040 = vpop.permute.xlu0 %1039
    %1041 = vrot.lane.b32.xlu0 %v1029, 90
    %v1042 = vpop.permute.xlu0 %1041
    %1043 = vrot.lane.b32.xlu0 %v1030, 90
    %v1044 = vpop.permute.xlu0 %1043
    %1045 = vrot.lane.b32.xlu0 %v1031, 90
    %v1046 = vpop.permute.xlu0 %1045
    %v1047 = vsel %vm170, %v1038, %v1040
    %v1048 = vsel %vm170, %v1040, %v1042
    %v1049 = vsel %vm170, %v1042, %v1044
    %v1050 = vsel %vm170, %v1044, %v1046
    %1056 = vst [vmem:[#allocation2 + $0x1e0] sm:$0xff] %v1047
    %1057 = vst [vmem:[#allocation2 + $0x1e8] sm:$0xff] %v1048
    %1058 = vst [vmem:[#allocation2 + $0x1f0] sm:$0xff] %v1049
    %1059 = vst [vmem:[#allocation2 + $0x1f8] sm:$0xff] %v1050
    %1060 = vst.msk [vmem:[#allocation2 + $0x200] sm:$0xff] %vm651, %v1046
    %v1061 = vld [vmem:[#allocation3] sm:$0xff]
    %v1062 = vld [vmem:[#allocation3 + $0x8] sm:$0xff]
    %v1063 = vld [vmem:[#allocation3 + $0x10] sm:$0xff]
    %v1064 = vld [vmem:[#allocation3 + $0x18] sm:$0xff]
    %v1065 = vld [vmem:[#allocation3 + $0x20] sm:$0xff]
    %1071 = vrot.lane.b32.xlu0 %v1061, 89
    %v1072 = vpop.permute.xlu0 %1071
    %1073 = vrot.lane.b32.xlu0 %v1062, 89
    %v1074 = vpop.permute.xlu0 %1073
    %1075 = vrot.lane.b32.xlu0 %v1063, 89
    %v1076 = vpop.permute.xlu0 %1075
    %1077 = vrot.lane.b32.xlu0 %v1064, 89
    %v1078 = vpop.permute.xlu0 %1077
    %1079 = vrot.lane.b32.xlu0 %v1065, 89
    %v1080 = vpop.permute.xlu0 %1079
    %v1081 = vsel %vm181, %v1072, %v1074
    %v1082 = vsel %vm181, %v1074, %v1076
    %v1083 = vsel %vm181, %v1076, %v1078
    %v1084 = vsel %vm181, %v1078, %v1080
    %1090 = vst [vmem:[#allocation2 + $0x208] sm:$0xff] %v1081
    %1091 = vst [vmem:[#allocation2 + $0x210] sm:$0xff] %v1082
    %1092 = vst [vmem:[#allocation2 + $0x218] sm:$0xff] %v1083
    %1093 = vst [vmem:[#allocation2 + $0x220] sm:$0xff] %v1084
    %1094 = vst.msk [vmem:[#allocation2 + $0x228] sm:$0xff] %vm651, %v1080
    %v1095 = vld [vmem:[#allocation3] sm:$0xff]
    %v1096 = vld [vmem:[#allocation3 + $0x8] sm:$0xff]
    %v1097 = vld [vmem:[#allocation3 + $0x10] sm:$0xff]
    %v1098 = vld [vmem:[#allocation3 + $0x18] sm:$0xff]
    %v1099 = vld [vmem:[#allocation3 + $0x20] sm:$0xff]
    %1105 = vrot.lane.b32.xlu0 %v1095, 88
    %v1106 = vpop.permute.xlu0 %1105
    %1107 = vrot.lane.b32.xlu0 %v1096, 88
    %v1108 = vpop.permute.xlu0 %1107
    %1109 = vrot.lane.b32.xlu0 %v1097, 88
    %v1110 = vpop.permute.xlu0 %1109
    %1111 = vrot.lane.b32.xlu0 %v1098, 88
    %v1112 = vpop.permute.xlu0 %1111
    %1113 = vrot.lane.b32.xlu0 %v1099, 88
    %v1114 = vpop.permute.xlu0 %1113
    %v1115 = vsel %vm192, %v1106, %v1108
    %v1116 = vsel %vm192, %v1108, %v1110
    %v1117 = vsel %vm192, %v1110, %v1112
    %v1118 = vsel %vm192, %v1112, %v1114
    %1124 = vst [vmem:[#allocation2 + $0x230] sm:$0xff] %v1115
    %1125 = vst [vmem:[#allocation2 + $0x238] sm:$0xff] %v1116
    %1126 = vst [vmem:[#allocation2 + $0x240] sm:$0xff] %v1117
    %1127 = vst [vmem:[#allocation2 + $0x248] sm:$0xff] %v1118
    %1128 = vst.msk [vmem:[#allocation2 + $0x250] sm:$0xff] %vm651, %v1114
    %v1129 = vld [vmem:[#allocation3] sm:$0xff]
    %v1130 = vld [vmem:[#allocation3 + $0x8] sm:$0xff]
    %v1131 = vld [vmem:[#allocation3 + $0x10] sm:$0xff]
    %v1132 = vld [vmem:[#allocation3 + $0x18] sm:$0xff]
    %v1133 = vld [vmem:[#allocation3 + $0x20] sm:$0xff]
    %1139 = vrot.lane.b32.xlu0 %v1129, 74
    %v1140 = vpop.permute.xlu0 %1139
    %1141 = vrot.lane.b32.xlu0 %v1130, 74
    %v1142 = vpop.permute.xlu0 %1141
    %1143 = vrot.lane.b32.xlu0 %v1131, 74
    %v1144 = vpop.permute.xlu0 %1143
    %1145 = vrot.lane.b32.xlu0 %v1132, 74
    %v1146 = vpop.permute.xlu0 %1145
    %1147 = vrot.lane.b32.xlu0 %v1133, 74
    %v1148 = vpop.permute.xlu0 %1147
    %v1149 = vsel %vm203, %v1140, %v1142
    %v1150 = vsel %vm203, %v1142, %v1144
    %v1151 = vsel %vm203, %v1144, %v1146
    %v1152 = vsel %vm203, %v1146, %v1148
    %1158 = vst [vmem:[#allocation2 + $0x258] sm:$0xff] %v1149
    %1159 = vst [vmem:[#allocation2 + $0x260] sm:$0xff] %v1150
    %1160 = vst [vmem:[#allocation2 + $0x268] sm:$0xff] %v1151
    %1161 = vst [vmem:[#allocation2 + $0x270] sm:$0xff] %v1152
    %1162 = vst.msk [vmem:[#allocation2 + $0x278] sm:$0xff] %vm651, %v1148
    %v1163 = vld [vmem:[#allocation3] sm:$0xff]
    %v1164 = vld [vmem:[#allocation3 + $0x8] sm:$0xff]
    %v1165 = vld [vmem:[#allocation3 + $0x10] sm:$0xff]
    %v1166 = vld [vmem:[#allocation3 + $0x18] sm:$0xff]
    %v1167 = vld [vmem:[#allocation3 + $0x20] sm:$0xff]
    %1173 = vrot.lane.b32.xlu0 %v1163, 73
    %v1174 = vpop.permute.xlu0 %1173
    %1175 = vrot.lane.b32.xlu0 %v1164, 73
    %v1176 = vpop.permute.xlu0 %1175
    %1177 = vrot.lane.b32.xlu0 %v1165, 73
    %v1178 = vpop.permute.xlu0 %1177
    %1179 = vrot.lane.b32.xlu0 %v1166, 73
    %v1180 = vpop.permute.xlu0 %1179
    %1181 = vrot.lane.b32.xlu0 %v1167, 73
    %v1182 = vpop.permute.xlu0 %1181
    %v1183 = vsel %vm214, %v1174, %v1176
    %v1184 = vsel %vm214, %v1176, %v1178
    %v1185 = vsel %vm214, %v1178, %v1180
    %v1186 = vsel %vm214, %v1180, %v1182
    %1192 = vst [vmem:[#allocation2 + $0x280] sm:$0xff] %v1183
    %1193 = vst [vmem:[#allocation2 + $0x288] sm:$0xff] %v1184
    %1194 = vst [vmem:[#allocation2 + $0x290] sm:$0xff] %v1185
    %1195 = vst [vmem:[#allocation2 + $0x298] sm:$0xff] %v1186
    %1196 = vst.msk [vmem:[#allocation2 + $0x2a0] sm:$0xff] %vm651, %v1182
    %v1197 = vld [vmem:[#allocation3] sm:$0xff]
    %v1198 = vld [vmem:[#allocation3 + $0x8] sm:$0xff]
    %v1199 = vld [vmem:[#allocation3 + $0x10] sm:$0xff]
    %v1200 = vld [vmem:[#allocation3 + $0x18] sm:$0xff]
    %v1201 = vld [vmem:[#allocation3 + $0x20] sm:$0xff]
    %1207 = vrot.lane.b32.xlu0 %v1197, 72
    %v1208 = vpop.permute.xlu0 %1207
    %1209 = vrot.lane.b32.xlu0 %v1198, 72
    %v1210 = vpop.permute.xlu0 %1209
    %1211 = vrot.lane.b32.xlu0 %v1199, 72
    %v1212 = vpop.permute.xlu0 %1211
    %1213 = vrot.lane.b32.xlu0 %v1200, 72
    %v1214 = vpop.permute.xlu0 %1213
    %1215 = vrot.lane.b32.xlu0 %v1201, 72
    %v1216 = vpop.permute.xlu0 %1215
    %v1217 = vsel %vm225, %v1208, %v1210
    %v1218 = vsel %vm225, %v1210, %v1212
    %v1219 = vsel %vm225, %v1212, %v1214
    %v1220 = vsel %vm225, %v1214, %v1216
    %1226 = vst [vmem:[#allocation2 + $0x2a8] sm:$0xff] %v1217
    %1227 = vst [vmem:[#allocation2 + $0x2b0] sm:$0xff] %v1218
    %1228 = vst [vmem:[#allocation2 + $0x2b8] sm:$0xff] %v1219
    %1229 = vst [vmem:[#allocation2 + $0x2c0] sm:$0xff] %v1220
    %1230 = vst.msk [vmem:[#allocation2 + $0x2c8] sm:$0xff] %vm651, %v1216
    %v1231 = vld [vmem:[#allocation3] sm:$0xff]
    %v1232 = vld [vmem:[#allocation3 + $0x8] sm:$0xff]
    %v1233 = vld [vmem:[#allocation3 + $0x10] sm:$0xff]
    %v1234 = vld [vmem:[#allocation3 + $0x18] sm:$0xff]
    %v1235 = vld [vmem:[#allocation3 + $0x20] sm:$0xff]
    %1241 = vrot.lane.b32.xlu0 %v1231, 71
    %v1242 = vpop.permute.xlu0 %1241
    %1243 = vrot.lane.b32.xlu0 %v1232, 71
    %v1244 = vpop.permute.xlu0 %1243
    %1245 = vrot.lane.b32.xlu0 %v1233, 71
    %v1246 = vpop.permute.xlu0 %1245
    %1247 = vrot.lane.b32.xlu0 %v1234, 71
    %v1248 = vpop.permute.xlu0 %1247
    %1249 = vrot.lane.b32.xlu0 %v1235, 71
    %v1250 = vpop.permute.xlu0 %1249
    %v1251 = vsel %vm236, %v1242, %v1244
    %v1252 = vsel %vm236, %v1244, %v1246
    %v1253 = vsel %vm236, %v1246, %v1248
    %v1254 = vsel %vm236, %v1248, %v1250
    %1260 = vst [vmem:[#allocation2 + $0x2d0] sm:$0xff] %v1251
    %1261 = vst [vmem:[#allocation2 + $0x2d8] sm:$0xff] %v1252
    %1262 = vst [vmem:[#allocation2 + $0x2e0] sm:$0xff] %v1253
    %1263 = vst [vmem:[#allocation2 + $0x2e8] sm:$0xff] %v1254
    %1264 = vst.msk [vmem:[#allocation2 + $0x2f0] sm:$0xff] %vm651, %v1250
    %v1265 = vld [vmem:[#allocation3] sm:$0xff]
    %v1266 = vld [vmem:[#allocation3 + $0x8] sm:$0xff]
    %v1267 = vld [vmem:[#allocation3 + $0x10] sm:$0xff]
    %v1268 = vld [vmem:[#allocation3 + $0x18] sm:$0xff]
    %v1269 = vld [vmem:[#allocation3 + $0x20] sm:$0xff]
    %1275 = vrot.lane.b32.xlu0 %v1265, 70
    %v1276 = vpop.permute.xlu0 %1275
    %1277 = vrot.lane.b32.xlu0 %v1266, 70
    %v1278 = vpop.permute.xlu0 %1277
    %1279 = vrot.lane.b32.xlu0 %v1267, 70
    %v1280 = vpop.permute.xlu0 %1279
    %1281 = vrot.lane.b32.xlu0 %v1268, 70
    %v1282 = vpop.permute.xlu0 %1281
    %1283 = vrot.lane.b32.xlu0 %v1269, 70
    %v1284 = vpop.permute.xlu0 %1283
    %v1285 = vsel %vm247, %v1276, %v1278
    %v1286 = vsel %vm247, %v1278, %v1280
    %v1287 = vsel %vm247, %v1280, %v1282
    %v1288 = vsel %vm247, %v1282, %v1284
    %1294 = vst [vmem:[#allocation2 + $0x2f8] sm:$0xff] %v1285
    %1295 = vst [vmem:[#allocation2 + $0x300] sm:$0xff] %v1286
    %1296 = vst [vmem:[#allocation2 + $0x308] sm:$0xff] %v1287
    %1297 = vst [vmem:[#allocation2 + $0x310] sm:$0xff] %v1288
    %1298 = vst.msk [vmem:[#allocation2 + $0x318] sm:$0xff] %vm651, %v1284
    %v1299 = vld [vmem:[#allocation3] sm:$0xff]
    %v1300 = vld [vmem:[#allocation3 + $0x8] sm:$0xff]
    %v1301 = vld [vmem:[#allocation3 + $0x10] sm:$0xff]
    %v1302 = vld [vmem:[#allocation3 + $0x18] sm:$0xff]
    %v1303 = vld [vmem:[#allocation3 + $0x20] sm:$0xff]
    %v1304 = vld [vmem:[#allocation3 + $0x28] sm:$0xff]
    %1311 = vrot.lane.b32.xlu0 %v1299, 56
    %v1312 = vpop.permute.xlu0 %1311
    %1313 = vrot.lane.b32.xlu0 %v1300, 56
    %v1314 = vpop.permute.xlu0 %1313
    %1315 = vrot.lane.b32.xlu0 %v1301, 56
    %v1316 = vpop.permute.xlu0 %1315
    %1317 = vrot.lane.b32.xlu0 %v1302, 56
    %v1318 = vpop.permute.xlu0 %1317
    %1319 = vrot.lane.b32.xlu0 %v1303, 56
    %v1320 = vpop.permute.xlu0 %1319
    %1321 = vrot.lane.b32.xlu0 %v1304, 56
    %v1322 = vpop.permute.xlu0 %1321
    %v1323 = vsel %vm258, %v1312, %v1314
    %v1324 = vsel %vm258, %v1314, %v1316
    %v1325 = vsel %vm258, %v1316, %v1318
    %v1326 = vsel %vm258, %v1318, %v1320
    %v1327 = vsel %vm258, %v1320, %v1322
    %1333 = vst [vmem:[#allocation2 + $0x320] sm:$0xff] %v1323
    %1334 = vst [vmem:[#allocation2 + $0x328] sm:$0xff] %v1324
    %1335 = vst [vmem:[#allocation2 + $0x330] sm:$0xff] %v1325
    %1336 = vst [vmem:[#allocation2 + $0x338] sm:$0xff] %v1326
    %1337 = vst.msk [vmem:[#allocation2 + $0x340] sm:$0xff] %vm651, %v1327
    %v1338 = vld [vmem:[#allocation3] sm:$0xff]
    %v1339 = vld [vmem:[#allocation3 + $0x8] sm:$0xff]
    %v1340 = vld [vmem:[#allocation3 + $0x10] sm:$0xff]
    %v1341 = vld [vmem:[#allocation3 + $0x18] sm:$0xff]
    %v1342 = vld [vmem:[#allocation3 + $0x20] sm:$0xff]
    %v1343 = vld [vmem:[#allocation3 + $0x28] sm:$0xff]
    %1350 = vrot.lane.b32.xlu0 %v1338, 55
    %v1351 = vpop.permute.xlu0 %1350
    %1352 = vrot.lane.b32.xlu0 %v1339, 55
    %v1353 = vpop.permute.xlu0 %1352
    %1354 = vrot.lane.b32.xlu0 %v1340, 55
    %v1355 = vpop.permute.xlu0 %1354
    %1356 = vrot.lane.b32.xlu0 %v1341, 55
    %v1357 = vpop.permute.xlu0 %1356
    %1358 = vrot.lane.b32.xlu0 %v1342, 55
    %v1359 = vpop.permute.xlu0 %1358
    %1360 = vrot.lane.b32.xlu0 %v1343, 55
    %v1361 = vpop.permute.xlu0 %1360
    %v1362 = vsel %vm269, %v1351, %v1353
    %v1363 = vsel %vm269, %v1353, %v1355
    %v1364 = vsel %vm269, %v1355, %v1357
    %v1365 = vsel %vm269, %v1357, %v1359
    %v1366 = vsel %vm269, %v1359, %v1361
    %1372 = vst [vmem:[#allocation2 + $0x348] sm:$0xff] %v1362
    %1373 = vst [vmem:[#allocation2 + $0x350] sm:$0xff] %v1363
    %1374 = vst [vmem:[#allocation2 + $0x358] sm:$0xff] %v1364
    %1375 = vst [vmem:[#allocation2 + $0x360] sm:$0xff] %v1365
    %1376 = vst.msk [vmem:[#allocation2 + $0x368] sm:$0xff] %vm651, %v1366
    %v1377 = vld [vmem:[#allocation3] sm:$0xff]
    %v1378 = vld [vmem:[#allocation3 + $0x8] sm:$0xff]
    %v1379 = vld [vmem:[#allocation3 + $0x10] sm:$0xff]
    %v1380 = vld [vmem:[#allocation3 + $0x18] sm:$0xff]
    %v1381 = vld [vmem:[#allocation3 + $0x20] sm:$0xff]
    %v1382 = vld [vmem:[#allocation3 + $0x28] sm:$0xff]
    %1389 = vrot.lane.b32.xlu0 %v1377, 54
    %v1390 = vpop.permute.xlu0 %1389
    %1391 = vrot.lane.b32.xlu0 %v1378, 54
    %v1392 = vpop.permute.xlu0 %1391
    %1393 = vrot.lane.b32.xlu0 %v1379, 54
    %v1394 = vpop.permute.xlu0 %1393
    %1395 = vrot.lane.b32.xlu0 %v1380, 54
    %v1396 = vpop.permute.xlu0 %1395
    %1397 = vrot.lane.b32.xlu0 %v1381, 54
    %v1398 = vpop.permute.xlu0 %1397
    %1399 = vrot.lane.b32.xlu0 %v1382, 54
    %v1400 = vpop.permute.xlu0 %1399
    %v1401 = vsel %vm280, %v1390, %v1392
    %v1402 = vsel %vm280, %v1392, %v1394
    %v1403 = vsel %vm280, %v1394, %v1396
    %v1404 = vsel %vm280, %v1396, %v1398
    %v1405 = vsel %vm280, %v1398, %v1400
    %1411 = vst [vmem:[#allocation2 + $0x370] sm:$0xff] %v1401
    %1412 = vst [vmem:[#allocation2 + $0x378] sm:$0xff] %v1402
    %1413 = vst [vmem:[#allocation2 + $0x380] sm:$0xff] %v1403
    %1414 = vst [vmem:[#allocation2 + $0x388] sm:$0xff] %v1404
    %1415 = vst.msk [vmem:[#allocation2 + $0x390] sm:$0xff] %vm651, %v1405
    %v1416 = vld [vmem:[#allocation3] sm:$0xff]
    %v1417 = vld [vmem:[#allocation3 + $0x8] sm:$0xff]
    %v1418 = vld [vmem:[#allocation3 + $0x10] sm:$0xff]
    %v1419 = vld [vmem:[#allocation3 + $0x18] sm:$0xff]
    %v1420 = vld [vmem:[#allocation3 + $0x20] sm:$0xff]
    %v1421 = vld [vmem:[#allocation3 + $0x28] sm:$0xff]
    %1428 = vrot.lane.b32.xlu0 %v1416, 53
    %v1429 = vpop.permute.xlu0 %1428
    %1430 = vrot.lane.b32.xlu0 %v1417, 53
    %v1431 = vpop.permute.xlu0 %1430
    %1432 = vrot.lane.b32.xlu0 %v1418, 53
    %v1433 = vpop.permute.xlu0 %1432
    %1434 = vrot.lane.b32.xlu0 %v1419, 53
    %v1435 = vpop.permute.xlu0 %1434
    %1436 = vrot.lane.b32.xlu0 %v1420, 53
    %v1437 = vpop.permute.xlu0 %1436
    %1438 = vrot.lane.b32.xlu0 %v1421, 53
    %v1439 = vpop.permute.xlu0 %1438
    %v1440 = vsel %vm291, %v1429, %v1431
    %v1441 = vsel %vm291, %v1431, %v1433
    %v1442 = vsel %vm291, %v1433, %v1435
    %v1443 = vsel %vm291, %v1435, %v1437
    %v1444 = vsel %vm291, %v1437, %v1439
    %1450 = vst [vmem:[#allocation2 + $0x398] sm:$0xff] %v1440
    %1451 = vst [vmem:[#allocation2 + $0x3a0] sm:$0xff] %v1441
    %1452 = vst [vmem:[#allocation2 + $0x3a8] sm:$0xff] %v1442
    %1453 = vst [vmem:[#allocation2 + $0x3b0] sm:$0xff] %v1443
    %1454 = vst.msk [vmem:[#allocation2 + $0x3b8] sm:$0xff] %vm651, %v1444
    %v1455 = vld [vmem:[#allocation3] sm:$0xff]
    %v1456 = vld [vmem:[#allocation3 + $0x8] sm:$0xff]
    %v1457 = vld [vmem:[#allocation3 + $0x10] sm:$0xff]
    %v1458 = vld [vmem:[#allocation3 + $0x18] sm:$0xff]
    %v1459 = vld [vmem:[#allocation3 + $0x20] sm:$0xff]
    %v1460 = vld [vmem:[#allocation3 + $0x28] sm:$0xff]
    %1467 = vrot.lane.b32.xlu0 %v1455, 52
    %v1468 = vpop.permute.xlu0 %1467
    %1469 = vrot.lane.b32.xlu0 %v1456, 52
    %v1470 = vpop.permute.xlu0 %1469
    %1471 = vrot.lane.b32.xlu0 %v1457, 52
    %v1472 = vpop.permute.xlu0 %1471
    %1473 = vrot.lane.b32.xlu0 %v1458, 52
    %v1474 = vpop.permute.xlu0 %1473
    %1475 = vrot.lane.b32.xlu0 %v1459, 52
    %v1476 = vpop.permute.xlu0 %1475
    %1477 = vrot.lane.b32.xlu0 %v1460, 52
    %v1478 = vpop.permute.xlu0 %1477
    %v1479 = vsel %vm302, %v1468, %v1470
    %v1480 = vsel %vm302, %v1470, %v1472
    %v1481 = vsel %vm302, %v1472, %v1474
    %v1482 = vsel %vm302, %v1474, %v1476
    %v1483 = vsel %vm302, %v1476, %v1478
    %1489 = vst [vmem:[#allocation2 + $0x3c0] sm:$0xff] %v1479
    %1490 = vst [vmem:[#allocation2 + $0x3c8] sm:$0xff] %v1480
    %1491 = vst [vmem:[#allocation2 + $0x3d0] sm:$0xff] %v1481
    %1492 = vst [vmem:[#allocation2 + $0x3d8] sm:$0xff] %v1482
    %1493 = vst.msk [vmem:[#allocation2 + $0x3e0] sm:$0xff] %vm651, %v1483
    %v1494 = vld [vmem:[%s3] sm:$0xff]
    %v1495 = vld [vmem:[%s3 + $0x8] sm:$0xff]
    %v1496 = vld [vmem:[#allocation2] sm:$0xff]
    %v1497 = vld [vmem:[#allocation2 + $0x8] sm:$0xff]
    %v1498 = vld [vmem:[#allocation2 + $0x10] sm:$0xff]
    %v1499 = vld [vmem:[#allocation2 + $0x18] sm:$0xff]
    %v1500 = vld [vmem:[#allocation2 + $0x20] sm:$0xff]
    %v1501 = vld [vmem:[#allocation2 + $0x28] sm:$0xff]
    %v1502 = vld [vmem:[#allocation2 + $0x30] sm:$0xff]
    %v1503 = vld [vmem:[#allocation2 + $0x38] sm:$0xff]
    %v1504 = vld [vmem:[#allocation2 + $0x40] sm:$0xff]
    %v1505 = vld [vmem:[#allocation2 + $0x48] sm:$0xff]
    %v1506 = vld [vmem:[#allocation2 + $0x50] sm:$0xff]
    %v1507 = vld [vmem:[#allocation2 + $0x58] sm:$0xff]
    %v1508 = vld [vmem:[#allocation2 + $0x60] sm:$0xff]
    %v1509 = vld [vmem:[#allocation2 + $0x68] sm:$0xff]
    %v1510 = vld [vmem:[#allocation2 + $0x70] sm:$0xff]
    %v1511 = vld [vmem:[#allocation2 + $0x78] sm:$0xff]
    %v1512 = vld [vmem:[#allocation2 + $0x80] sm:$0xff]
    %v1513 = vld [vmem:[#allocation2 + $0x88] sm:$0xff]
    %v1514 = vld [vmem:[#allocation2 + $0x90] sm:$0xff]
    %v1515 = vld [vmem:[#allocation2 + $0x98] sm:$0xff]
    %v1516 = vld [vmem:[#allocation2 + $0xa0] sm:$0xff]
    %v1517 = vld [vmem:[#allocation2 + $0xa8] sm:$0xff]
    %v1518 = vld [vmem:[#allocation2 + $0xb0] sm:$0xff]
    %v1519 = vld [vmem:[#allocation2 + $0xb8] sm:$0xff]
    %v1520 = vld [vmem:[#allocation2 + $0xc0] sm:$0xff]
    %v1521 = vld [vmem:[#allocation2 + $0xc8] sm:$0xff]
    %v1522 = vld [vmem:[#allocation2 + $0xd0] sm:$0xff]
    %v1523 = vld [vmem:[#allocation2 + $0xd8] sm:$0xff]
    %v1524 = vld [vmem:[#allocation2 + $0xe0] sm:$0xff]
    %v1525 = vld [vmem:[#allocation2 + $0xe8] sm:$0xff]
    %v1526 = vld [vmem:[#allocation2 + $0xf0] sm:$0xff]
    %v1527 = vld [vmem:[#allocation2 + $0xf8] sm:$0xff]
    %v1528 = vld [vmem:[#allocation2 + $0x100] sm:$0xff]
    %v1529 = vld [vmem:[#allocation2 + $0x108] sm:$0xff]
    %v1530 = vld [vmem:[#allocation2 + $0x110] sm:$0xff]
    %v1531 = vld [vmem:[#allocation2 + $0x118] sm:$0xff]
    %v1532 = vld [vmem:[#allocation2 + $0x120] sm:$0xff]
    %v1533 = vld [vmem:[#allocation2 + $0x128] sm:$0xff]
    %v1534 = vld [vmem:[#allocation2 + $0x130] sm:$0xff]
    %v1535 = vld [vmem:[#allocation2 + $0x138] sm:$0xff]
    %v1536 = vld [vmem:[#allocation2 + $0x140] sm:$0xff]
    %v1537 = vld [vmem:[#allocation2 + $0x148] sm:$0xff]
    %v1538 = vld [vmem:[#allocation2 + $0x150] sm:$0xff]
    %v1539 = vld [vmem:[#allocation2 + $0x158] sm:$0xff]
    %v1540 = vld [vmem:[#allocation2 + $0x160] sm:$0xff]
    %v1541 = vld [vmem:[#allocation2 + $0x168] sm:$0xff]
    %v1542 = vld [vmem:[#allocation2 + $0x170] sm:$0xff]
    %v1543 = vld [vmem:[#allocation2 + $0x178] sm:$0xff]
    %v1544 = vld [vmem:[#allocation2 + $0x180] sm:$0xff]
    %v1545 = vld [vmem:[#allocation2 + $0x188] sm:$0xff]
    %v1546 = vld [vmem:[#allocation2 + $0x190] sm:$0xff]
    %v1547 = vld [vmem:[#allocation2 + $0x198] sm:$0xff]
    %v1548 = vld [vmem:[#allocation2 + $0x1a0] sm:$0xff]
    %v1549 = vld [vmem:[#allocation2 + $0x1a8] sm:$0xff]
    %v1550 = vld [vmem:[#allocation2 + $0x1b0] sm:$0xff]
    %v1551 = vld [vmem:[#allocation2 + $0x1b8] sm:$0xff]
    %v1552 = vld [vmem:[#allocation2 + $0x1c0] sm:$0xff]
    %v1553 = vld [vmem:[#allocation2 + $0x1c8] sm:$0xff]
    %v1554 = vld [vmem:[#allocation2 + $0x1d0] sm:$0xff]
    %v1555 = vld [vmem:[#allocation2 + $0x1d8] sm:$0xff]
    %v1556 = vld [vmem:[#allocation2 + $0x1e0] sm:$0xff]
    %v1557 = vld [vmem:[#allocation2 + $0x1e8] sm:$0xff]
    %v1558 = vld [vmem:[#allocation2 + $0x1f0] sm:$0xff]
    %v1559 = vld [vmem:[#allocation2 + $0x1f8] sm:$0xff]
    %v1560 = vld [vmem:[#allocation2 + $0x200] sm:$0xff]
    %v1561 = vld [vmem:[#allocation2 + $0x208] sm:$0xff]
    %v1562 = vld [vmem:[#allocation2 + $0x210] sm:$0xff]
    %v1563 = vld [vmem:[#allocation2 + $0x218] sm:$0xff]
    %v1564 = vld [vmem:[#allocation2 + $0x220] sm:$0xff]
    %v1565 = vld [vmem:[#allocation2 + $0x228] sm:$0xff]
    %v1566 = vld [vmem:[#allocation2 + $0x230] sm:$0xff]
    %v1567 = vld [vmem:[#allocation2 + $0x238] sm:$0xff]
    %v1568 = vld [vmem:[#allocation2 + $0x240] sm:$0xff]
    %v1569 = vld [vmem:[#allocation2 + $0x248] sm:$0xff]
    %v1570 = vld [vmem:[#allocation2 + $0x250] sm:$0xff]
    %v1571 = vld [vmem:[#allocation2 + $0x258] sm:$0xff]
    %v1572 = vld [vmem:[#allocation2 + $0x260] sm:$0xff]
    %v1573 = vld [vmem:[#allocation2 + $0x268] sm:$0xff]
    %v1574 = vld [vmem:[#allocation2 + $0x270] sm:$0xff]
    %v1575 = vld [vmem:[#allocation2 + $0x278] sm:$0xff]
    %v1576 = vld [vmem:[#allocation2 + $0x280] sm:$0xff]
    %v1577 = vld [vmem:[#allocation2 + $0x288] sm:$0xff]
    %v1578 = vld [vmem:[#allocation2 + $0x290] sm:$0xff]
    %v1579 = vld [vmem:[#allocation2 + $0x298] sm:$0xff]
    %v1580 = vld [vmem:[#allocation2 + $0x2a0] sm:$0xff]
    %v1581 = vld [vmem:[#allocation2 + $0x2a8] sm:$0xff]
    %v1582 = vld [vmem:[#allocation2 + $0x2b0] sm:$0xff]
    %v1583 = vld [vmem:[#allocation2 + $0x2b8] sm:$0xff]
    %v1584 = vld [vmem:[#allocation2 + $0x2c0] sm:$0xff]
    %v1585 = vld [vmem:[#allocation2 + $0x2c8] sm:$0xff]
    %v1586 = vld [vmem:[#allocation2 + $0x2d0] sm:$0xff]
    %v1587 = vld [vmem:[#allocation2 + $0x2d8] sm:$0xff]
    %v1588 = vld [vmem:[#allocation2 + $0x2e0] sm:$0xff]
    %v1589 = vld [vmem:[#allocation2 + $0x2e8] sm:$0xff]
    %v1590 = vld [vmem:[#allocation2 + $0x2f0] sm:$0xff]
    %v1591 = vld [vmem:[#allocation2 + $0x2f8] sm:$0xff]
    %v1592 = vld [vmem:[#allocation2 + $0x300] sm:$0xff]
    %v1593 = vld [vmem:[#allocation2 + $0x308] sm:$0xff]
    %v1594 = vld [vmem:[#allocation2 + $0x310] sm:$0xff]
    %v1595 = vld [vmem:[#allocation2 + $0x318] sm:$0xff]
    %v1596 = vld [vmem:[#allocation2 + $0x320] sm:$0xff]
    %v1597 = vld [vmem:[#allocation2 + $0x328] sm:$0xff]
    %v1598 = vld [vmem:[#allocation2 + $0x330] sm:$0xff]
    %v1599 = vld [vmem:[#allocation2 + $0x338] sm:$0xff]
    %v1600 = vld [vmem:[#allocation2 + $0x340] sm:$0xff]
    %v1601 = vld [vmem:[#allocation2 + $0x348] sm:$0xff]
    %v1602 = vld [vmem:[#allocation2 + $0x350] sm:$0xff]
    %v1603 = vld [vmem:[#allocation2 + $0x358] sm:$0xff]
    %v1604 = vld [vmem:[#allocation2 + $0x360] sm:$0xff]
    %v1605 = vld [vmem:[#allocation2 + $0x368] sm:$0xff]
    %v1606 = vld [vmem:[#allocation2 + $0x370] sm:$0xff]
    %v1607 = vld [vmem:[#allocation2 + $0x378] sm:$0xff]
    %v1608 = vld [vmem:[#allocation2 + $0x380] sm:$0xff]
    %v1609 = vld [vmem:[#allocation2 + $0x388] sm:$0xff]
    %v1610 = vld [vmem:[#allocation2 + $0x390] sm:$0xff]
    %v1611 = vld [vmem:[#allocation2 + $0x398] sm:$0xff]
    %v1612 = vld [vmem:[#allocation2 + $0x3a0] sm:$0xff]
    %v1613 = vld [vmem:[#allocation2 + $0x3a8] sm:$0xff]
    %v1614 = vld [vmem:[#allocation2 + $0x3b0] sm:$0xff]
    %v1615 = vld [vmem:[#allocation2 + $0x3b8] sm:$0xff]
    %v1616 = vld [vmem:[#allocation2 + $0x3c0] sm:$0xff]
    %v1617 = vld [vmem:[#allocation2 + $0x3c8] sm:$0xff]
    %v1618 = vld [vmem:[#allocation2 + $0x3d0] sm:$0xff]
    %v1619 = vld [vmem:[#allocation2 + $0x3d8] sm:$0xff]
    %v1620 = vld [vmem:[#allocation2 + $0x3e0] sm:$0xff]
    %v1621 = vld [vmem:[%s4] sm:$0xff]
    %1623 = vset.pattern.permute.xlu0 0
    %1624 = vperm.xlu0 %1623, %v1621
    %v1625 = vpop.permute.xlu0 %1624
    %v1628 = vsel %vm225, %v1495, 0
    %1630 = vmatprep.subr.mxu0 %v1497
    %1631 = vmatpush1.msra.mxu0 %v1496
    %1632 = vmatprep.subr.mxu0 %v1502
    %1633 = vmatpush1.msra.mxu0 %v1501
    %1634 = vmatprep.subr.mxu0 %v1507
    %1635 = vmatpush1.msra.mxu0 %v1506
    %1636 = vmatprep.subr.mxu0 %v1512
    %1637 = vmatpush1.msra.mxu0 %v1511
    %1638 = vmatprep.subr.mxu0 %v1517
    %1639 = vmatpush1.msra.mxu0 %v1516
    %1640 = vmatprep.subr.mxu0 %v1522
    %1641 = vmatpush1.msra.mxu0 %v1521
    %1642 = vmatprep.subr.mxu0 %v1527
    %1643 = vmatpush1.msra.mxu0 %v1526
    %1644 = vmatprep.subr.mxu0 %v1532
    %1645 = vmatpush1.msra.mxu0 %v1531
    %1646 = vmatprep.subr.mxu0 %v1537
    %1647 = vmatpush1.msra.mxu0 %v1536
    %1648 = vmatprep.subr.mxu0 %v1542
    %1649 = vmatpush1.msra.mxu0 %v1541
    %1650 = vmatprep.subr.mxu0 %v1547
    %1651 = vmatpush1.msra.mxu0 %v1546
    %1652 = vmatprep.subr.mxu0 %v1552
    %1653 = vmatpush1.msra.mxu0 %v1551
    %1654 = vmatprep.subr.mxu0 %v1557
    %1655 = vmatpush1.msra.mxu0 %v1556
    %1656 = vmatprep.subr.mxu0 %v1562
    %1657 = vmatpush1.msra.mxu0 %v1561
    %1658 = vmatprep.subr.mxu0 %v1567
    %1659 = vmatpush1.msra.mxu0 %v1566
    %1660 = vmatprep.subr.mxu0 %v1572
    %1661 = vmatpush1.msra.mxu0 %v1571
    %1662 = vmatprep.subr.mxu0 %v1577
    %1663 = vmatpush1.msra.mxu0 %v1576
    %1664 = vmatprep.subr.mxu0 %v1582
    %1665 = vmatpush1.msra.mxu0 %v1581
    %1666 = vmatprep.subr.mxu0 %v1587
    %1667 = vmatpush1.msra.mxu0 %v1586
    %1668 = vmatprep.subr.mxu0 %v1592
    %1669 = vmatpush1.msra.mxu0 %v1591
    %1670 = vmatprep.subr.mxu0 %v1597
    %1671 = vmatpush1.msra.mxu0 %v1596
    %1672 = vmatprep.subr.mxu0 %v1602
    %1673 = vmatpush1.msra.mxu0 %v1601
    %1674 = vmatprep.subr.mxu0 %v1607
    %1675 = vmatpush1.msra.mxu0 %v1606
    %1676 = vmatprep.subr.mxu0 %v1612
    %1677 = vmatpush1.msra.mxu0 %v1611
    %1678 = vmatprep.subr.mxu0 %v1617
    %1679 = vmatpush1.msra.mxu0 %v1616
    %1680 = vmatprep.subr.mxu0 0.0
    %1681 = vmatpush1.msra.mxu0 0.0
    %1682 = vmatprep.subr.mxu0 0.0
    %1683 = vmatpush1.msra.mxu0 0.0
    %1684 = vmatprep.subr.mxu0 0.0
    %1685 = vmatpush1.msra.mxu0 0.0
    %1686 = vmatprep.subr.mxu0 0.0
    %1687 = vmatpush1.msra.mxu0 0.0
    %1688 = vmatprep.subr.mxu0 0.0
    %1689 = vmatpush1.msra.mxu0 0.0
    %1690 = vmatprep.subr.mxu0 0.0
    %1691 = vmatpush1.msra.mxu0 0.0
    %1692 = vmatprep.subr.mxu0 0.0
    %1693 = vmatpush1.msra.mxu0 0.0
    %1694 = vmatprep.mubr.f32.mxu0 %v1628
    %1695 = vmatmul.mubr.f32.gmra.mrb[0].mxu0 %v1494
    %v1696 = vpop.f32.mrb[0].mxu0
    %v1697 = vadd.f32 %v1625, %v1696
    %v1698 = vpop.f32.mrb[0].mxu0
    %v1699 = vadd.f32 %v1625, %v1698
    %1700 = vdwg.mxu0
    %1701 = vmatprep.subr.mxu0 %v1499
    %1702 = vmatpush1.msra.mxu0 %v1498
    %1703 = vmatprep.subr.mxu0 %v1504
    %1704 = vmatpush1.msra.mxu0 %v1503
    %1705 = vmatprep.subr.mxu0 %v1509
    %1706 = vmatpush1.msra.mxu0 %v1508
    %1707 = vmatprep.subr.mxu0 %v1514
    %1708 = vmatpush1.msra.mxu0 %v1513
    %1709 = vmatprep.subr.mxu0 %v1519
    %1710 = vmatpush1.msra.mxu0 %v1518
    %1711 = vmatprep.subr.mxu0 %v1524
    %1712 = vmatpush1.msra.mxu0 %v1523
    %1713 = vmatprep.subr.mxu0 %v1529
    %1714 = vmatpush1.msra.mxu0 %v1528
    %1715 = vmatprep.subr.mxu0 %v1534
    %1716 = vmatpush1.msra.mxu0 %v1533
    %1717 = vmatprep.subr.mxu0 %v1539
    %1718 = vmatpush1.msra.mxu0 %v1538
    %1719 = vmatprep.subr.mxu0 %v1544
    %1720 = vmatpush1.msra.mxu0 %v1543
    %1721 = vmatprep.subr.mxu0 %v1549
    %1722 = vmatpush1.msra.mxu0 %v1548
    %1723 = vmatprep.subr.mxu0 %v1554
    %1724 = vmatpush1.msra.mxu0 %v1553
    %1725 = vmatprep.subr.mxu0 %v1559
    %1726 = vmatpush1.msra.mxu0 %v1558
    %1727 = vmatprep.subr.mxu0 %v1564
    %1728 = vmatpush1.msra.mxu0 %v1563
    %1729 = vmatprep.subr.mxu0 %v1569
    %1730 = vmatpush1.msra.mxu0 %v1568
    %1731 = vmatprep.subr.mxu0 %v1574
    %1732 = vmatpush1.msra.mxu0 %v1573
    %1733 = vmatprep.subr.mxu0 %v1579
    %1734 = vmatpush1.msra.mxu0 %v1578
    %1735 = vmatprep.subr.mxu0 %v1584
    %1736 = vmatpush1.msra.mxu0 %v1583
    %1737 = vmatprep.subr.mxu0 %v1589
    %1738 = vmatpush1.msra.mxu0 %v1588
    %1739 = vmatprep.subr.mxu0 %v1594
    %1740 = vmatpush1.msra.mxu0 %v1593
    %1741 = vmatprep.subr.mxu0 %v1599
    %1742 = vmatpush1.msra.mxu0 %v1598
    %1743 = vmatprep.subr.mxu0 %v1604
    %1744 = vmatpush1.msra.mxu0 %v1603
    %1745 = vmatprep.subr.mxu0 %v1609
    %1746 = vmatpush1.msra.mxu0 %v1608
    %1747 = vmatprep.subr.mxu0 %v1614
    %1748 = vmatpush1.msra.mxu0 %v1613
    %1749 = vmatprep.subr.mxu0 %v1619
    %1750 = vmatpush1.msra.mxu0 %v1618
    %1751 = vmatprep.subr.mxu0 0.0
    %1752 = vmatpush1.msra.mxu0 0.0
    %1753 = vmatprep.subr.mxu0 0.0
    %1754 = vmatpush1.msra.mxu0 0.0
    %1755 = vmatprep.subr.mxu0 0.0
    %1756 = vmatpush1.msra.mxu0 0.0
    %1757 = vmatprep.subr.mxu0 0.0
    %1758 = vmatpush1.msra.mxu0 0.0
    %1759 = vmatprep.subr.mxu0 0.0
    %1760 = vmatpush1.msra.mxu0 0.0
    %1761 = vmatprep.subr.mxu0 0.0
    %1762 = vmatpush1.msra.mxu0 0.0
    %1763 = vmatprep.subr.mxu0 0.0
    %1764 = vmatpush1.msra.mxu0 0.0
    %1765 = vmatprep.mubr.f32.mxu0 %v1628
    %1766 = vmatmul.mubr.f32.gmra.mrb[0].mxu0 %v1494
    %v1767 = vpop.f32.mrb[0].mxu0
    %v1768 = vadd.f32 %v1625, %v1767
    %v1769 = vpop.f32.mrb[0].mxu0
    %v1770 = vadd.f32 %v1625, %v1769
    %1771 = vdwg.mxu0
    %1772 = vmatprep.subr.mxu0 0.0
    %1773 = vmatpush1.msra.mxu0 %v1500
    %1774 = vmatprep.subr.mxu0 0.0
    %1775 = vmatpush1.msra.mxu0 %v1505
    %1776 = vmatprep.subr.mxu0 0.0
    %1777 = vmatpush1.msra.mxu0 %v1510
    %1778 = vmatprep.subr.mxu0 0.0
    %1779 = vmatpush1.msra.mxu0 %v1515
    %1780 = vmatprep.subr.mxu0 0.0
    %1781 = vmatpush1.msra.mxu0 %v1520
    %1782 = vmatprep.subr.mxu0 0.0
    %1783 = vmatpush1.msra.mxu0 %v1525
    %1784 = vmatprep.subr.mxu0 0.0
    %1785 = vmatpush1.msra.mxu0 %v1530
    %1786 = vmatprep.subr.mxu0 0.0
    %1787 = vmatpush1.msra.mxu0 %v1535
    %1788 = vmatprep.subr.mxu0 0.0
    %1789 = vmatpush1.msra.mxu0 %v1540
    %1790 = vmatprep.subr.mxu0 0.0
    %1791 = vmatpush1.msra.mxu0 %v1545
    %1792 = vmatprep.subr.mxu0 0.0
    %1793 = vmatpush1.msra.mxu0 %v1550
    %1794 = vmatprep.subr.mxu0 0.0
    %1795 = vmatpush1.msra.mxu0 %v1555
    %1796 = vmatprep.subr.mxu0 0.0
    %1797 = vmatpush1.msra.mxu0 %v1560
    %1798 = vmatprep.subr.mxu0 0.0
    %1799 = vmatpush1.msra.mxu0 %v1565
    %1800 = vmatprep.subr.mxu0 0.0
    %1801 = vmatpush1.msra.mxu0 %v1570
    %1802 = vmatprep.subr.mxu0 0.0
    %1803 = vmatpush1.msra.mxu0 %v1575
    %1804 = vmatprep.subr.mxu0 0.0
    %1805 = vmatpush1.msra.mxu0 %v1580
    %1806 = vmatprep.subr.mxu0 0.0
    %1807 = vmatpush1.msra.mxu0 %v1585
    %1808 = vmatprep.subr.mxu0 0.0
    %1809 = vmatpush1.msra.mxu0 %v1590
    %1810 = vmatprep.subr.mxu0 0.0
    %1811 = vmatpush1.msra.mxu0 %v1595
    %1812 = vmatprep.subr.mxu0 0.0
    %1813 = vmatpush1.msra.mxu0 %v1600
    %1814 = vmatprep.subr.mxu0 0.0
    %1815 = vmatpush1.msra.mxu0 %v1605
    %1816 = vmatprep.subr.mxu0 0.0
    %1817 = vmatpush1.msra.mxu0 %v1610
    %1818 = vmatprep.subr.mxu0 0.0
    %1819 = vmatpush1.msra.mxu0 %v1615
    %1820 = vmatprep.subr.mxu0 0.0
    %1821 = vmatpush1.msra.mxu0 %v1620
    %1822 = vmatprep.subr.mxu0 0.0
    %1823 = vmatpush1.msra.mxu0 0.0
    %1824 = vmatprep.subr.mxu0 0.0
    %1825 = vmatpush1.msra.mxu0 0.0
    %1826 = vmatprep.subr.mxu0 0.0
    %1827 = vmatpush1.msra.mxu0 0.0
    %1828 = vmatprep.subr.mxu0 0.0
    %1829 = vmatpush1.msra.mxu0 0.0
    %1830 = vmatprep.subr.mxu0 0.0
    %1831 = vmatpush1.msra.mxu0 0.0
    %1832 = vmatprep.subr.mxu0 0.0
    %1833 = vmatpush1.msra.mxu0 0.0
    %1834 = vmatprep.subr.mxu0 0.0
    %1835 = vmatpush1.msra.mxu0 0.0
    %1836 = vmatprep.mubr.f32.mxu0 %v1628
    %1837 = vmatmul.mubr.f32.gmra.mrb[0].mxu0 %v1494
    %v1838 = vpop.f32.mrb[0].mxu0
    %v1839 = vadd.f32 %v1625, %v1838
    %v1840 = vpop.f32.mrb[0].mxu0
    %1841 = vdwg.mxu0
    %v1842 = vmax.f32 %v1697, 0.0
    %v1843 = vmax.f32 %v1699, 0.0
    %v1844 = vmax.f32 %v1768, 0.0
    %v1845 = vmax.f32 %v1770, 0.0
    %v1846 = vmax.f32 %v1839, 0.0
    %v1848 = vlaneseq
    %v1849 = vshrl.u32 %v1848, 7
    %v1850 = vsub.s32 0, %v1849
    %v1851 = vrot.slane %v641, %v1850
    %v1852 = vlaneseq
    %v1853 = vshrl.u32 %v1852, 7
    %v1854 = vsub.s32 1, %v1853
    %v1855 = vrot.slane %v641, %v1854
    %v1856 = vlaneseq
    %v1857 = vshrl.u32 %v1856, 7
    %v1858 = vsub.s32 2, %v1857
    %v1859 = vrot.slane %v641, %v1858
    %v1860 = vlaneseq
    %v1861 = vshrl.u32 %v1860, 7
    %v1862 = vsub.s32 3, %v1861
    %v1863 = vrot.slane %v641, %v1862
    %v1864 = vlaneseq
    %v1865 = vshrl.u32 %v1864, 7
    %v1866 = vsub.s32 4, %v1865
    %v1867 = vrot.slane %v641, %v1866
    %v1873 = vmul.f32 %v1842, %v1851
    %v1874 = vmul.f32 %v1843, %v1855
    %v1875 = vmul.f32 %v1844, %v1859
    %v1876 = vmul.f32 %v1845, %v1863
    %v1877 = vmul.f32 %v1846, %v1867
    %1878 = vst.msk [vmem:[#allocation4] sm:$0xff] %vm603, 0.0
    %1879 = vst.msk [vmem:[#allocation4 + $0x20] sm:$0xff] %vm605, 0.0
    %1880 = vst.msk [vmem:[#allocation4 + $0x28] sm:$0xff] %vm607, 0.0
    %1886 = vrot.lane.b32.xlu0 %v1873, 19
    %v1887 = vpop.permute.xlu0 %1886
    %1888 = vrot.lane.b32.xlu0 %v1874, 19
    %v1889 = vpop.permute.xlu0 %1888
    %1890 = vrot.lane.b32.xlu0 %v1875, 19
    %v1891 = vpop.permute.xlu0 %1890
    %1892 = vrot.lane.b32.xlu0 %v1876, 19
    %v1893 = vpop.permute.xlu0 %1892
    %1894 = vrot.lane.b32.xlu0 %v1877, 19
    %v1895 = vpop.permute.xlu0 %1894
    %v1896 = vsel %vm603, %v1887, %v1889
    %v1897 = vsel %vm603, %v1889, %v1891
    %v1898 = vsel %vm603, %v1891, %v1893
    %v1899 = vsel %vm603, %v1893, %v1895
    %1905 = vst.msk [vmem:[#allocation4] sm:$0xff] %vm633, %v1887
    %1906 = vst [vmem:[#allocation4 + $0x8] sm:$0xff] %v1896
    %1907 = vst [vmem:[#allocation4 + $0x10] sm:$0xff] %v1897
    %1908 = vst [vmem:[#allocation4 + $0x18] sm:$0xff] %v1898
    %1909 = vst.msk [vmem:[#allocation4 + $0x20] sm:$0xff] %vm638, %v1899
    %s1910 = scalar_lea.vmem %s9, 2
    %v1911 = vld [vmem:[%s1910] ss:$4 sm:$0x1f]
    %v1912 = vld [vmem:[#allocation4] sm:$0xff]
    %v1913 = vld [vmem:[#allocation4 + $0x8] sm:$0xff]
    %v1914 = vld [vmem:[#allocation4 + $0x10] sm:$0xff]
    %v1915 = vld [vmem:[#allocation4 + $0x18] sm:$0xff]
    %v1916 = vld [vmem:[#allocation4 + $0x20] sm:$0xff]
    %1917 = vst [vmem:[#allocation2] sm:$0xff] %v1912
    %1918 = vst [vmem:[#allocation2 + $0x8] sm:$0xff] %v1913
    %1919 = vst [vmem:[#allocation2 + $0x10] sm:$0xff] %v1914
    %1920 = vst [vmem:[#allocation2 + $0x18] sm:$0xff] %v1915
    %1921 = vst.msk [vmem:[#allocation2 + $0x20] sm:$0xff] %vm651, %v1916
    %v1922 = vld [vmem:[#allocation4] sm:$0xff]
    %v1923 = vld [vmem:[#allocation4 + $0x8] sm:$0xff]
    %v1924 = vld [vmem:[#allocation4 + $0x10] sm:$0xff]
    %v1925 = vld [vmem:[#allocation4 + $0x18] sm:$0xff]
    %v1926 = vld [vmem:[#allocation4 + $0x20] sm:$0xff]
    %1932 = vrot.lane.b32.xlu0 %v1922, 127
    %v1933 = vpop.permute.xlu0 %1932
    %1934 = vrot.lane.b32.xlu0 %v1923, 127
    %v1935 = vpop.permute.xlu0 %1934
    %1936 = vrot.lane.b32.xlu0 %v1924, 127
    %v1937 = vpop.permute.xlu0 %1936
    %1938 = vrot.lane.b32.xlu0 %v1925, 127
    %v1939 = vpop.permute.xlu0 %1938
    %1940 = vrot.lane.b32.xlu0 %v1926, 127
    %v1941 = vpop.permute.xlu0 %1940
    %v1942 = vsel %vm49, %v1933, %v1935
    %v1943 = vsel %vm49, %v1935, %v1937
    %v1944 = vsel %vm49, %v1937, %v1939
    %v1945 = vsel %vm49, %v1939, %v1941
    %1951 = vst [vmem:[#allocation2 + $0x28] sm:$0xff] %v1942
    %1952 = vst [vmem:[#allocation2 + $0x30] sm:$0xff] %v1943
    %1953 = vst [vmem:[#allocation2 + $0x38] sm:$0xff] %v1944
    %1954 = vst [vmem:[#allocation2 + $0x40] sm:$0xff] %v1945
    %1955 = vst.msk [vmem:[#allocation2 + $0x48] sm:$0xff] %vm651, %v1941
    %v1956 = vld [vmem:[#allocation4] sm:$0xff]
    %v1957 = vld [vmem:[#allocation4 + $0x8] sm:$0xff]
    %v1958 = vld [vmem:[#allocation4 + $0x10] sm:$0xff]
    %v1959 = vld [vmem:[#allocation4 + $0x18] sm:$0xff]
    %v1960 = vld [vmem:[#allocation4 + $0x20] sm:$0xff]
    %1966 = vrot.lane.b32.xlu0 %v1956, 126
    %v1967 = vpop.permute.xlu0 %1966
    %1968 = vrot.lane.b32.xlu0 %v1957, 126
    %v1969 = vpop.permute.xlu0 %1968
    %1970 = vrot.lane.b32.xlu0 %v1958, 126
    %v1971 = vpop.permute.xlu0 %1970
    %1972 = vrot.lane.b32.xlu0 %v1959, 126
    %v1973 = vpop.permute.xlu0 %1972
    %1974 = vrot.lane.b32.xlu0 %v1960, 126
    %v1975 = vpop.permute.xlu0 %1974
    %v1976 = vsel %vm60, %v1967, %v1969
    %v1977 = vsel %vm60, %v1969, %v1971
    %v1978 = vsel %vm60, %v1971, %v1973
    %v1979 = vsel %vm60, %v1973, %v1975
    %1985 = vst [vmem:[#allocation2 + $0x50] sm:$0xff] %v1976
    %1986 = vst [vmem:[#allocation2 + $0x58] sm:$0xff] %v1977
    %1987 = vst [vmem:[#allocation2 + $0x60] sm:$0xff] %v1978
    %1988 = vst [vmem:[#allocation2 + $0x68] sm:$0xff] %v1979
    %1989 = vst.msk [vmem:[#allocation2 + $0x70] sm:$0xff] %vm651, %v1975
    %v1990 = vld [vmem:[#allocation4] sm:$0xff]
    %v1991 = vld [vmem:[#allocation4 + $0x8] sm:$0xff]
    %v1992 = vld [vmem:[#allocation4 + $0x10] sm:$0xff]
    %v1993 = vld [vmem:[#allocation4 + $0x18] sm:$0xff]
    %v1994 = vld [vmem:[#allocation4 + $0x20] sm:$0xff]
    %2000 = vrot.lane.b32.xlu0 %v1990, 125
    %v2001 = vpop.permute.xlu0 %2000
    %2002 = vrot.lane.b32.xlu0 %v1991, 125
    %v2003 = vpop.permute.xlu0 %2002
    %2004 = vrot.lane.b32.xlu0 %v1992, 125
    %v2005 = vpop.permute.xlu0 %2004
    %2006 = vrot.lane.b32.xlu0 %v1993, 125
    %v2007 = vpop.permute.xlu0 %2006
    %2008 = vrot.lane.b32.xlu0 %v1994, 125
    %v2009 = vpop.permute.xlu0 %2008
    %v2010 = vsel %vm71, %v2001, %v2003
    %v2011 = vsel %vm71, %v2003, %v2005
    %v2012 = vsel %vm71, %v2005, %v2007
    %v2013 = vsel %vm71, %v2007, %v2009
    %2019 = vst [vmem:[#allocation2 + $0x78] sm:$0xff] %v2010
    %2020 = vst [vmem:[#allocation2 + $0x80] sm:$0xff] %v2011
    %2021 = vst [vmem:[#allocation2 + $0x88] sm:$0xff] %v2012
    %2022 = vst [vmem:[#allocation2 + $0x90] sm:$0xff] %v2013
    %2023 = vst.msk [vmem:[#allocation2 + $0x98] sm:$0xff] %vm651, %v2009
    %v2024 = vld [vmem:[#allocation4] sm:$0xff]
    %v2025 = vld [vmem:[#allocation4 + $0x8] sm:$0xff]
    %v2026 = vld [vmem:[#allocation4 + $0x10] sm:$0xff]
    %v2027 = vld [vmem:[#allocation4 + $0x18] sm:$0xff]
    %v2028 = vld [vmem:[#allocation4 + $0x20] sm:$0xff]
    %2034 = vrot.lane.b32.xlu0 %v2024, 124
    %v2035 = vpop.permute.xlu0 %2034
    %2036 = vrot.lane.b32.xlu0 %v2025, 124
    %v2037 = vpop.permute.xlu0 %2036
    %2038 = vrot.lane.b32.xlu0 %v2026, 124
    %v2039 = vpop.permute.xlu0 %2038
    %2040 = vrot.lane.b32.xlu0 %v2027, 124
    %v2041 = vpop.permute.xlu0 %2040
    %2042 = vrot.lane.b32.xlu0 %v2028, 124
    %v2043 = vpop.permute.xlu0 %2042
    %v2044 = vsel %vm82, %v2035, %v2037
    %v2045 = vsel %vm82, %v2037, %v2039
    %v2046 = vsel %vm82, %v2039, %v2041
    %v2047 = vsel %vm82, %v2041, %v2043
    %2053 = vst [vmem:[#allocation2 + $0xa0] sm:$0xff] %v2044
    %2054 = vst [vmem:[#allocation2 + $0xa8] sm:$0xff] %v2045
    %2055 = vst [vmem:[#allocation2 + $0xb0] sm:$0xff] %v2046
    %2056 = vst [vmem:[#allocation2 + $0xb8] sm:$0xff] %v2047
    %2057 = vst.msk [vmem:[#allocation2 + $0xc0] sm:$0xff] %vm651, %v2043
    %v2058 = vld [vmem:[#allocation4] sm:$0xff]
    %v2059 = vld [vmem:[#allocation4 + $0x8] sm:$0xff]
    %v2060 = vld [vmem:[#allocation4 + $0x10] sm:$0xff]
    %v2061 = vld [vmem:[#allocation4 + $0x18] sm:$0xff]
    %v2062 = vld [vmem:[#allocation4 + $0x20] sm:$0xff]
    %2068 = vrot.lane.b32.xlu0 %v2058, 110
    %v2069 = vpop.permute.xlu0 %2068
    %2070 = vrot.lane.b32.xlu0 %v2059, 110
    %v2071 = vpop.permute.xlu0 %2070
    %2072 = vrot.lane.b32.xlu0 %v2060, 110
    %v2073 = vpop.permute.xlu0 %2072
    %2074 = vrot.lane.b32.xlu0 %v2061, 110
    %v2075 = vpop.permute.xlu0 %2074
    %2076 = vrot.lane.b32.xlu0 %v2062, 110
    %v2077 = vpop.permute.xlu0 %2076
    %v2078 = vsel %vm93, %v2069, %v2071
    %v2079 = vsel %vm93, %v2071, %v2073
    %v2080 = vsel %vm93, %v2073, %v2075
    %v2081 = vsel %vm93, %v2075, %v2077
    %2087 = vst [vmem:[#allocation2 + $0xc8] sm:$0xff] %v2078
    %2088 = vst [vmem:[#allocation2 + $0xd0] sm:$0xff] %v2079
    %2089 = vst [vmem:[#allocation2 + $0xd8] sm:$0xff] %v2080
    %2090 = vst [vmem:[#allocation2 + $0xe0] sm:$0xff] %v2081
    %2091 = vst.msk [vmem:[#allocation2 + $0xe8] sm:$0xff] %vm651, %v2077
    %v2092 = vld [vmem:[#allocation4] sm:$0xff]
    %v2093 = vld [vmem:[#allocation4 + $0x8] sm:$0xff]
    %v2094 = vld [vmem:[#allocation4 + $0x10] sm:$0xff]
    %v2095 = vld [vmem:[#allocation4 + $0x18] sm:$0xff]
    %v2096 = vld [vmem:[#allocation4 + $0x20] sm:$0xff]
    %2102 = vrot.lane.b32.xlu0 %v2092, 109
    %v2103 = vpop.permute.xlu0 %2102
    %2104 = vrot.lane.b32.xlu0 %v2093, 109
    %v2105 = vpop.permute.xlu0 %2104
    %2106 = vrot.lane.b32.xlu0 %v2094, 109
    %v2107 = vpop.permute.xlu0 %2106
    %2108 = vrot.lane.b32.xlu0 %v2095, 109
    %v2109 = vpop.permute.xlu0 %2108
    %2110 = vrot.lane.b32.xlu0 %v2096, 109
    %v2111 = vpop.permute.xlu0 %2110
    %v2112 = vsel %vm104, %v2103, %v2105
    %v2113 = vsel %vm104, %v2105, %v2107
    %v2114 = vsel %vm104, %v2107, %v2109
    %v2115 = vsel %vm104, %v2109, %v2111
    %2121 = vst [vmem:[#allocation2 + $0xf0] sm:$0xff] %v2112
    %2122 = vst [vmem:[#allocation2 + $0xf8] sm:$0xff] %v2113
    %2123 = vst [vmem:[#allocation2 + $0x100] sm:$0xff] %v2114
    %2124 = vst [vmem:[#allocation2 + $0x108] sm:$0xff] %v2115
    %2125 = vst.msk [vmem:[#allocation2 + $0x110] sm:$0xff] %vm651, %v2111
    %v2126 = vld [vmem:[#allocation4] sm:$0xff]
    %v2127 = vld [vmem:[#allocation4 + $0x8] sm:$0xff]
    %v2128 = vld [vmem:[#allocation4 + $0x10] sm:$0xff]
    %v2129 = vld [vmem:[#allocation4 + $0x18] sm:$0xff]
    %v2130 = vld [vmem:[#allocation4 + $0x20] sm:$0xff]
    %2136 = vrot.lane.b32.xlu0 %v2126, 108
    %v2137 = vpop.permute.xlu0 %2136
    %2138 = vrot.lane.b32.xlu0 %v2127, 108
    %v2139 = vpop.permute.xlu0 %2138
    %2140 = vrot.lane.b32.xlu0 %v2128, 108
    %v2141 = vpop.permute.xlu0 %2140
    %2142 = vrot.lane.b32.xlu0 %v2129, 108
    %v2143 = vpop.permute.xlu0 %2142
    %2144 = vrot.lane.b32.xlu0 %v2130, 108
    %v2145 = vpop.permute.xlu0 %2144
    %v2146 = vsel %vm115, %v2137, %v2139
    %v2147 = vsel %vm115, %v2139, %v2141
    %v2148 = vsel %vm115, %v2141, %v2143
    %v2149 = vsel %vm115, %v2143, %v2145
    %2155 = vst [vmem:[#allocation2 + $0x118] sm:$0xff] %v2146
    %2156 = vst [vmem:[#allocation2 + $0x120] sm:$0xff] %v2147
    %2157 = vst [vmem:[#allocation2 + $0x128] sm:$0xff] %v2148
    %2158 = vst [vmem:[#allocation2 + $0x130] sm:$0xff] %v2149
    %2159 = vst.msk [vmem:[#allocation2 + $0x138] sm:$0xff] %vm651, %v2145
    %v2160 = vld [vmem:[#allocation4] sm:$0xff]
    %v2161 = vld [vmem:[#allocation4 + $0x8] sm:$0xff]
    %v2162 = vld [vmem:[#allocation4 + $0x10] sm:$0xff]
    %v2163 = vld [vmem:[#allocation4 + $0x18] sm:$0xff]
    %v2164 = vld [vmem:[#allocation4 + $0x20] sm:$0xff]
    %2170 = vrot.lane.b32.xlu0 %v2160, 107
    %v2171 = vpop.permute.xlu0 %2170
    %2172 = vrot.lane.b32.xlu0 %v2161, 107
    %v2173 = vpop.permute.xlu0 %2172
    %2174 = vrot.lane.b32.xlu0 %v2162, 107
    %v2175 = vpop.permute.xlu0 %2174
    %2176 = vrot.lane.b32.xlu0 %v2163, 107
    %v2177 = vpop.permute.xlu0 %2176
    %2178 = vrot.lane.b32.xlu0 %v2164, 107
    %v2179 = vpop.permute.xlu0 %2178
    %v2180 = vsel %vm126, %v2171, %v2173
    %v2181 = vsel %vm126, %v2173, %v2175
    %v2182 = vsel %vm126, %v2175, %v2177
    %v2183 = vsel %vm126, %v2177, %v2179
    %2189 = vst [vmem:[#allocation2 + $0x140] sm:$0xff] %v2180
    %2190 = vst [vmem:[#allocation2 + $0x148] sm:$0xff] %v2181
    %2191 = vst [vmem:[#allocation2 + $0x150] sm:$0xff] %v2182
    %2192 = vst [vmem:[#allocation2 + $0x158] sm:$0xff] %v2183
    %2193 = vst.msk [vmem:[#allocation2 + $0x160] sm:$0xff] %vm651, %v2179
    %v2194 = vld [vmem:[#allocation4] sm:$0xff]
    %v2195 = vld [vmem:[#allocation4 + $0x8] sm:$0xff]
    %v2196 = vld [vmem:[#allocation4 + $0x10] sm:$0xff]
    %v2197 = vld [vmem:[#allocation4 + $0x18] sm:$0xff]
    %v2198 = vld [vmem:[#allocation4 + $0x20] sm:$0xff]
    %2204 = vrot.lane.b32.xlu0 %v2194, 106
    %v2205 = vpop.permute.xlu0 %2204
    %2206 = vrot.lane.b32.xlu0 %v2195, 106
    %v2207 = vpop.permute.xlu0 %2206
    %2208 = vrot.lane.b32.xlu0 %v2196, 106
    %v2209 = vpop.permute.xlu0 %2208
    %2210 = vrot.lane.b32.xlu0 %v2197, 106
    %v2211 = vpop.permute.xlu0 %2210
    %2212 = vrot.lane.b32.xlu0 %v2198, 106
    %v2213 = vpop.permute.xlu0 %2212
    %v2214 = vsel %vm137, %v2205, %v2207
    %v2215 = vsel %vm137, %v2207, %v2209
    %v2216 = vsel %vm137, %v2209, %v2211
    %v2217 = vsel %vm137, %v2211, %v2213
    %2223 = vst [vmem:[#allocation2 + $0x168] sm:$0xff] %v2214
    %2224 = vst [vmem:[#allocation2 + $0x170] sm:$0xff] %v2215
    %2225 = vst [vmem:[#allocation2 + $0x178] sm:$0xff] %v2216
    %2226 = vst [vmem:[#allocation2 + $0x180] sm:$0xff] %v2217
    %2227 = vst.msk [vmem:[#allocation2 + $0x188] sm:$0xff] %vm651, %v2213
    %v2228 = vld [vmem:[#allocation4] sm:$0xff]
    %v2229 = vld [vmem:[#allocation4 + $0x8] sm:$0xff]
    %v2230 = vld [vmem:[#allocation4 + $0x10] sm:$0xff]
    %v2231 = vld [vmem:[#allocation4 + $0x18] sm:$0xff]
    %v2232 = vld [vmem:[#allocation4 + $0x20] sm:$0xff]
    %2238 = vrot.lane.b32.xlu0 %v2228, 92
    %v2239 = vpop.permute.xlu0 %2238
    %2240 = vrot.lane.b32.xlu0 %v2229, 92
    %v2241 = vpop.permute.xlu0 %2240
    %2242 = vrot.lane.b32.xlu0 %v2230, 92
    %v2243 = vpop.permute.xlu0 %2242
    %2244 = vrot.lane.b32.xlu0 %v2231, 92
    %v2245 = vpop.permute.xlu0 %2244
    %2246 = vrot.lane.b32.xlu0 %v2232, 92
    %v2247 = vpop.permute.xlu0 %2246
    %v2248 = vsel %vm148, %v2239, %v2241
    %v2249 = vsel %vm148, %v2241, %v2243
    %v2250 = vsel %vm148, %v2243, %v2245
    %v2251 = vsel %vm148, %v2245, %v2247
    %2257 = vst [vmem:[#allocation2 + $0x190] sm:$0xff] %v2248
    %2258 = vst [vmem:[#allocation2 + $0x198] sm:$0xff] %v2249
    %2259 = vst [vmem:[#allocation2 + $0x1a0] sm:$0xff] %v2250
    %2260 = vst [vmem:[#allocation2 + $0x1a8] sm:$0xff] %v2251
    %2261 = vst.msk [vmem:[#allocation2 + $0x1b0] sm:$0xff] %vm651, %v2247
    %v2262 = vld [vmem:[#allocation4] sm:$0xff]
    %v2263 = vld [vmem:[#allocation4 + $0x8] sm:$0xff]
    %v2264 = vld [vmem:[#allocation4 + $0x10] sm:$0xff]
    %v2265 = vld [vmem:[#allocation4 + $0x18] sm:$0xff]
    %v2266 = vld [vmem:[#allocation4 + $0x20] sm:$0xff]
    %2272 = vrot.lane.b32.xlu0 %v2262, 91
    %v2273 = vpop.permute.xlu0 %2272
    %2274 = vrot.lane.b32.xlu0 %v2263, 91
    %v2275 = vpop.permute.xlu0 %2274
    %2276 = vrot.lane.b32.xlu0 %v2264, 91
    %v2277 = vpop.permute.xlu0 %2276
    %2278 = vrot.lane.b32.xlu0 %v2265, 91
    %v2279 = vpop.permute.xlu0 %2278
    %2280 = vrot.lane.b32.xlu0 %v2266, 91
    %v2281 = vpop.permute.xlu0 %2280
    %v2282 = vsel %vm159, %v2273, %v2275
    %v2283 = vsel %vm159, %v2275, %v2277
    %v2284 = vsel %vm159, %v2277, %v2279
    %v2285 = vsel %vm159, %v2279, %v2281
    %2291 = vst [vmem:[#allocation2 + $0x1b8] sm:$0xff] %v2282
    %2292 = vst [vmem:[#allocation2 + $0x1c0] sm:$0xff] %v2283
    %2293 = vst [vmem:[#allocation2 + $0x1c8] sm:$0xff] %v2284
    %2294 = vst [vmem:[#allocation2 + $0x1d0] sm:$0xff] %v2285
    %2295 = vst.msk [vmem:[#allocation2 + $0x1d8] sm:$0xff] %vm651, %v2281
    %v2296 = vld [vmem:[#allocation4] sm:$0xff]
    %v2297 = vld [vmem:[#allocation4 + $0x8] sm:$0xff]
    %v2298 = vld [vmem:[#allocation4 + $0x10] sm:$0xff]
    %v2299 = vld [vmem:[#allocation4 + $0x18] sm:$0xff]
    %v2300 = vld [vmem:[#allocation4 + $0x20] sm:$0xff]
    %2306 = vrot.lane.b32.xlu0 %v2296, 90
    %v2307 = vpop.permute.xlu0 %2306
    %2308 = vrot.lane.b32.xlu0 %v2297, 90
    %v2309 = vpop.permute.xlu0 %2308
    %2310 = vrot.lane.b32.xlu0 %v2298, 90
    %v2311 = vpop.permute.xlu0 %2310
    %2312 = vrot.lane.b32.xlu0 %v2299, 90
    %v2313 = vpop.permute.xlu0 %2312
    %2314 = vrot.lane.b32.xlu0 %v2300, 90
    %v2315 = vpop.permute.xlu0 %2314
    %v2316 = vsel %vm170, %v2307, %v2309
    %v2317 = vsel %vm170, %v2309, %v2311
    %v2318 = vsel %vm170, %v2311, %v2313
    %v2319 = vsel %vm170, %v2313, %v2315
    %2325 = vst [vmem:[#allocation2 + $0x1e0] sm:$0xff] %v2316
    %2326 = vst [vmem:[#allocation2 + $0x1e8] sm:$0xff] %v2317
    %2327 = vst [vmem:[#allocation2 + $0x1f0] sm:$0xff] %v2318
    %2328 = vst [vmem:[#allocation2 + $0x1f8] sm:$0xff] %v2319
    %2329 = vst.msk [vmem:[#allocation2 + $0x200] sm:$0xff] %vm651, %v2315
    %v2330 = vld [vmem:[#allocation4] sm:$0xff]
    %v2331 = vld [vmem:[#allocation4 + $0x8] sm:$0xff]
    %v2332 = vld [vmem:[#allocation4 + $0x10] sm:$0xff]
    %v2333 = vld [vmem:[#allocation4 + $0x18] sm:$0xff]
    %v2334 = vld [vmem:[#allocation4 + $0x20] sm:$0xff]
    %2340 = vrot.lane.b32.xlu0 %v2330, 89
    %v2341 = vpop.permute.xlu0 %2340
    %2342 = vrot.lane.b32.xlu0 %v2331, 89
    %v2343 = vpop.permute.xlu0 %2342
    %2344 = vrot.lane.b32.xlu0 %v2332, 89
    %v2345 = vpop.permute.xlu0 %2344
    %2346 = vrot.lane.b32.xlu0 %v2333, 89
    %v2347 = vpop.permute.xlu0 %2346
    %2348 = vrot.lane.b32.xlu0 %v2334, 89
    %v2349 = vpop.permute.xlu0 %2348
    %v2350 = vsel %vm181, %v2341, %v2343
    %v2351 = vsel %vm181, %v2343, %v2345
    %v2352 = vsel %vm181, %v2345, %v2347
    %v2353 = vsel %vm181, %v2347, %v2349
    %2359 = vst [vmem:[#allocation2 + $0x208] sm:$0xff] %v2350
    %2360 = vst [vmem:[#allocation2 + $0x210] sm:$0xff] %v2351
    %2361 = vst [vmem:[#allocation2 + $0x218] sm:$0xff] %v2352
    %2362 = vst [vmem:[#allocation2 + $0x220] sm:$0xff] %v2353
    %2363 = vst.msk [vmem:[#allocation2 + $0x228] sm:$0xff] %vm651, %v2349
    %v2364 = vld [vmem:[#allocation4] sm:$0xff]
    %v2365 = vld [vmem:[#allocation4 + $0x8] sm:$0xff]
    %v2366 = vld [vmem:[#allocation4 + $0x10] sm:$0xff]
    %v2367 = vld [vmem:[#allocation4 + $0x18] sm:$0xff]
    %v2368 = vld [vmem:[#allocation4 + $0x20] sm:$0xff]
    %2374 = vrot.lane.b32.xlu0 %v2364, 88
    %v2375 = vpop.permute.xlu0 %2374
    %2376 = vrot.lane.b32.xlu0 %v2365, 88
    %v2377 = vpop.permute.xlu0 %2376
    %2378 = vrot.lane.b32.xlu0 %v2366, 88
    %v2379 = vpop.permute.xlu0 %2378
    %2380 = vrot.lane.b32.xlu0 %v2367, 88
    %v2381 = vpop.permute.xlu0 %2380
    %2382 = vrot.lane.b32.xlu0 %v2368, 88
    %v2383 = vpop.permute.xlu0 %2382
    %v2384 = vsel %vm192, %v2375, %v2377
    %v2385 = vsel %vm192, %v2377, %v2379
    %v2386 = vsel %vm192, %v2379, %v2381
    %v2387 = vsel %vm192, %v2381, %v2383
    %2393 = vst [vmem:[#allocation2 + $0x230] sm:$0xff] %v2384
    %2394 = vst [vmem:[#allocation2 + $0x238] sm:$0xff] %v2385
    %2395 = vst [vmem:[#allocation2 + $0x240] sm:$0xff] %v2386
    %2396 = vst [vmem:[#allocation2 + $0x248] sm:$0xff] %v2387
    %2397 = vst.msk [vmem:[#allocation2 + $0x250] sm:$0xff] %vm651, %v2383
    %v2398 = vld [vmem:[#allocation4] sm:$0xff]
    %v2399 = vld [vmem:[#allocation4 + $0x8] sm:$0xff]
    %v2400 = vld [vmem:[#allocation4 + $0x10] sm:$0xff]
    %v2401 = vld [vmem:[#allocation4 + $0x18] sm:$0xff]
    %v2402 = vld [vmem:[#allocation4 + $0x20] sm:$0xff]
    %2408 = vrot.lane.b32.xlu0 %v2398, 74
    %v2409 = vpop.permute.xlu0 %2408
    %2410 = vrot.lane.b32.xlu0 %v2399, 74
    %v2411 = vpop.permute.xlu0 %2410
    %2412 = vrot.lane.b32.xlu0 %v2400, 74
    %v2413 = vpop.permute.xlu0 %2412
    %2414 = vrot.lane.b32.xlu0 %v2401, 74
    %v2415 = vpop.permute.xlu0 %2414
    %2416 = vrot.lane.b32.xlu0 %v2402, 74
    %v2417 = vpop.permute.xlu0 %2416
    %v2418 = vsel %vm203, %v2409, %v2411
    %v2419 = vsel %vm203, %v2411, %v2413
    %v2420 = vsel %vm203, %v2413, %v2415
    %v2421 = vsel %vm203, %v2415, %v2417
    %2427 = vst [vmem:[#allocation2 + $0x258] sm:$0xff] %v2418
    %2428 = vst [vmem:[#allocation2 + $0x260] sm:$0xff] %v2419
    %2429 = vst [vmem:[#allocation2 + $0x268] sm:$0xff] %v2420
    %2430 = vst [vmem:[#allocation2 + $0x270] sm:$0xff] %v2421
    %2431 = vst.msk [vmem:[#allocation2 + $0x278] sm:$0xff] %vm651, %v2417
    %v2432 = vld [vmem:[#allocation4] sm:$0xff]
    %v2433 = vld [vmem:[#allocation4 + $0x8] sm:$0xff]
    %v2434 = vld [vmem:[#allocation4 + $0x10] sm:$0xff]
    %v2435 = vld [vmem:[#allocation4 + $0x18] sm:$0xff]
    %v2436 = vld [vmem:[#allocation4 + $0x20] sm:$0xff]
    %2442 = vrot.lane.b32.xlu0 %v2432, 73
    %v2443 = vpop.permute.xlu0 %2442
    %2444 = vrot.lane.b32.xlu0 %v2433, 73
    %v2445 = vpop.permute.xlu0 %2444
    %2446 = vrot.lane.b32.xlu0 %v2434, 73
    %v2447 = vpop.permute.xlu0 %2446
    %2448 = vrot.lane.b32.xlu0 %v2435, 73
    %v2449 = vpop.permute.xlu0 %2448
    %2450 = vrot.lane.b32.xlu0 %v2436, 73
    %v2451 = vpop.permute.xlu0 %2450
    %v2452 = vsel %vm214, %v2443, %v2445
    %v2453 = vsel %vm214, %v2445, %v2447
    %v2454 = vsel %vm214, %v2447, %v2449
    %v2455 = vsel %vm214, %v2449, %v2451
    %2461 = vst [vmem:[#allocation2 + $0x280] sm:$0xff] %v2452
    %2462 = vst [vmem:[#allocation2 + $0x288] sm:$0xff] %v2453
    %2463 = vst [vmem:[#allocation2 + $0x290] sm:$0xff] %v2454
    %2464 = vst [vmem:[#allocation2 + $0x298] sm:$0xff] %v2455
    %2465 = vst.msk [vmem:[#allocation2 + $0x2a0] sm:$0xff] %vm651, %v2451
    %v2466 = vld [vmem:[#allocation4] sm:$0xff]
    %v2467 = vld [vmem:[#allocation4 + $0x8] sm:$0xff]
    %v2468 = vld [vmem:[#allocation4 + $0x10] sm:$0xff]
    %v2469 = vld [vmem:[#allocation4 + $0x18] sm:$0xff]
    %v2470 = vld [vmem:[#allocation4 + $0x20] sm:$0xff]
    %2476 = vrot.lane.b32.xlu0 %v2466, 72
    %v2477 = vpop.permute.xlu0 %2476
    %2478 = vrot.lane.b32.xlu0 %v2467, 72
    %v2479 = vpop.permute.xlu0 %2478
    %2480 = vrot.lane.b32.xlu0 %v2468, 72
    %v2481 = vpop.permute.xlu0 %2480
    %2482 = vrot.lane.b32.xlu0 %v2469, 72
    %v2483 = vpop.permute.xlu0 %2482
    %2484 = vrot.lane.b32.xlu0 %v2470, 72
    %v2485 = vpop.permute.xlu0 %2484
    %v2486 = vsel %vm225, %v2477, %v2479
    %v2487 = vsel %vm225, %v2479, %v2481
    %v2488 = vsel %vm225, %v2481, %v2483
    %v2489 = vsel %vm225, %v2483, %v2485
    %2495 = vst [vmem:[#allocation2 + $0x2a8] sm:$0xff] %v2486
    %2496 = vst [vmem:[#allocation2 + $0x2b0] sm:$0xff] %v2487
    %2497 = vst [vmem:[#allocation2 + $0x2b8] sm:$0xff] %v2488
    %2498 = vst [vmem:[#allocation2 + $0x2c0] sm:$0xff] %v2489
    %2499 = vst.msk [vmem:[#allocation2 + $0x2c8] sm:$0xff] %vm651, %v2485
    %v2500 = vld [vmem:[#allocation4] sm:$0xff]
    %v2501 = vld [vmem:[#allocation4 + $0x8] sm:$0xff]
    %v2502 = vld [vmem:[#allocation4 + $0x10] sm:$0xff]
    %v2503 = vld [vmem:[#allocation4 + $0x18] sm:$0xff]
    %v2504 = vld [vmem:[#allocation4 + $0x20] sm:$0xff]
    %2510 = vrot.lane.b32.xlu0 %v2500, 71
    %v2511 = vpop.permute.xlu0 %2510
    %2512 = vrot.lane.b32.xlu0 %v2501, 71
    %v2513 = vpop.permute.xlu0 %2512
    %2514 = vrot.lane.b32.xlu0 %v2502, 71
    %v2515 = vpop.permute.xlu0 %2514
    %2516 = vrot.lane.b32.xlu0 %v2503, 71
    %v2517 = vpop.permute.xlu0 %2516
    %2518 = vrot.lane.b32.xlu0 %v2504, 71
    %v2519 = vpop.permute.xlu0 %2518
    %v2520 = vsel %vm236, %v2511, %v2513
    %v2521 = vsel %vm236, %v2513, %v2515
    %v2522 = vsel %vm236, %v2515, %v2517
    %v2523 = vsel %vm236, %v2517, %v2519
    %2529 = vst [vmem:[#allocation2 + $0x2d0] sm:$0xff] %v2520
    %2530 = vst [vmem:[#allocation2 + $0x2d8] sm:$0xff] %v2521
    %2531 = vst [vmem:[#allocation2 + $0x2e0] sm:$0xff] %v2522
    %2532 = vst [vmem:[#allocation2 + $0x2e8] sm:$0xff] %v2523
    %2533 = vst.msk [vmem:[#allocation2 + $0x2f0] sm:$0xff] %vm651, %v2519
    %v2534 = vld [vmem:[#allocation4] sm:$0xff]
    %v2535 = vld [vmem:[#allocation4 + $0x8] sm:$0xff]
    %v2536 = vld [vmem:[#allocation4 + $0x10] sm:$0xff]
    %v2537 = vld [vmem:[#allocation4 + $0x18] sm:$0xff]
    %v2538 = vld [vmem:[#allocation4 + $0x20] sm:$0xff]
    %2544 = vrot.lane.b32.xlu0 %v2534, 70
    %v2545 = vpop.permute.xlu0 %2544
    %2546 = vrot.lane.b32.xlu0 %v2535, 70
    %v2547 = vpop.permute.xlu0 %2546
    %2548 = vrot.lane.b32.xlu0 %v2536, 70
    %v2549 = vpop.permute.xlu0 %2548
    %2550 = vrot.lane.b32.xlu0 %v2537, 70
    %v2551 = vpop.permute.xlu0 %2550
    %2552 = vrot.lane.b32.xlu0 %v2538, 70
    %v2553 = vpop.permute.xlu0 %2552
    %v2554 = vsel %vm247, %v2545, %v2547
    %v2555 = vsel %vm247, %v2547, %v2549
    %v2556 = vsel %vm247, %v2549, %v2551
    %v2557 = vsel %vm247, %v2551, %v2553
    %2563 = vst [vmem:[#allocation2 + $0x2f8] sm:$0xff] %v2554
    %2564 = vst [vmem:[#allocation2 + $0x300] sm:$0xff] %v2555
    %2565 = vst [vmem:[#allocation2 + $0x308] sm:$0xff] %v2556
    %2566 = vst [vmem:[#allocation2 + $0x310] sm:$0xff] %v2557
    %2567 = vst.msk [vmem:[#allocation2 + $0x318] sm:$0xff] %vm651, %v2553
    %v2568 = vld [vmem:[#allocation4] sm:$0xff]
    %v2569 = vld [vmem:[#allocation4 + $0x8] sm:$0xff]
    %v2570 = vld [vmem:[#allocation4 + $0x10] sm:$0xff]
    %v2571 = vld [vmem:[#allocation4 + $0x18] sm:$0xff]
    %v2572 = vld [vmem:[#allocation4 + $0x20] sm:$0xff]
    %v2573 = vld [vmem:[#allocation4 + $0x28] sm:$0xff]
    %2580 = vrot.lane.b32.xlu0 %v2568, 56
    %v2581 = vpop.permute.xlu0 %2580
    %2582 = vrot.lane.b32.xlu0 %v2569, 56
    %v2583 = vpop.permute.xlu0 %2582
    %2584 = vrot.lane.b32.xlu0 %v2570, 56
    %v2585 = vpop.permute.xlu0 %2584
    %2586 = vrot.lane.b32.xlu0 %v2571, 56
    %v2587 = vpop.permute.xlu0 %2586
    %2588 = vrot.lane.b32.xlu0 %v2572, 56
    %v2589 = vpop.permute.xlu0 %2588
    %2590 = vrot.lane.b32.xlu0 %v2573, 56
    %v2591 = vpop.permute.xlu0 %2590
    %v2592 = vsel %vm258, %v2581, %v2583
    %v2593 = vsel %vm258, %v2583, %v2585
    %v2594 = vsel %vm258, %v2585, %v2587
    %v2595 = vsel %vm258, %v2587, %v2589
    %v2596 = vsel %vm258, %v2589, %v2591
    %2602 = vst [vmem:[#allocation2 + $0x320] sm:$0xff] %v2592
    %2603 = vst [vmem:[#allocation2 + $0x328] sm:$0xff] %v2593
    %2604 = vst [vmem:[#allocation2 + $0x330] sm:$0xff] %v2594
    %2605 = vst [vmem:[#allocation2 + $0x338] sm:$0xff] %v2595
    %2606 = vst.msk [vmem:[#allocation2 + $0x340] sm:$0xff] %vm651, %v2596
    %v2607 = vld [vmem:[#allocation4] sm:$0xff]
    %v2608 = vld [vmem:[#allocation4 + $0x8] sm:$0xff]
    %v2609 = vld [vmem:[#allocation4 + $0x10] sm:$0xff]
    %v2610 = vld [vmem:[#allocation4 + $0x18] sm:$0xff]
    %v2611 = vld [vmem:[#allocation4 + $0x20] sm:$0xff]
    %v2612 = vld [vmem:[#allocation4 + $0x28] sm:$0xff]
    %2619 = vrot.lane.b32.xlu0 %v2607, 55
    %v2620 = vpop.permute.xlu0 %2619
    %2621 = vrot.lane.b32.xlu0 %v2608, 55
    %v2622 = vpop.permute.xlu0 %2621
    %2623 = vrot.lane.b32.xlu0 %v2609, 55
    %v2624 = vpop.permute.xlu0 %2623
    %2625 = vrot.lane.b32.xlu0 %v2610, 55
    %v2626 = vpop.permute.xlu0 %2625
    %2627 = vrot.lane.b32.xlu0 %v2611, 55
    %v2628 = vpop.permute.xlu0 %2627
    %2629 = vrot.lane.b32.xlu0 %v2612, 55
    %v2630 = vpop.permute.xlu0 %2629
    %v2631 = vsel %vm269, %v2620, %v2622
    %v2632 = vsel %vm269, %v2622, %v2624
    %v2633 = vsel %vm269, %v2624, %v2626
    %v2634 = vsel %vm269, %v2626, %v2628
    %v2635 = vsel %vm269, %v2628, %v2630
    %2641 = vst [vmem:[#allocation2 + $0x348] sm:$0xff] %v2631
    %2642 = vst [vmem:[#allocation2 + $0x350] sm:$0xff] %v2632
    %2643 = vst [vmem:[#allocation2 + $0x358] sm:$0xff] %v2633
    %2644 = vst [vmem:[#allocation2 + $0x360] sm:$0xff] %v2634
    %2645 = vst.msk [vmem:[#allocation2 + $0x368] sm:$0xff] %vm651, %v2635
    %v2646 = vld [vmem:[#allocation4] sm:$0xff]
    %v2647 = vld [vmem:[#allocation4 + $0x8] sm:$0xff]
    %v2648 = vld [vmem:[#allocation4 + $0x10] sm:$0xff]
    %v2649 = vld [vmem:[#allocation4 + $0x18] sm:$0xff]
    %v2650 = vld [vmem:[#allocation4 + $0x20] sm:$0xff]
    %v2651 = vld [vmem:[#allocation4 + $0x28] sm:$0xff]
    %2658 = vrot.lane.b32.xlu0 %v2646, 54
    %v2659 = vpop.permute.xlu0 %2658
    %2660 = vrot.lane.b32.xlu0 %v2647, 54
    %v2661 = vpop.permute.xlu0 %2660
    %2662 = vrot.lane.b32.xlu0 %v2648, 54
    %v2663 = vpop.permute.xlu0 %2662
    %2664 = vrot.lane.b32.xlu0 %v2649, 54
    %v2665 = vpop.permute.xlu0 %2664
    %2666 = vrot.lane.b32.xlu0 %v2650, 54
    %v2667 = vpop.permute.xlu0 %2666
    %2668 = vrot.lane.b32.xlu0 %v2651, 54
    %v2669 = vpop.permute.xlu0 %2668
    %v2670 = vsel %vm280, %v2659, %v2661
    %v2671 = vsel %vm280, %v2661, %v2663
    %v2672 = vsel %vm280, %v2663, %v2665
    %v2673 = vsel %vm280, %v2665, %v2667
    %v2674 = vsel %vm280, %v2667, %v2669
    %2680 = vst [vmem:[#allocation2 + $0x370] sm:$0xff] %v2670
    %2681 = vst [vmem:[#allocation2 + $0x378] sm:$0xff] %v2671
    %2682 = vst [vmem:[#allocation2 + $0x380] sm:$0xff] %v2672
    %2683 = vst [vmem:[#allocation2 + $0x388] sm:$0xff] %v2673
    %2684 = vst.msk [vmem:[#allocation2 + $0x390] sm:$0xff] %vm651, %v2674
    %v2685 = vld [vmem:[#allocation4] sm:$0xff]
    %v2686 = vld [vmem:[#allocation4 + $0x8] sm:$0xff]
    %v2687 = vld [vmem:[#allocation4 + $0x10] sm:$0xff]
    %v2688 = vld [vmem:[#allocation4 + $0x18] sm:$0xff]
    %v2689 = vld [vmem:[#allocation4 + $0x20] sm:$0xff]
    %v2690 = vld [vmem:[#allocation4 + $0x28] sm:$0xff]
    %2697 = vrot.lane.b32.xlu0 %v2685, 53
    %v2698 = vpop.permute.xlu0 %2697
    %2699 = vrot.lane.b32.xlu0 %v2686, 53
    %v2700 = vpop.permute.xlu0 %2699
    %2701 = vrot.lane.b32.xlu0 %v2687, 53
    %v2702 = vpop.permute.xlu0 %2701
    %2703 = vrot.lane.b32.xlu0 %v2688, 53
    %v2704 = vpop.permute.xlu0 %2703
    %2705 = vrot.lane.b32.xlu0 %v2689, 53
    %v2706 = vpop.permute.xlu0 %2705
    %2707 = vrot.lane.b32.xlu0 %v2690, 53
    %v2708 = vpop.permute.xlu0 %2707
    %v2709 = vsel %vm291, %v2698, %v2700
    %v2710 = vsel %vm291, %v2700, %v2702
    %v2711 = vsel %vm291, %v2702, %v2704
    %v2712 = vsel %vm291, %v2704, %v2706
    %v2713 = vsel %vm291, %v2706, %v2708
    %2719 = vst [vmem:[#allocation2 + $0x398] sm:$0xff] %v2709
    %2720 = vst [vmem:[#allocation2 + $0x3a0] sm:$0xff] %v2710
    %2721 = vst [vmem:[#allocation2 + $0x3a8] sm:$0xff] %v2711
    %2722 = vst [vmem:[#allocation2 + $0x3b0] sm:$0xff] %v2712
    %2723 = vst.msk [vmem:[#allocation2 + $0x3b8] sm:$0xff] %vm651, %v2713
    %v2724 = vld [vmem:[#allocation4] sm:$0xff]
    %v2725 = vld [vmem:[#allocation4 + $0x8] sm:$0xff]
    %v2726 = vld [vmem:[#allocation4 + $0x10] sm:$0xff]
    %v2727 = vld [vmem:[#allocation4 + $0x18] sm:$0xff]
    %v2728 = vld [vmem:[#allocation4 + $0x20] sm:$0xff]
    %v2729 = vld [vmem:[#allocation4 + $0x28] sm:$0xff]
    %2736 = vrot.lane.b32.xlu0 %v2724, 52
    %v2737 = vpop.permute.xlu0 %2736
    %2738 = vrot.lane.b32.xlu0 %v2725, 52
    %v2739 = vpop.permute.xlu0 %2738
    %2740 = vrot.lane.b32.xlu0 %v2726, 52
    %v2741 = vpop.permute.xlu0 %2740
    %2742 = vrot.lane.b32.xlu0 %v2727, 52
    %v2743 = vpop.permute.xlu0 %2742
    %2744 = vrot.lane.b32.xlu0 %v2728, 52
    %v2745 = vpop.permute.xlu0 %2744
    %2746 = vrot.lane.b32.xlu0 %v2729, 52
    %v2747 = vpop.permute.xlu0 %2746
    %v2748 = vsel %vm302, %v2737, %v2739
    %v2749 = vsel %vm302, %v2739, %v2741
    %v2750 = vsel %vm302, %v2741, %v2743
    %v2751 = vsel %vm302, %v2743, %v2745
    %v2752 = vsel %vm302, %v2745, %v2747
    %2758 = vst [vmem:[#allocation2 + $0x3c0] sm:$0xff] %v2748
    %2759 = vst [vmem:[#allocation2 + $0x3c8] sm:$0xff] %v2749
    %2760 = vst [vmem:[#allocation2 + $0x3d0] sm:$0xff] %v2750
    %2761 = vst [vmem:[#allocation2 + $0x3d8] sm:$0xff] %v2751
    %2762 = vst.msk [vmem:[#allocation2 + $0x3e0] sm:$0xff] %vm651, %v2752
    %v2763 = vld [vmem:[%s5] sm:$0xff]
    %v2764 = vld [vmem:[%s5 + $0x8] sm:$0xff]
    %v2765 = vld [vmem:[#allocation2] sm:$0xff]
    %v2766 = vld [vmem:[#allocation2 + $0x8] sm:$0xff]
    %v2767 = vld [vmem:[#allocation2 + $0x10] sm:$0xff]
    %v2768 = vld [vmem:[#allocation2 + $0x18] sm:$0xff]
    %v2769 = vld [vmem:[#allocation2 + $0x20] sm:$0xff]
    %v2770 = vld [vmem:[#allocation2 + $0x28] sm:$0xff]
    %v2771 = vld [vmem:[#allocation2 + $0x30] sm:$0xff]
    %v2772 = vld [vmem:[#allocation2 + $0x38] sm:$0xff]
    %v2773 = vld [vmem:[#allocation2 + $0x40] sm:$0xff]
    %v2774 = vld [vmem:[#allocation2 + $0x48] sm:$0xff]
    %v2775 = vld [vmem:[#allocation2 + $0x50] sm:$0xff]
    %v2776 = vld [vmem:[#allocation2 + $0x58] sm:$0xff]
    %v2777 = vld [vmem:[#allocation2 + $0x60] sm:$0xff]
    %v2778 = vld [vmem:[#allocation2 + $0x68] sm:$0xff]
    %v2779 = vld [vmem:[#allocation2 + $0x70] sm:$0xff]
    %v2780 = vld [vmem:[#allocation2 + $0x78] sm:$0xff]
    %v2781 = vld [vmem:[#allocation2 + $0x80] sm:$0xff]
    %v2782 = vld [vmem:[#allocation2 + $0x88] sm:$0xff]
    %v2783 = vld [vmem:[#allocation2 + $0x90] sm:$0xff]
    %v2784 = vld [vmem:[#allocation2 + $0x98] sm:$0xff]
    %v2785 = vld [vmem:[#allocation2 + $0xa0] sm:$0xff]
    %v2786 = vld [vmem:[#allocation2 + $0xa8] sm:$0xff]
    %v2787 = vld [vmem:[#allocation2 + $0xb0] sm:$0xff]
    %v2788 = vld [vmem:[#allocation2 + $0xb8] sm:$0xff]
    %v2789 = vld [vmem:[#allocation2 + $0xc0] sm:$0xff]
    %v2790 = vld [vmem:[#allocation2 + $0xc8] sm:$0xff]
    %v2791 = vld [vmem:[#allocation2 + $0xd0] sm:$0xff]
    %v2792 = vld [vmem:[#allocation2 + $0xd8] sm:$0xff]
    %v2793 = vld [vmem:[#allocation2 + $0xe0] sm:$0xff]
    %v2794 = vld [vmem:[#allocation2 + $0xe8] sm:$0xff]
    %v2795 = vld [vmem:[#allocation2 + $0xf0] sm:$0xff]
    %v2796 = vld [vmem:[#allocation2 + $0xf8] sm:$0xff]
    %v2797 = vld [vmem:[#allocation2 + $0x100] sm:$0xff]
    %v2798 = vld [vmem:[#allocation2 + $0x108] sm:$0xff]
    %v2799 = vld [vmem:[#allocation2 + $0x110] sm:$0xff]
    %v2800 = vld [vmem:[#allocation2 + $0x118] sm:$0xff]
    %v2801 = vld [vmem:[#allocation2 + $0x120] sm:$0xff]
    %v2802 = vld [vmem:[#allocation2 + $0x128] sm:$0xff]
    %v2803 = vld [vmem:[#allocation2 + $0x130] sm:$0xff]
    %v2804 = vld [vmem:[#allocation2 + $0x138] sm:$0xff]
    %v2805 = vld [vmem:[#allocation2 + $0x140] sm:$0xff]
    %v2806 = vld [vmem:[#allocation2 + $0x148] sm:$0xff]
    %v2807 = vld [vmem:[#allocation2 + $0x150] sm:$0xff]
    %v2808 = vld [vmem:[#allocation2 + $0x158] sm:$0xff]
    %v2809 = vld [vmem:[#allocation2 + $0x160] sm:$0xff]
    %v2810 = vld [vmem:[#allocation2 + $0x168] sm:$0xff]
    %v2811 = vld [vmem:[#allocation2 + $0x170] sm:$0xff]
    %v2812 = vld [vmem:[#allocation2 + $0x178] sm:$0xff]
    %v2813 = vld [vmem:[#allocation2 + $0x180] sm:$0xff]
    %v2814 = vld [vmem:[#allocation2 + $0x188] sm:$0xff]
    %v2815 = vld [vmem:[#allocation2 + $0x190] sm:$0xff]
    %v2816 = vld [vmem:[#allocation2 + $0x198] sm:$0xff]
    %v2817 = vld [vmem:[#allocation2 + $0x1a0] sm:$0xff]
    %v2818 = vld [vmem:[#allocation2 + $0x1a8] sm:$0xff]
    %v2819 = vld [vmem:[#allocation2 + $0x1b0] sm:$0xff]
    %v2820 = vld [vmem:[#allocation2 + $0x1b8] sm:$0xff]
    %v2821 = vld [vmem:[#allocation2 + $0x1c0] sm:$0xff]
    %v2822 = vld [vmem:[#allocation2 + $0x1c8] sm:$0xff]
    %v2823 = vld [vmem:[#allocation2 + $0x1d0] sm:$0xff]
    %v2824 = vld [vmem:[#allocation2 + $0x1d8] sm:$0xff]
    %v2825 = vld [vmem:[#allocation2 + $0x1e0] sm:$0xff]
    %v2826 = vld [vmem:[#allocation2 + $0x1e8] sm:$0xff]
    %v2827 = vld [vmem:[#allocation2 + $0x1f0] sm:$0xff]
    %v2828 = vld [vmem:[#allocation2 + $0x1f8] sm:$0xff]
    %v2829 = vld [vmem:[#allocation2 + $0x200] sm:$0xff]
    %v2830 = vld [vmem:[#allocation2 + $0x208] sm:$0xff]
    %v2831 = vld [vmem:[#allocation2 + $0x210] sm:$0xff]
    %v2832 = vld [vmem:[#allocation2 + $0x218] sm:$0xff]
    %v2833 = vld [vmem:[#allocation2 + $0x220] sm:$0xff]
    %v2834 = vld [vmem:[#allocation2 + $0x228] sm:$0xff]
    %v2835 = vld [vmem:[#allocation2 + $0x230] sm:$0xff]
    %v2836 = vld [vmem:[#allocation2 + $0x238] sm:$0xff]
    %v2837 = vld [vmem:[#allocation2 + $0x240] sm:$0xff]
    %v2838 = vld [vmem:[#allocation2 + $0x248] sm:$0xff]
    %v2839 = vld [vmem:[#allocation2 + $0x250] sm:$0xff]
    %v2840 = vld [vmem:[#allocation2 + $0x258] sm:$0xff]
    %v2841 = vld [vmem:[#allocation2 + $0x260] sm:$0xff]
    %v2842 = vld [vmem:[#allocation2 + $0x268] sm:$0xff]
    %v2843 = vld [vmem:[#allocation2 + $0x270] sm:$0xff]
    %v2844 = vld [vmem:[#allocation2 + $0x278] sm:$0xff]
    %v2845 = vld [vmem:[#allocation2 + $0x280] sm:$0xff]
    %v2846 = vld [vmem:[#allocation2 + $0x288] sm:$0xff]
    %v2847 = vld [vmem:[#allocation2 + $0x290] sm:$0xff]
    %v2848 = vld [vmem:[#allocation2 + $0x298] sm:$0xff]
    %v2849 = vld [vmem:[#allocation2 + $0x2a0] sm:$0xff]
    %v2850 = vld [vmem:[#allocation2 + $0x2a8] sm:$0xff]
    %v2851 = vld [vmem:[#allocation2 + $0x2b0] sm:$0xff]
    %v2852 = vld [vmem:[#allocation2 + $0x2b8] sm:$0xff]
    %v2853 = vld [vmem:[#allocation2 + $0x2c0] sm:$0xff]
    %v2854 = vld [vmem:[#allocation2 + $0x2c8] sm:$0xff]
    %v2855 = vld [vmem:[#allocation2 + $0x2d0] sm:$0xff]
    %v2856 = vld [vmem:[#allocation2 + $0x2d8] sm:$0xff]
    %v2857 = vld [vmem:[#allocation2 + $0x2e0] sm:$0xff]
    %v2858 = vld [vmem:[#allocation2 + $0x2e8] sm:$0xff]
    %v2859 = vld [vmem:[#allocation2 + $0x2f0] sm:$0xff]
    %v2860 = vld [vmem:[#allocation2 + $0x2f8] sm:$0xff]
    %v2861 = vld [vmem:[#allocation2 + $0x300] sm:$0xff]
    %v2862 = vld [vmem:[#allocation2 + $0x308] sm:$0xff]
    %v2863 = vld [vmem:[#allocation2 + $0x310] sm:$0xff]
    %v2864 = vld [vmem:[#allocation2 + $0x318] sm:$0xff]
    %v2865 = vld [vmem:[#allocation2 + $0x320] sm:$0xff]
    %v2866 = vld [vmem:[#allocation2 + $0x328] sm:$0xff]
    %v2867 = vld [vmem:[#allocation2 + $0x330] sm:$0xff]
    %v2868 = vld [vmem:[#allocation2 + $0x338] sm:$0xff]
    %v2869 = vld [vmem:[#allocation2 + $0x340] sm:$0xff]
    %v2870 = vld [vmem:[#allocation2 + $0x348] sm:$0xff]
    %v2871 = vld [vmem:[#allocation2 + $0x350] sm:$0xff]
    %v2872 = vld [vmem:[#allocation2 + $0x358] sm:$0xff]
    %v2873 = vld [vmem:[#allocation2 + $0x360] sm:$0xff]
    %v2874 = vld [vmem:[#allocation2 + $0x368] sm:$0xff]
    %v2875 = vld [vmem:[#allocation2 + $0x370] sm:$0xff]
    %v2876 = vld [vmem:[#allocation2 + $0x378] sm:$0xff]
    %v2877 = vld [vmem:[#allocation2 + $0x380] sm:$0xff]
    %v2878 = vld [vmem:[#allocation2 + $0x388] sm:$0xff]
    %v2879 = vld [vmem:[#allocation2 + $0x390] sm:$0xff]
    %v2880 = vld [vmem:[#allocation2 + $0x398] sm:$0xff]
    %v2881 = vld [vmem:[#allocation2 + $0x3a0] sm:$0xff]
    %v2882 = vld [vmem:[#allocation2 + $0x3a8] sm:$0xff]
    %v2883 = vld [vmem:[#allocation2 + $0x3b0] sm:$0xff]
    %v2884 = vld [vmem:[#allocation2 + $0x3b8] sm:$0xff]
    %v2885 = vld [vmem:[#allocation2 + $0x3c0] sm:$0xff]
    %v2886 = vld [vmem:[#allocation2 + $0x3c8] sm:$0xff]
    %v2887 = vld [vmem:[#allocation2 + $0x3d0] sm:$0xff]
    %v2888 = vld [vmem:[#allocation2 + $0x3d8] sm:$0xff]
    %v2889 = vld [vmem:[#allocation2 + $0x3e0] sm:$0xff]
    %v2890 = vld [vmem:[%s6] sm:$0xff]
    %2892 = vset.pattern.permute.xlu0 0
    %2893 = vperm.xlu0 %2892, %v2890
    %v2894 = vpop.permute.xlu0 %2893
    %v2897 = vsel %vm225, %v2764, 0
    %2899 = vmatprep.subr.mxu0 %v2766
    %2900 = vmatpush1.msra.mxu0 %v2765
    %2901 = vmatprep.subr.mxu0 %v2771
    %2902 = vmatpush1.msra.mxu0 %v2770
    %2903 = vmatprep.subr.mxu0 %v2776
    %2904 = vmatpush1.msra.mxu0 %v2775
    %2905 = vmatprep.subr.mxu0 %v2781
    %2906 = vmatpush1.msra.mxu0 %v2780
    %2907 = vmatprep.subr.mxu0 %v2786
    %2908 = vmatpush1.msra.mxu0 %v2785
    %2909 = vmatprep.subr.mxu0 %v2791
    %2910 = vmatpush1.msra.mxu0 %v2790
    %2911 = vmatprep.subr.mxu0 %v2796
    %2912 = vmatpush1.msra.mxu0 %v2795
    %2913 = vmatprep.subr.mxu0 %v2801
    %2914 = vmatpush1.msra.mxu0 %v2800
    %2915 = vmatprep.subr.mxu0 %v2806
    %2916 = vmatpush1.msra.mxu0 %v2805
    %2917 = vmatprep.subr.mxu0 %v2811
    %2918 = vmatpush1.msra.mxu0 %v2810
    %2919 = vmatprep.subr.mxu0 %v2816
    %2920 = vmatpush1.msra.mxu0 %v2815
    %2921 = vmatprep.subr.mxu0 %v2821
    %2922 = vmatpush1.msra.mxu0 %v2820
    %2923 = vmatprep.subr.mxu0 %v2826
    %2924 = vmatpush1.msra.mxu0 %v2825
    %2925 = vmatprep.subr.mxu0 %v2831
    %2926 = vmatpush1.msra.mxu0 %v2830
    %2927 = vmatprep.subr.mxu0 %v2836
    %2928 = vmatpush1.msra.mxu0 %v2835
    %2929 = vmatprep.subr.mxu0 %v2841
    %2930 = vmatpush1.msra.mxu0 %v2840
    %2931 = vmatprep.subr.mxu0 %v2846
    %2932 = vmatpush1.msra.mxu0 %v2845
    %2933 = vmatprep.subr.mxu0 %v2851
    %2934 = vmatpush1.msra.mxu0 %v2850
    %2935 = vmatprep.subr.mxu0 %v2856
    %2936 = vmatpush1.msra.mxu0 %v2855
    %2937 = vmatprep.subr.mxu0 %v2861
    %2938 = vmatpush1.msra.mxu0 %v2860
    %2939 = vmatprep.subr.mxu0 %v2866
    %2940 = vmatpush1.msra.mxu0 %v2865
    %2941 = vmatprep.subr.mxu0 %v2871
    %2942 = vmatpush1.msra.mxu0 %v2870
    %2943 = vmatprep.subr.mxu0 %v2876
    %2944 = vmatpush1.msra.mxu0 %v2875
    %2945 = vmatprep.subr.mxu0 %v2881
    %2946 = vmatpush1.msra.mxu0 %v2880
    %2947 = vmatprep.subr.mxu0 %v2886
    %2948 = vmatpush1.msra.mxu0 %v2885
    %2949 = vmatprep.subr.mxu0 0.0
    %2950 = vmatpush1.msra.mxu0 0.0
    %2951 = vmatprep.subr.mxu0 0.0
    %2952 = vmatpush1.msra.mxu0 0.0
    %2953 = vmatprep.subr.mxu0 0.0
    %2954 = vmatpush1.msra.mxu0 0.0
    %2955 = vmatprep.subr.mxu0 0.0
    %2956 = vmatpush1.msra.mxu0 0.0
    %2957 = vmatprep.subr.mxu0 0.0
    %2958 = vmatpush1.msra.mxu0 0.0
    %2959 = vmatprep.subr.mxu0 0.0
    %2960 = vmatpush1.msra.mxu0 0.0
    %2961 = vmatprep.subr.mxu0 0.0
    %2962 = vmatpush1.msra.mxu0 0.0
    %2963 = vmatprep.mubr.f32.mxu0 %v2897
    %2964 = vmatmul.mubr.f32.gmra.mrb[0].mxu0 %v2763
    %v2965 = vpop.f32.mrb[0].mxu0
    %v2966 = vadd.f32 %v2894, %v2965
    %v2967 = vpop.f32.mrb[0].mxu0
    %v2968 = vadd.f32 %v2894, %v2967
    %2969 = vdwg.mxu0
    %2970 = vmatprep.subr.mxu0 %v2768
    %2971 = vmatpush1.msra.mxu0 %v2767
    %2972 = vmatprep.subr.mxu0 %v2773
    %2973 = vmatpush1.msra.mxu0 %v2772
    %2974 = vmatprep.subr.mxu0 %v2778
    %2975 = vmatpush1.msra.mxu0 %v2777
    %2976 = vmatprep.subr.mxu0 %v2783
    %2977 = vmatpush1.msra.mxu0 %v2782
    %2978 = vmatprep.subr.mxu0 %v2788
    %2979 = vmatpush1.msra.mxu0 %v2787
    %2980 = vmatprep.subr.mxu0 %v2793
    %2981 = vmatpush1.msra.mxu0 %v2792
    %2982 = vmatprep.subr.mxu0 %v2798
    %2983 = vmatpush1.msra.mxu0 %v2797
    %2984 = vmatprep.subr.mxu0 %v2803
    %2985 = vmatpush1.msra.mxu0 %v2802
    %2986 = vmatprep.subr.mxu0 %v2808
    %2987 = vmatpush1.msra.mxu0 %v2807
    %2988 = vmatprep.subr.mxu0 %v2813
    %2989 = vmatpush1.msra.mxu0 %v2812
    %2990 = vmatprep.subr.mxu0 %v2818
    %2991 = vmatpush1.msra.mxu0 %v2817
    %2992 = vmatprep.subr.mxu0 %v2823
    %2993 = vmatpush1.msra.mxu0 %v2822
    %2994 = vmatprep.subr.mxu0 %v2828
    %2995 = vmatpush1.msra.mxu0 %v2827
    %2996 = vmatprep.subr.mxu0 %v2833
    %2997 = vmatpush1.msra.mxu0 %v2832
    %2998 = vmatprep.subr.mxu0 %v2838
    %2999 = vmatpush1.msra.mxu0 %v2837
    %3000 = vmatprep.subr.mxu0 %v2843
    %3001 = vmatpush1.msra.mxu0 %v2842
    %3002 = vmatprep.subr.mxu0 %v2848
    %3003 = vmatpush1.msra.mxu0 %v2847
    %3004 = vmatprep.subr.mxu0 %v2853
    %3005 = vmatpush1.msra.mxu0 %v2852
    %3006 = vmatprep.subr.mxu0 %v2858
    %3007 = vmatpush1.msra.mxu0 %v2857
    %3008 = vmatprep.subr.mxu0 %v2863
    %3009 = vmatpush1.msra.mxu0 %v2862
    %3010 = vmatprep.subr.mxu0 %v2868
    %3011 = vmatpush1.msra.mxu0 %v2867
    %3012 = vmatprep.subr.mxu0 %v2873
    %3013 = vmatpush1.msra.mxu0 %v2872
    %3014 = vmatprep.subr.mxu0 %v2878
    %3015 = vmatpush1.msra.mxu0 %v2877
    %3016 = vmatprep.subr.mxu0 %v2883
    %3017 = vmatpush1.msra.mxu0 %v2882
    %3018 = vmatprep.subr.mxu0 %v2888
    %3019 = vmatpush1.msra.mxu0 %v2887
    %3020 = vmatprep.subr.mxu0 0.0
    %3021 = vmatpush1.msra.mxu0 0.0
    %3022 = vmatprep.subr.mxu0 0.0
    %3023 = vmatpush1.msra.mxu0 0.0
    %3024 = vmatprep.subr.mxu0 0.0
    %3025 = vmatpush1.msra.mxu0 0.0
    %3026 = vmatprep.subr.mxu0 0.0
    %3027 = vmatpush1.msra.mxu0 0.0
    %3028 = vmatprep.subr.mxu0 0.0
    %3029 = vmatpush1.msra.mxu0 0.0
    %3030 = vmatprep.subr.mxu0 0.0
    %3031 = vmatpush1.msra.mxu0 0.0
    %3032 = vmatprep.subr.mxu0 0.0
    %3033 = vmatpush1.msra.mxu0 0.0
    %3034 = vmatprep.mubr.f32.mxu0 %v2897
    %3035 = vmatmul.mubr.f32.gmra.mrb[0].mxu0 %v2763
    %v3036 = vpop.f32.mrb[0].mxu0
    %v3037 = vadd.f32 %v2894, %v3036
    %v3038 = vpop.f32.mrb[0].mxu0
    %v3039 = vadd.f32 %v2894, %v3038
    %3040 = vdwg.mxu0
    %3041 = vmatprep.subr.mxu0 0.0
    %3042 = vmatpush1.msra.mxu0 %v2769
    %3043 = vmatprep.subr.mxu0 0.0
    %3044 = vmatpush1.msra.mxu0 %v2774
    %3045 = vmatprep.subr.mxu0 0.0
    %3046 = vmatpush1.msra.mxu0 %v2779
    %3047 = vmatprep.subr.mxu0 0.0
    %3048 = vmatpush1.msra.mxu0 %v2784
    %3049 = vmatprep.subr.mxu0 0.0
    %3050 = vmatpush1.msra.mxu0 %v2789
    %3051 = vmatprep.subr.mxu0 0.0
    %3052 = vmatpush1.msra.mxu0 %v2794
    %3053 = vmatprep.subr.mxu0 0.0
    %3054 = vmatpush1.msra.mxu0 %v2799
    %3055 = vmatprep.subr.mxu0 0.0
    %3056 = vmatpush1.msra.mxu0 %v2804
    %3057 = vmatprep.subr.mxu0 0.0
    %3058 = vmatpush1.msra.mxu0 %v2809
    %3059 = vmatprep.subr.mxu0 0.0
    %3060 = vmatpush1.msra.mxu0 %v2814
    %3061 = vmatprep.subr.mxu0 0.0
    %3062 = vmatpush1.msra.mxu0 %v2819
    %3063 = vmatprep.subr.mxu0 0.0
    %3064 = vmatpush1.msra.mxu0 %v2824
    %3065 = vmatprep.subr.mxu0 0.0
    %3066 = vmatpush1.msra.mxu0 %v2829
    %3067 = vmatprep.subr.mxu0 0.0
    %3068 = vmatpush1.msra.mxu0 %v2834
    %3069 = vmatprep.subr.mxu0 0.0
    %3070 = vmatpush1.msra.mxu0 %v2839
    %3071 = vmatprep.subr.mxu0 0.0
    %3072 = vmatpush1.msra.mxu0 %v2844
    %3073 = vmatprep.subr.mxu0 0.0
    %3074 = vmatpush1.msra.mxu0 %v2849
    %3075 = vmatprep.subr.mxu0 0.0
    %3076 = vmatpush1.msra.mxu0 %v2854
    %3077 = vmatprep.subr.mxu0 0.0
    %3078 = vmatpush1.msra.mxu0 %v2859
    %3079 = vmatprep.subr.mxu0 0.0
    %3080 = vmatpush1.msra.mxu0 %v2864
    %3081 = vmatprep.subr.mxu0 0.0
    %3082 = vmatpush1.msra.mxu0 %v2869
    %3083 = vmatprep.subr.mxu0 0.0
    %3084 = vmatpush1.msra.mxu0 %v2874
    %3085 = vmatprep.subr.mxu0 0.0
    %3086 = vmatpush1.msra.mxu0 %v2879
    %3087 = vmatprep.subr.mxu0 0.0
    %3088 = vmatpush1.msra.mxu0 %v2884
    %3089 = vmatprep.subr.mxu0 0.0
    %3090 = vmatpush1.msra.mxu0 %v2889
    %3091 = vmatprep.subr.mxu0 0.0
    %3092 = vmatpush1.msra.mxu0 0.0
    %3093 = vmatprep.subr.mxu0 0.0
    %3094 = vmatpush1.msra.mxu0 0.0
    %3095 = vmatprep.subr.mxu0 0.0
    %3096 = vmatpush1.msra.mxu0 0.0
    %3097 = vmatprep.subr.mxu0 0.0
    %3098 = vmatpush1.msra.mxu0 0.0
    %3099 = vmatprep.subr.mxu0 0.0
    %3100 = vmatpush1.msra.mxu0 0.0
    %3101 = vmatprep.subr.mxu0 0.0
    %3102 = vmatpush1.msra.mxu0 0.0
    %3103 = vmatprep.subr.mxu0 0.0
    %3104 = vmatpush1.msra.mxu0 0.0
    %3105 = vmatprep.mubr.f32.mxu0 %v2897
    %3106 = vmatmul.mubr.f32.gmra.mrb[0].mxu0 %v2763
    %v3107 = vpop.f32.mrb[0].mxu0
    %v3108 = vadd.f32 %v2894, %v3107
    %v3109 = vpop.f32.mrb[0].mxu0
    %3110 = vdwg.mxu0
    %v3111 = vmax.f32 %v2966, 0.0
    %v3112 = vmax.f32 %v2968, 0.0
    %v3113 = vmax.f32 %v3037, 0.0
    %v3114 = vmax.f32 %v3039, 0.0
    %v3115 = vmax.f32 %v3108, 0.0
    %v3117 = vlaneseq
    %v3118 = vshrl.u32 %v3117, 7
    %v3119 = vsub.s32 0, %v3118
    %v3120 = vrot.slane %v1911, %v3119
    %v3121 = vlaneseq
    %v3122 = vshrl.u32 %v3121, 7
    %v3123 = vsub.s32 1, %v3122
    %v3124 = vrot.slane %v1911, %v3123
    %v3125 = vlaneseq
    %v3126 = vshrl.u32 %v3125, 7
    %v3127 = vsub.s32 2, %v3126
    %v3128 = vrot.slane %v1911, %v3127
    %v3129 = vlaneseq
    %v3130 = vshrl.u32 %v3129, 7
    %v3131 = vsub.s32 3, %v3130
    %v3132 = vrot.slane %v1911, %v3131
    %v3133 = vlaneseq
    %v3134 = vshrl.u32 %v3133, 7
    %v3135 = vsub.s32 4, %v3134
    %v3136 = vrot.slane %v1911, %v3135
    %v3142 = vmul.f32 %v3111, %v3120
    %v3143 = vmul.f32 %v3112, %v3124
    %v3144 = vmul.f32 %v3113, %v3128
    %v3145 = vmul.f32 %v3114, %v3132
    %v3146 = vmul.f32 %v3115, %v3136
    %3147 = vst [vmem:[#allocation2] sm:$0xff] %v3142
    %3148 = vst [vmem:[#allocation2 + $0x8] sm:$0xff] %v3143
    %3149 = vst [vmem:[#allocation2 + $0x10] sm:$0xff] %v3144
    %3150 = vst [vmem:[#allocation2 + $0x18] sm:$0xff] %v3145
    %3151 = vst.msk [vmem:[#allocation2 + $0x20] sm:$0xff] %vm651, %v3146
    %v3152 = vld [vmem:[#allocation2] ss:$8 sm:$0x3]
    %s3153 = scalar_lea.vmem [#allocation2], 16
    %v3154 = vld [vmem:[%s3153] ss:$8 sm:$0x3]
    %v3156 = vlaneseq
    %v3157 = vshrl.u32 %v3156, 7
    %v3158 = vsub.s32 0, %v3157
    %v3159 = vrot.slane %v3152, %v3158
    %v3160 = vlaneseq
    %v3161 = vshrl.u32 %v3160, 7
    %v3162 = vsub.s32 1, %v3161
    %v3163 = vrot.slane %v3152, %v3162
    %v3167 = vlaneseq
    %v3168 = vshrl.u32 %v3167, 7
    %v3169 = vsub.s32 0, %v3168
    %v3170 = vrot.slane %v3154, %v3169
    %v3171 = vlaneseq
    %v3172 = vshrl.u32 %v3171, 7
    %v3173 = vsub.s32 1, %v3172
    %v3174 = vrot.slane %v3154, %v3173
    %3175 = vrot.lane.b32.xlu0 %v3170, 60
    %v3176 = vpop.permute.xlu0 %3175
    %3177 = vrot.lane.b32.xlu0 %v3174, 60
    %v3178 = vpop.permute.xlu0 %3177
    %v3179 = vsel %vm651, %v3176, %v3178
    %v3182 = vsel %vm339, %v3159, %v3179
    %v3183 = vsel %vm339, %v3163, %v3178
    %v3184 = vld [vmem:[%s7] sm:$0xff]
    %v3185 = vld [vmem:[%s7 + $0x8] sm:$0xff]
    %v3186 = vld [vmem:[%s7 + $0x10] sm:$0xff]
    %v3187 = vld [vmem:[%s7 + $0x18] sm:$0xff]
    %v3188 = vld [vmem:[%s7 + $0x20] sm:$0xff]
    %v3189 = vld [vmem:[%s7 + $0x28] sm:$0xff]
    %v3190 = vld [vmem:[%s7 + $0x30] sm:$0xff]
    %v3191 = vld [vmem:[%s7 + $0x38] sm:$0xff]
    %v3192 = vld [vmem:[%s7 + $0x40] sm:$0xff]
    %v3193 = vld [vmem:[%s7 + $0x48] sm:$0xff]
    %v3194 = vld [vmem:[%s7 + $0x50] sm:$0xff]
    %v3195 = vld [vmem:[%s7 + $0x58] sm:$0xff]
    %v3196 = vld [vmem:[%s7 + $0x60] sm:$0xff]
    %v3197 = vld [vmem:[%s7 + $0x68] sm:$0xff]
    %v3198 = vld [vmem:[%s7 + $0x70] sm:$0xff]
    %v3199 = vld [vmem:[%s7 + $0x78] sm:$0xff]
    %v3200 = vld [vmem:[%s7 + $0x80] sm:$0xff]
    %v3201 = vld [vmem:[%s7 + $0x88] sm:$0xff]
    %v3202 = vld [vmem:[%s7 + $0x90] sm:$0xff]
    %v3203 = vld [vmem:[%s7 + $0x98] sm:$0xff]
    %v3204 = vld [vmem:[%s7 + $0xa0] sm:$0xff]
    %v3205 = vld [vmem:[%s7 + $0xa8] sm:$0xf]
    %v3206 = vld [vmem:[%s52] ss:$8 sm:$0x3]
    %s3207 = scalar_lea.vmem [#allocation2], 17
    %v3208 = vld [vmem:[%s3207] ss:$8 sm:$0x3]
    %v3210 = vlaneseq
    %v3211 = vshrl.u32 %v3210, 7
    %v3212 = vsub.s32 0, %v3211
    %v3213 = vrot.slane %v3206, %v3212
    %v3214 = vlaneseq
    %v3215 = vshrl.u32 %v3214, 7
    %v3216 = vsub.s32 1, %v3215
    %v3217 = vrot.slane %v3206, %v3216
    %v3221 = vlaneseq
    %v3222 = vshrl.u32 %v3221, 7
    %v3223 = vsub.s32 0, %v3222
    %v3224 = vrot.slane %v3208, %v3223
    %v3225 = vlaneseq
    %v3226 = vshrl.u32 %v3225, 7
    %v3227 = vsub.s32 1, %v3226
    %v3228 = vrot.slane %v3208, %v3227
    %3229 = vrot.lane.b32.xlu0 %v3224, 60
    %v3230 = vpop.permute.xlu0 %3229
    %3231 = vrot.lane.b32.xlu0 %v3228, 60
    %v3232 = vpop.permute.xlu0 %3231
    %v3233 = vsel %vm651, %v3230, %v3232
    %v3236 = vsel %vm339, %v3213, %v3233
    %v3237 = vsel %vm339, %v3217, %v3232
    %s3238 = scalar_lea.vmem %s7, 176
    %v3239 = vld [vmem:[%s3238] sm:$0xff]
    %v3240 = vld [vmem:[%s3238 + $0x8] sm:$0xff]
    %v3241 = vld [vmem:[%s3238 + $0x10] sm:$0xff]
    %v3242 = vld [vmem:[%s3238 + $0x18] sm:$0xff]
    %v3243 = vld [vmem:[%s3238 + $0x20] sm:$0xff]
    %v3244 = vld [vmem:[%s3238 + $0x28] sm:$0xff]
    %v3245 = vld [vmem:[%s3238 + $0x30] sm:$0xff]
    %v3246 = vld [vmem:[%s3238 + $0x38] sm:$0xff]
    %v3247 = vld [vmem:[%s3238 + $0x40] sm:$0xff]
    %v3248 = vld [vmem:[%s3238 + $0x48] sm:$0xff]
    %v3249 = vld [vmem:[%s3238 + $0x50] sm:$0xff]
    %v3250 = vld [vmem:[%s3238 + $0x58] sm:$0xff]
    %v3251 = vld [vmem:[%s3238 + $0x60] sm:$0xff]
    %v3252 = vld [vmem:[%s3238 + $0x68] sm:$0xff]
    %v3253 = vld [vmem:[%s3238 + $0x70] sm:$0xff]
    %v3254 = vld [vmem:[%s3238 + $0x78] sm:$0xff]
    %v3255 = vld [vmem:[%s3238 + $0x80] sm:$0xff]
    %v3256 = vld [vmem:[%s3238 + $0x88] sm:$0xff]
    %v3257 = vld [vmem:[%s3238 + $0x90] sm:$0xff]
    %v3258 = vld [vmem:[%s3238 + $0x98] sm:$0xff]
    %v3259 = vld [vmem:[%s3238 + $0xa0] sm:$0xff]
    %v3260 = vld [vmem:[%s3238 + $0xa8] sm:$0xf]
    %vm3261 = vcmask 359424
    %v3263 = vsel %vm3261, %v3237, 0
    %vm3265 = vcmask 1043456
    %v3267 = vsel %vm3265, %v3260, 0
    %3269 = vmatprep.subr.mxu0 0.0
    %3270 = vmatpush1.msra.mxu0 %v3239
    %3271 = vmatprep.subr.mxu0 0.0
    %3272 = vmatpush1.msra.mxu0 %v3240
    %3273 = vmatprep.subr.mxu0 0.0
    %3274 = vmatpush1.msra.mxu0 %v3241
    %3275 = vmatprep.subr.mxu0 0.0
    %3276 = vmatpush1.msra.mxu0 %v3242
    %3277 = vmatprep.subr.mxu0 0.0
    %3278 = vmatpush1.msra.mxu0 %v3243
    %3279 = vmatprep.subr.mxu0 0.0
    %3280 = vmatpush1.msra.mxu0 %v3244
    %3281 = vmatprep.subr.mxu0 0.0
    %3282 = vmatpush1.msra.mxu0 %v3245
    %3283 = vmatprep.subr.mxu0 0.0
    %3284 = vmatpush1.msra.mxu0 %v3246
    %3285 = vmatprep.subr.mxu0 0.0
    %3286 = vmatpush1.msra.mxu0 %v3247
    %3287 = vmatprep.subr.mxu0 0.0
    %3288 = vmatpush1.msra.mxu0 %v3248
    %3289 = vmatprep.subr.mxu0 0.0
    %3290 = vmatpush1.msra.mxu0 %v3249
    %3291 = vmatprep.subr.mxu0 0.0
    %3292 = vmatpush1.msra.mxu0 %v3250
    %3293 = vmatprep.subr.mxu0 0.0
    %3294 = vmatpush1.msra.mxu0 %v3251
    %3295 = vmatprep.subr.mxu0 0.0
    %3296 = vmatpush1.msra.mxu0 %v3252
    %3297 = vmatprep.subr.mxu0 0.0
    %3298 = vmatpush1.msra.mxu0 %v3253
    %3299 = vmatprep.subr.mxu0 0.0
    %3300 = vmatpush1.msra.mxu0 %v3254
    %3301 = vmatprep.subr.mxu0 0.0
    %3302 = vmatpush1.msra.mxu0 %v3255
    %3303 = vmatprep.subr.mxu0 0.0
    %3304 = vmatpush1.msra.mxu0 %v3256
    %3305 = vmatprep.subr.mxu0 0.0
    %3306 = vmatpush1.msra.mxu0 %v3257
    %3307 = vmatprep.subr.mxu0 0.0
    %3308 = vmatpush1.msra.mxu0 %v3258
    %3309 = vmatprep.subr.mxu0 0.0
    %3310 = vmatpush1.msra.mxu0 %v3259
    %3311 = vmatprep.subr.mxu0 0.0
    %3312 = vmatpush1.msra.mxu0 %v3267
    %3313 = vmatprep.subr.mxu0 0.0
    %3314 = vmatpush1.msra.mxu0 0.0
    %3315 = vmatprep.subr.mxu0 0.0
    %3316 = vmatpush1.msra.mxu0 0.0
    %3317 = vmatprep.subr.mxu0 0.0
    %3318 = vmatpush1.msra.mxu0 0.0
    %3319 = vmatprep.subr.mxu0 0.0
    %3320 = vmatpush1.msra.mxu0 0.0
    %3321 = vmatprep.subr.mxu0 0.0
    %3322 = vmatpush1.msra.mxu0 0.0
    %3323 = vmatprep.subr.mxu0 0.0
    %3324 = vmatpush1.msra.mxu0 0.0
    %3325 = vmatprep.subr.mxu0 0.0
    %3326 = vmatpush1.msra.mxu0 0.0
    %3327 = vmatprep.subr.mxu0 0.0
    %3328 = vmatpush1.msra.mxu0 0.0
    %3329 = vmatprep.subr.mxu0 0.0
    %3330 = vmatpush1.msra.mxu0 0.0
    %3331 = vmatprep.subr.mxu0 0.0
    %3332 = vmatpush1.msra.mxu0 0.0
    %3333 = vmatprep.mubr.f32.mxu0 %v3263
    %3334 = vmatmul.mubr.f32.gmra.mrb[0].mxu0 %v3236
    %v3335 = vpop.f32.mrb[0].mxu0
    %v3336 = vadd.f32 0.0, %v3335
    %v3337 = vpop.f32.mrb[0].mxu0
    %3338 = vdwg.mxu0
    %v3340 = vsel %vm3261, %v3183, 0
    %v3343 = vsel %vm3265, %v3205, 0
    %3345 = vmatprep.subr.mxu0 0.0
    %3346 = vmatpush1.msra.mxu0 %v3184
    %3347 = vmatprep.subr.mxu0 0.0
    %3348 = vmatpush1.msra.mxu0 %v3185
    %3349 = vmatprep.subr.mxu0 0.0
    %3350 = vmatpush1.msra.mxu0 %v3186
    %3351 = vmatprep.subr.mxu0 0.0
    %3352 = vmatpush1.msra.mxu0 %v3187
    %3353 = vmatprep.subr.mxu0 0.0
    %3354 = vmatpush1.msra.mxu0 %v3188
    %3355 = vmatprep.subr.mxu0 0.0
    %3356 = vmatpush1.msra.mxu0 %v3189
    %3357 = vmatprep.subr.mxu0 0.0
    %3358 = vmatpush1.msra.mxu0 %v3190
    %3359 = vmatprep.subr.mxu0 0.0
    %3360 = vmatpush1.msra.mxu0 %v3191
    %3361 = vmatprep.subr.mxu0 0.0
    %3362 = vmatpush1.msra.mxu0 %v3192
    %3363 = vmatprep.subr.mxu0 0.0
    %3364 = vmatpush1.msra.mxu0 %v3193
    %3365 = vmatprep.subr.mxu0 0.0
    %3366 = vmatpush1.msra.mxu0 %v3194
    %3367 = vmatprep.subr.mxu0 0.0
    %3368 = vmatpush1.msra.mxu0 %v3195
    %3369 = vmatprep.subr.mxu0 0.0
    %3370 = vmatpush1.msra.mxu0 %v3196
    %3371 = vmatprep.subr.mxu0 0.0
    %3372 = vmatpush1.msra.mxu0 %v3197
    %3373 = vmatprep.subr.mxu0 0.0
    %3374 = vmatpush1.msra.mxu0 %v3198
    %3375 = vmatprep.subr.mxu0 0.0
    %3376 = vmatpush1.msra.mxu0 %v3199
    %3377 = vmatprep.subr.mxu0 0.0
    %3378 = vmatpush1.msra.mxu0 %v3200
    %3379 = vmatprep.subr.mxu0 0.0
    %3380 = vmatpush1.msra.mxu0 %v3201
    %3381 = vmatprep.subr.mxu0 0.0
    %3382 = vmatpush1.msra.mxu0 %v3202
    %3383 = vmatprep.subr.mxu0 0.0
    %3384 = vmatpush1.msra.mxu0 %v3203
    %3385 = vmatprep.subr.mxu0 0.0
    %3386 = vmatpush1.msra.mxu0 %v3204
    %3387 = vmatprep.subr.mxu0 0.0
    %3388 = vmatpush1.msra.mxu0 %v3343
    %3389 = vmatprep.subr.mxu0 0.0
    %3390 = vmatpush1.msra.mxu0 0.0
    %3391 = vmatprep.subr.mxu0 0.0
    %3392 = vmatpush1.msra.mxu0 0.0
    %3393 = vmatprep.subr.mxu0 0.0
    %3394 = vmatpush1.msra.mxu0 0.0
    %3395 = vmatprep.subr.mxu0 0.0
    %3396 = vmatpush1.msra.mxu0 0.0
    %3397 = vmatprep.subr.mxu0 0.0
    %3398 = vmatpush1.msra.mxu0 0.0
    %3399 = vmatprep.subr.mxu0 0.0
    %3400 = vmatpush1.msra.mxu0 0.0
    %3401 = vmatprep.subr.mxu0 0.0
    %3402 = vmatpush1.msra.mxu0 0.0
    %3403 = vmatprep.subr.mxu0 0.0
    %3404 = vmatpush1.msra.mxu0 0.0
    %3405 = vmatprep.subr.mxu0 0.0
    %3406 = vmatpush1.msra.mxu0 0.0
    %3407 = vmatprep.subr.mxu0 0.0
    %3408 = vmatpush1.msra.mxu0 0.0
    %3409 = vmatprep.mubr.f32.mxu0 %v3340
    %3410 = vmatmul.mubr.f32.gmra.mrb[0].mxu0 %v3182
    %v3411 = vpop.f32.mrb[0].mxu0
    %v3412 = vadd.f32 %v3336, %v3411
    %v3413 = vpop.f32.mrb[0].mxu0
    %3414 = vdwg.mxu0
    %v3415 = vld [vmem:[%s63] ss:$8 sm:$0x3]
    %s3416 = scalar_lea.vmem [#allocation2], 18
    %v3417 = vld [vmem:[%s3416] ss:$8 sm:$0x3]
    %v3419 = vlaneseq
    %v3420 = vshrl.u32 %v3419, 7
    %v3421 = vsub.s32 0, %v3420
    %v3422 = vrot.slane %v3415, %v3421
    %v3423 = vlaneseq
    %v3424 = vshrl.u32 %v3423, 7
    %v3425 = vsub.s32 1, %v3424
    %v3426 = vrot.slane %v3415, %v3425
    %v3430 = vlaneseq
    %v3431 = vshrl.u32 %v3430, 7
    %v3432 = vsub.s32 0, %v3431
    %v3433 = vrot.slane %v3417, %v3432
    %v3434 = vlaneseq
    %v3435 = vshrl.u32 %v3434, 7
    %v3436 = vsub.s32 1, %v3435
    %v3437 = vrot.slane %v3417, %v3436
    %3438 = vrot.lane.b32.xlu0 %v3433, 60
    %v3439 = vpop.permute.xlu0 %3438
    %3440 = vrot.lane.b32.xlu0 %v3437, 60
    %v3441 = vpop.permute.xlu0 %3440
    %v3442 = vsel %vm651, %v3439, %v3441
    %v3445 = vsel %vm339, %v3422, %v3442
    %v3446 = vsel %vm339, %v3426, %v3441
    %s3447 = scalar_lea.vmem %s7, 352
    %v3448 = vld [vmem:[%s3447] sm:$0xff]
    %v3449 = vld [vmem:[%s3447 + $0x8] sm:$0xff]
    %v3450 = vld [vmem:[%s3447 + $0x10] sm:$0xff]
    %v3451 = vld [vmem:[%s3447 + $0x18] sm:$0xff]
    %v3452 = vld [vmem:[%s3447 + $0x20] sm:$0xff]
    %v3453 = vld [vmem:[%s3447 + $0x28] sm:$0xff]
    %v3454 = vld [vmem:[%s3447 + $0x30] sm:$0xff]
    %v3455 = vld [vmem:[%s3447 + $0x38] sm:$0xff]
    %v3456 = vld [vmem:[%s3447 + $0x40] sm:$0xff]
    %v3457 = vld [vmem:[%s3447 + $0x48] sm:$0xff]
    %v3458 = vld [vmem:[%s3447 + $0x50] sm:$0xff]
    %v3459 = vld [vmem:[%s3447 + $0x58] sm:$0xff]
    %v3460 = vld [vmem:[%s3447 + $0x60] sm:$0xff]
    %v3461 = vld [vmem:[%s3447 + $0x68] sm:$0xff]
    %v3462 = vld [vmem:[%s3447 + $0x70] sm:$0xff]
    %v3463 = vld [vmem:[%s3447 + $0x78] sm:$0xff]
    %v3464 = vld [vmem:[%s3447 + $0x80] sm:$0xff]
    %v3465 = vld [vmem:[%s3447 + $0x88] sm:$0xff]
    %v3466 = vld [vmem:[%s3447 + $0x90] sm:$0xff]
    %v3467 = vld [vmem:[%s3447 + $0x98] sm:$0xff]
    %v3468 = vld [vmem:[%s3447 + $0xa0] sm:$0xff]
    %v3469 = vld [vmem:[%s3447 + $0xa8] sm:$0xf]
    %v3471 = vsel %vm3261, %v3446, 0
    %v3474 = vsel %vm3265, %v3469, 0
    %3476 = vmatprep.subr.mxu0 0.0
    %3477 = vmatpush1.msra.mxu0 %v3448
    %3478 = vmatprep.subr.mxu0 0.0
    %3479 = vmatpush1.msra.mxu0 %v3449
    %3480 = vmatprep.subr.mxu0 0.0
    %3481 = vmatpush1.msra.mxu0 %v3450
    %3482 = vmatprep.subr.mxu0 0.0
    %3483 = vmatpush1.msra.mxu0 %v3451
    %3484 = vmatprep.subr.mxu0 0.0
    %3485 = vmatpush1.msra.mxu0 %v3452
    %3486 = vmatprep.subr.mxu0 0.0
    %3487 = vmatpush1.msra.mxu0 %v3453
    %3488 = vmatprep.subr.mxu0 0.0
    %3489 = vmatpush1.msra.mxu0 %v3454
    %3490 = vmatprep.subr.mxu0 0.0
    %3491 = vmatpush1.msra.mxu0 %v3455
    %3492 = vmatprep.subr.mxu0 0.0
    %3493 = vmatpush1.msra.mxu0 %v3456
    %3494 = vmatprep.subr.mxu0 0.0
    %3495 = vmatpush1.msra.mxu0 %v3457
    %3496 = vmatprep.subr.mxu0 0.0
    %3497 = vmatpush1.msra.mxu0 %v3458
    %3498 = vmatprep.subr.mxu0 0.0
    %3499 = vmatpush1.msra.mxu0 %v3459
    %3500 = vmatprep.subr.mxu0 0.0
    %3501 = vmatpush1.msra.mxu0 %v3460
    %3502 = vmatprep.subr.mxu0 0.0
    %3503 = vmatpush1.msra.mxu0 %v3461
    %3504 = vmatprep.subr.mxu0 0.0
    %3505 = vmatpush1.msra.mxu0 %v3462
    %3506 = vmatprep.subr.mxu0 0.0
    %3507 = vmatpush1.msra.mxu0 %v3463
    %3508 = vmatprep.subr.mxu0 0.0
    %3509 = vmatpush1.msra.mxu0 %v3464
    %3510 = vmatprep.subr.mxu0 0.0
    %3511 = vmatpush1.msra.mxu0 %v3465
    %3512 = vmatprep.subr.mxu0 0.0
    %3513 = vmatpush1.msra.mxu0 %v3466
    %3514 = vmatprep.subr.mxu0 0.0
    %3515 = vmatpush1.msra.mxu0 %v3467
    %3516 = vmatprep.subr.mxu0 0.0
    %3517 = vmatpush1.msra.mxu0 %v3468
    %3518 = vmatprep.subr.mxu0 0.0
    %3519 = vmatpush1.msra.mxu0 %v3474
    %3520 = vmatprep.subr.mxu0 0.0
    %3521 = vmatpush1.msra.mxu0 0.0
    %3522 = vmatprep.subr.mxu0 0.0
    %3523 = vmatpush1.msra.mxu0 0.0
    %3524 = vmatprep.subr.mxu0 0.0
    %3525 = vmatpush1.msra.mxu0 0.0
    %3526 = vmatprep.subr.mxu0 0.0
    %3527 = vmatpush1.msra.mxu0 0.0
    %3528 = vmatprep.subr.mxu0 0.0
    %3529 = vmatpush1.msra.mxu0 0.0
    %3530 = vmatprep.subr.mxu0 0.0
    %3531 = vmatpush1.msra.mxu0 0.0
    %3532 = vmatprep.subr.mxu0 0.0
    %3533 = vmatpush1.msra.mxu0 0.0
    %3534 = vmatprep.subr.mxu0 0.0
    %3535 = vmatpush1.msra.mxu0 0.0
    %3536 = vmatprep.subr.mxu0 0.0
    %3537 = vmatpush1.msra.mxu0 0.0
    %3538 = vmatprep.subr.mxu0 0.0
    %3539 = vmatpush1.msra.mxu0 0.0
    %3540 = vmatprep.mubr.f32.mxu0 %v3471
    %3541 = vmatmul.mubr.f32.gmra.mrb[0].mxu0 %v3445
    %v3542 = vpop.f32.mrb[0].mxu0
    %v3543 = vadd.f32 0.0, %v3542
    %v3544 = vpop.f32.mrb[0].mxu0
    %3545 = vdwg.mxu0
    %v3546 = vadd.f32 %v3412, %v3543
    %v3547 = vld [vmem:[%s74] ss:$8 sm:$0x3]
    %s3548 = scalar_lea.vmem [#allocation2], 19
    %v3549 = vld [vmem:[%s3548] ss:$8 sm:$0x3]
    %v3551 = vlaneseq
    %v3552 = vshrl.u32 %v3551, 7
    %v3553 = vsub.s32 0, %v3552
    %v3554 = vrot.slane %v3547, %v3553
    %v3555 = vlaneseq
    %v3556 = vshrl.u32 %v3555, 7
    %v3557 = vsub.s32 1, %v3556
    %v3558 = vrot.slane %v3547, %v3557
    %v3562 = vlaneseq
    %v3563 = vshrl.u32 %v3562, 7
    %v3564 = vsub.s32 0, %v3563
    %v3565 = vrot.slane %v3549, %v3564
    %v3566 = vlaneseq
    %v3567 = vshrl.u32 %v3566, 7
    %v3568 = vsub.s32 1, %v3567
    %v3569 = vrot.slane %v3549, %v3568
    %3570 = vrot.lane.b32.xlu0 %v3565, 60
    %v3571 = vpop.permute.xlu0 %3570
    %3572 = vrot.lane.b32.xlu0 %v3569, 60
    %v3573 = vpop.permute.xlu0 %3572
    %v3574 = vsel %vm651, %v3571, %v3573
    %v3577 = vsel %vm339, %v3554, %v3574
    %v3578 = vsel %vm339, %v3558, %v3573
    %s3579 = scalar_lea.vmem %s7, 528
    %v3580 = vld [vmem:[%s3579] sm:$0xff]
    %v3581 = vld [vmem:[%s3579 + $0x8] sm:$0xff]
    %v3582 = vld [vmem:[%s3579 + $0x10] sm:$0xff]
    %v3583 = vld [vmem:[%s3579 + $0x18] sm:$0xff]
    %v3584 = vld [vmem:[%s3579 + $0x20] sm:$0xff]
    %v3585 = vld [vmem:[%s3579 + $0x28] sm:$0xff]
    %v3586 = vld [vmem:[%s3579 + $0x30] sm:$0xff]
    %v3587 = vld [vmem:[%s3579 + $0x38] sm:$0xff]
    %v3588 = vld [vmem:[%s3579 + $0x40] sm:$0xff]
    %v3589 = vld [vmem:[%s3579 + $0x48] sm:$0xff]
    %v3590 = vld [vmem:[%s3579 + $0x50] sm:$0xff]
    %v3591 = vld [vmem:[%s3579 + $0x58] sm:$0xff]
    %v3592 = vld [vmem:[%s3579 + $0x60] sm:$0xff]
    %v3593 = vld [vmem:[%s3579 + $0x68] sm:$0xff]
    %v3594 = vld [vmem:[%s3579 + $0x70] sm:$0xff]
    %v3595 = vld [vmem:[%s3579 + $0x78] sm:$0xff]
    %v3596 = vld [vmem:[%s3579 + $0x80] sm:$0xff]
    %v3597 = vld [vmem:[%s3579 + $0x88] sm:$0xff]
    %v3598 = vld [vmem:[%s3579 + $0x90] sm:$0xff]
    %v3599 = vld [vmem:[%s3579 + $0x98] sm:$0xff]
    %v3600 = vld [vmem:[%s3579 + $0xa0] sm:$0xff]
    %v3601 = vld [vmem:[%s3579 + $0xa8] sm:$0xf]
    %v3603 = vsel %vm3261, %v3578, 0
    %v3606 = vsel %vm3265, %v3601, 0
    %3608 = vmatprep.subr.mxu0 0.0
    %3609 = vmatpush1.msra.mxu0 %v3580
    %3610 = vmatprep.subr.mxu0 0.0
    %3611 = vmatpush1.msra.mxu0 %v3581
    %3612 = vmatprep.subr.mxu0 0.0
    %3613 = vmatpush1.msra.mxu0 %v3582
    %3614 = vmatprep.subr.mxu0 0.0
    %3615 = vmatpush1.msra.mxu0 %v3583
    %3616 = vmatprep.subr.mxu0 0.0
    %3617 = vmatpush1.msra.mxu0 %v3584
    %3618 = vmatprep.subr.mxu0 0.0
    %3619 = vmatpush1.msra.mxu0 %v3585
    %3620 = vmatprep.subr.mxu0 0.0
    %3621 = vmatpush1.msra.mxu0 %v3586
    %3622 = vmatprep.subr.mxu0 0.0
    %3623 = vmatpush1.msra.mxu0 %v3587
    %3624 = vmatprep.subr.mxu0 0.0
    %3625 = vmatpush1.msra.mxu0 %v3588
    %3626 = vmatprep.subr.mxu0 0.0
    %3627 = vmatpush1.msra.mxu0 %v3589
    %3628 = vmatprep.subr.mxu0 0.0
    %3629 = vmatpush1.msra.mxu0 %v3590
    %3630 = vmatprep.subr.mxu0 0.0
    %3631 = vmatpush1.msra.mxu0 %v3591
    %3632 = vmatprep.subr.mxu0 0.0
    %3633 = vmatpush1.msra.mxu0 %v3592
    %3634 = vmatprep.subr.mxu0 0.0
    %3635 = vmatpush1.msra.mxu0 %v3593
    %3636 = vmatprep.subr.mxu0 0.0
    %3637 = vmatpush1.msra.mxu0 %v3594
    %3638 = vmatprep.subr.mxu0 0.0
    %3639 = vmatpush1.msra.mxu0 %v3595
    %3640 = vmatprep.subr.mxu0 0.0
    %3641 = vmatpush1.msra.mxu0 %v3596
    %3642 = vmatprep.subr.mxu0 0.0
    %3643 = vmatpush1.msra.mxu0 %v3597
    %3644 = vmatprep.subr.mxu0 0.0
    %3645 = vmatpush1.msra.mxu0 %v3598
    %3646 = vmatprep.subr.mxu0 0.0
    %3647 = vmatpush1.msra.mxu0 %v3599
    %3648 = vmatprep.subr.mxu0 0.0
    %3649 = vmatpush1.msra.mxu0 %v3600
    %3650 = vmatprep.subr.mxu0 0.0
    %3651 = vmatpush1.msra.mxu0 %v3606
    %3652 = vmatprep.subr.mxu0 0.0
    %3653 = vmatpush1.msra.mxu0 0.0
    %3654 = vmatprep.subr.mxu0 0.0
    %3655 = vmatpush1.msra.mxu0 0.0
    %3656 = vmatprep.subr.mxu0 0.0
    %3657 = vmatpush1.msra.mxu0 0.0
    %3658 = vmatprep.subr.mxu0 0.0
    %3659 = vmatpush1.msra.mxu0 0.0
    %3660 = vmatprep.subr.mxu0 0.0
    %3661 = vmatpush1.msra.mxu0 0.0
    %3662 = vmatprep.subr.mxu0 0.0
    %3663 = vmatpush1.msra.mxu0 0.0
    %3664 = vmatprep.subr.mxu0 0.0
    %3665 = vmatpush1.msra.mxu0 0.0
    %3666 = vmatprep.subr.mxu0 0.0
    %3667 = vmatpush1.msra.mxu0 0.0
    %3668 = vmatprep.subr.mxu0 0.0
    %3669 = vmatpush1.msra.mxu0 0.0
    %3670 = vmatprep.subr.mxu0 0.0
    %3671 = vmatpush1.msra.mxu0 0.0
    %3672 = vmatprep.mubr.f32.mxu0 %v3603
    %3673 = vmatmul.mubr.f32.gmra.mrb[0].mxu0 %v3577
    %v3674 = vpop.f32.mrb[0].mxu0
    %v3675 = vadd.f32 0.0, %v3674
    %v3676 = vpop.f32.mrb[0].mxu0
    %3677 = vdwg.mxu0
    %v3678 = vadd.f32 %v3546, %v3675
    %v3679 = vld [vmem:[%s85] ss:$8 sm:$0x3]
    %s3680 = scalar_lea.vmem [#allocation2], 20
    %v3681 = vld [vmem:[%s3680] ss:$8 sm:$0x3]
    %v3683 = vlaneseq
    %v3684 = vshrl.u32 %v3683, 7
    %v3685 = vsub.s32 0, %v3684
    %v3686 = vrot.slane %v3679, %v3685
    %v3687 = vlaneseq
    %v3688 = vshrl.u32 %v3687, 7
    %v3689 = vsub.s32 1, %v3688
    %v3690 = vrot.slane %v3679, %v3689
    %v3694 = vlaneseq
    %v3695 = vshrl.u32 %v3694, 7
    %v3696 = vsub.s32 0, %v3695
    %v3697 = vrot.slane %v3681, %v3696
    %v3698 = vlaneseq
    %v3699 = vshrl.u32 %v3698, 7
    %v3700 = vsub.s32 1, %v3699
    %v3701 = vrot.slane %v3681, %v3700
    %3702 = vrot.lane.b32.xlu0 %v3697, 60
    %v3703 = vpop.permute.xlu0 %3702
    %3704 = vrot.lane.b32.xlu0 %v3701, 60
    %v3705 = vpop.permute.xlu0 %3704
    %v3706 = vsel %vm651, %v3703, %v3705
    %v3709 = vsel %vm339, %v3686, %v3706
    %v3710 = vsel %vm339, %v3690, %v3705
    %s3711 = scalar_lea.vmem %s7, 704
    %v3712 = vld [vmem:[%s3711] sm:$0xff]
    %v3713 = vld [vmem:[%s3711 + $0x8] sm:$0xff]
    %v3714 = vld [vmem:[%s3711 + $0x10] sm:$0xff]
    %v3715 = vld [vmem:[%s3711 + $0x18] sm:$0xff]
    %v3716 = vld [vmem:[%s3711 + $0x20] sm:$0xff]
    %v3717 = vld [vmem:[%s3711 + $0x28] sm:$0xff]
    %v3718 = vld [vmem:[%s3711 + $0x30] sm:$0xff]
    %v3719 = vld [vmem:[%s3711 + $0x38] sm:$0xff]
    %v3720 = vld [vmem:[%s3711 + $0x40] sm:$0xff]
    %v3721 = vld [vmem:[%s3711 + $0x48] sm:$0xff]
    %v3722 = vld [vmem:[%s3711 + $0x50] sm:$0xff]
    %v3723 = vld [vmem:[%s3711 + $0x58] sm:$0xff]
    %v3724 = vld [vmem:[%s3711 + $0x60] sm:$0xff]
    %v3725 = vld [vmem:[%s3711 + $0x68] sm:$0xff]
    %v3726 = vld [vmem:[%s3711 + $0x70] sm:$0xff]
    %v3727 = vld [vmem:[%s3711 + $0x78] sm:$0xff]
    %v3728 = vld [vmem:[%s3711 + $0x80] sm:$0xff]
    %v3729 = vld [vmem:[%s3711 + $0x88] sm:$0xff]
    %v3730 = vld [vmem:[%s3711 + $0x90] sm:$0xff]
    %v3731 = vld [vmem:[%s3711 + $0x98] sm:$0xff]
    %v3732 = vld [vmem:[%s3711 + $0xa0] sm:$0xff]
    %v3733 = vld [vmem:[%s3711 + $0xa8] sm:$0xf]
    %v3735 = vsel %vm3261, %v3710, 0
    %v3738 = vsel %vm3265, %v3733, 0
    %3740 = vmatprep.subr.mxu0 0.0
    %3741 = vmatpush1.msra.mxu0 %v3712
    %3742 = vmatprep.subr.mxu0 0.0
    %3743 = vmatpush1.msra.mxu0 %v3713
    %3744 = vmatprep.subr.mxu0 0.0
    %3745 = vmatpush1.msra.mxu0 %v3714
    %3746 = vmatprep.subr.mxu0 0.0
    %3747 = vmatpush1.msra.mxu0 %v3715
    %3748 = vmatprep.subr.mxu0 0.0
    %3749 = vmatpush1.msra.mxu0 %v3716
    %3750 = vmatprep.subr.mxu0 0.0
    %3751 = vmatpush1.msra.mxu0 %v3717
    %3752 = vmatprep.subr.mxu0 0.0
    %3753 = vmatpush1.msra.mxu0 %v3718
    %3754 = vmatprep.subr.mxu0 0.0
    %3755 = vmatpush1.msra.mxu0 %v3719
    %3756 = vmatprep.subr.mxu0 0.0
    %3757 = vmatpush1.msra.mxu0 %v3720
    %3758 = vmatprep.subr.mxu0 0.0
    %3759 = vmatpush1.msra.mxu0 %v3721
    %3760 = vmatprep.subr.mxu0 0.0
    %3761 = vmatpush1.msra.mxu0 %v3722
    %3762 = vmatprep.subr.mxu0 0.0
    %3763 = vmatpush1.msra.mxu0 %v3723
    %3764 = vmatprep.subr.mxu0 0.0
    %3765 = vmatpush1.msra.mxu0 %v3724
    %3766 = vmatprep.subr.mxu0 0.0
    %3767 = vmatpush1.msra.mxu0 %v3725
    %3768 = vmatprep.subr.mxu0 0.0
    %3769 = vmatpush1.msra.mxu0 %v3726
    %3770 = vmatprep.subr.mxu0 0.0
    %3771 = vmatpush1.msra.mxu0 %v3727
    %3772 = vmatprep.subr.mxu0 0.0
    %3773 = vmatpush1.msra.mxu0 %v3728
    %3774 = vmatprep.subr.mxu0 0.0
    %3775 = vmatpush1.msra.mxu0 %v3729
    %3776 = vmatprep.subr.mxu0 0.0
    %3777 = vmatpush1.msra.mxu0 %v3730
    %3778 = vmatprep.subr.mxu0 0.0
    %3779 = vmatpush1.msra.mxu0 %v3731
    %3780 = vmatprep.subr.mxu0 0.0
    %3781 = vmatpush1.msra.mxu0 %v3732
    %3782 = vmatprep.subr.mxu0 0.0
    %3783 = vmatpush1.msra.mxu0 %v3738
    %3784 = vmatprep.subr.mxu0 0.0
    %3785 = vmatpush1.msra.mxu0 0.0
    %3786 = vmatprep.subr.mxu0 0.0
    %3787 = vmatpush1.msra.mxu0 0.0
    %3788 = vmatprep.subr.mxu0 0.0
    %3789 = vmatpush1.msra.mxu0 0.0
    %3790 = vmatprep.subr.mxu0 0.0
    %3791 = vmatpush1.msra.mxu0 0.0
    %3792 = vmatprep.subr.mxu0 0.0
    %3793 = vmatpush1.msra.mxu0 0.0
    %3794 = vmatprep.subr.mxu0 0.0
    %3795 = vmatpush1.msra.mxu0 0.0
    %3796 = vmatprep.subr.mxu0 0.0
    %3797 = vmatpush1.msra.mxu0 0.0
    %3798 = vmatprep.subr.mxu0 0.0
    %3799 = vmatpush1.msra.mxu0 0.0
    %3800 = vmatprep.subr.mxu0 0.0
    %3801 = vmatpush1.msra.mxu0 0.0
    %3802 = vmatprep.subr.mxu0 0.0
    %3803 = vmatpush1.msra.mxu0 0.0
    %3804 = vmatprep.mubr.f32.mxu0 %v3735
    %3805 = vmatmul.mubr.f32.gmra.mrb[0].mxu0 %v3709
    %v3806 = vpop.f32.mrb[0].mxu0
    %v3807 = vadd.f32 0.0, %v3806
    %v3808 = vpop.f32.mrb[0].mxu0
    %3809 = vdwg.mxu0
    %v3810 = vadd.f32 %v3678, %v3807
    %v3811 = vld [vmem:[%s96] ss:$8 sm:$0x3]
    %s3812 = scalar_lea.vmem [#allocation2], 21
    %v3813 = vld [vmem:[%s3812] ss:$8 sm:$0x3]
    %v3815 = vlaneseq
    %v3816 = vshrl.u32 %v3815, 7
    %v3817 = vsub.s32 0, %v3816
    %v3818 = vrot.slane %v3811, %v3817
    %v3819 = vlaneseq
    %v3820 = vshrl.u32 %v3819, 7
    %v3821 = vsub.s32 1, %v3820
    %v3822 = vrot.slane %v3811, %v3821
    %v3826 = vlaneseq
    %v3827 = vshrl.u32 %v3826, 7
    %v3828 = vsub.s32 0, %v3827
    %v3829 = vrot.slane %v3813, %v3828
    %v3830 = vlaneseq
    %v3831 = vshrl.u32 %v3830, 7
    %v3832 = vsub.s32 1, %v3831
    %v3833 = vrot.slane %v3813, %v3832
    %3834 = vrot.lane.b32.xlu0 %v3829, 60
    %v3835 = vpop.permute.xlu0 %3834
    %3836 = vrot.lane.b32.xlu0 %v3833, 60
    %v3837 = vpop.permute.xlu0 %3836
    %v3838 = vsel %vm651, %v3835, %v3837
    %v3841 = vsel %vm339, %v3818, %v3838
    %v3842 = vsel %vm339, %v3822, %v3837
    %s3843 = scalar_lea.vmem %s7, 880
    %v3844 = vld [vmem:[%s3843] sm:$0xff]
    %v3845 = vld [vmem:[%s3843 + $0x8] sm:$0xff]
    %v3846 = vld [vmem:[%s3843 + $0x10] sm:$0xff]
    %v3847 = vld [vmem:[%s3843 + $0x18] sm:$0xff]
    %v3848 = vld [vmem:[%s3843 + $0x20] sm:$0xff]
    %v3849 = vld [vmem:[%s3843 + $0x28] sm:$0xff]
    %v3850 = vld [vmem:[%s3843 + $0x30] sm:$0xff]
    %v3851 = vld [vmem:[%s3843 + $0x38] sm:$0xff]
    %v3852 = vld [vmem:[%s3843 + $0x40] sm:$0xff]
    %v3853 = vld [vmem:[%s3843 + $0x48] sm:$0xff]
    %v3854 = vld [vmem:[%s3843 + $0x50] sm:$0xff]
    %v3855 = vld [vmem:[%s3843 + $0x58] sm:$0xff]
    %v3856 = vld [vmem:[%s3843 + $0x60] sm:$0xff]
    %v3857 = vld [vmem:[%s3843 + $0x68] sm:$0xff]
    %v3858 = vld [vmem:[%s3843 + $0x70] sm:$0xff]
    %v3859 = vld [vmem:[%s3843 + $0x78] sm:$0xff]
    %v3860 = vld [vmem:[%s3843 + $0x80] sm:$0xff]
    %v3861 = vld [vmem:[%s3843 + $0x88] sm:$0xff]
    %v3862 = vld [vmem:[%s3843 + $0x90] sm:$0xff]
    %v3863 = vld [vmem:[%s3843 + $0x98] sm:$0xff]
    %v3864 = vld [vmem:[%s3843 + $0xa0] sm:$0xff]
    %v3865 = vld [vmem:[%s3843 + $0xa8] sm:$0xf]
    %v3867 = vsel %vm3261, %v3842, 0
    %v3870 = vsel %vm3265, %v3865, 0
    %3872 = vmatprep.subr.mxu0 0.0
    %3873 = vmatpush1.msra.mxu0 %v3844
    %3874 = vmatprep.subr.mxu0 0.0
    %3875 = vmatpush1.msra.mxu0 %v3845
    %3876 = vmatprep.subr.mxu0 0.0
    %3877 = vmatpush1.msra.mxu0 %v3846
    %3878 = vmatprep.subr.mxu0 0.0
    %3879 = vmatpush1.msra.mxu0 %v3847
    %3880 = vmatprep.subr.mxu0 0.0
    %3881 = vmatpush1.msra.mxu0 %v3848
    %3882 = vmatprep.subr.mxu0 0.0
    %3883 = vmatpush1.msra.mxu0 %v3849
    %3884 = vmatprep.subr.mxu0 0.0
    %3885 = vmatpush1.msra.mxu0 %v3850
    %3886 = vmatprep.subr.mxu0 0.0
    %3887 = vmatpush1.msra.mxu0 %v3851
    %3888 = vmatprep.subr.mxu0 0.0
    %3889 = vmatpush1.msra.mxu0 %v3852
    %3890 = vmatprep.subr.mxu0 0.0
    %3891 = vmatpush1.msra.mxu0 %v3853
    %3892 = vmatprep.subr.mxu0 0.0
    %3893 = vmatpush1.msra.mxu0 %v3854
    %3894 = vmatprep.subr.mxu0 0.0
    %3895 = vmatpush1.msra.mxu0 %v3855
    %3896 = vmatprep.subr.mxu0 0.0
    %3897 = vmatpush1.msra.mxu0 %v3856
    %3898 = vmatprep.subr.mxu0 0.0
    %3899 = vmatpush1.msra.mxu0 %v3857
    %3900 = vmatprep.subr.mxu0 0.0
    %3901 = vmatpush1.msra.mxu0 %v3858
    %3902 = vmatprep.subr.mxu0 0.0
    %3903 = vmatpush1.msra.mxu0 %v3859
    %3904 = vmatprep.subr.mxu0 0.0
    %3905 = vmatpush1.msra.mxu0 %v3860
    %3906 = vmatprep.subr.mxu0 0.0
    %3907 = vmatpush1.msra.mxu0 %v3861
    %3908 = vmatprep.subr.mxu0 0.0
    %3909 = vmatpush1.msra.mxu0 %v3862
    %3910 = vmatprep.subr.mxu0 0.0
    %3911 = vmatpush1.msra.mxu0 %v3863
    %3912 = vmatprep.subr.mxu0 0.0
    %3913 = vmatpush1.msra.mxu0 %v3864
    %3914 = vmatprep.subr.mxu0 0.0
    %3915 = vmatpush1.msra.mxu0 %v3870
    %3916 = vmatprep.subr.mxu0 0.0
    %3917 = vmatpush1.msra.mxu0 0.0
    %3918 = vmatprep.subr.mxu0 0.0
    %3919 = vmatpush1.msra.mxu0 0.0
    %3920 = vmatprep.subr.mxu0 0.0
    %3921 = vmatpush1.msra.mxu0 0.0
    %3922 = vmatprep.subr.mxu0 0.0
    %3923 = vmatpush1.msra.mxu0 0.0
    %3924 = vmatprep.subr.mxu0 0.0
    %3925 = vmatpush1.msra.mxu0 0.0
    %3926 = vmatprep.subr.mxu0 0.0
    %3927 = vmatpush1.msra.mxu0 0.0
    %3928 = vmatprep.subr.mxu0 0.0
    %3929 = vmatpush1.msra.mxu0 0.0
    %3930 = vmatprep.subr.mxu0 0.0
    %3931 = vmatpush1.msra.mxu0 0.0
    %3932 = vmatprep.subr.mxu0 0.0
    %3933 = vmatpush1.msra.mxu0 0.0
    %3934 = vmatprep.subr.mxu0 0.0
    %3935 = vmatpush1.msra.mxu0 0.0
    %3936 = vmatprep.mubr.f32.mxu0 %v3867
    %3937 = vmatmul.mubr.f32.gmra.mrb[0].mxu0 %v3841
    %v3938 = vpop.f32.mrb[0].mxu0
    %v3939 = vadd.f32 0.0, %v3938
    %v3940 = vpop.f32.mrb[0].mxu0
    %3941 = vdwg.mxu0
    %v3942 = vadd.f32 %v3810, %v3939
    %v3943 = vld [vmem:[%s107] ss:$8 sm:$0x3]
    %s3944 = scalar_lea.vmem [#allocation2], 22
    %v3945 = vld [vmem:[%s3944] ss:$8 sm:$0x3]
    %v3947 = vlaneseq
    %v3948 = vshrl.u32 %v3947, 7
    %v3949 = vsub.s32 0, %v3948
    %v3950 = vrot.slane %v3943, %v3949
    %v3951 = vlaneseq
    %v3952 = vshrl.u32 %v3951, 7
    %v3953 = vsub.s32 1, %v3952
    %v3954 = vrot.slane %v3943, %v3953
    %v3958 = vlaneseq
    %v3959 = vshrl.u32 %v3958, 7
    %v3960 = vsub.s32 0, %v3959
    %v3961 = vrot.slane %v3945, %v3960
    %v3962 = vlaneseq
    %v3963 = vshrl.u32 %v3962, 7
    %v3964 = vsub.s32 1, %v3963
    %v3965 = vrot.slane %v3945, %v3964
    %3966 = vrot.lane.b32.xlu0 %v3961, 60
    %v3967 = vpop.permute.xlu0 %3966
    %3968 = vrot.lane.b32.xlu0 %v3965, 60
    %v3969 = vpop.permute.xlu0 %3968
    %v3970 = vsel %vm651, %v3967, %v3969
    %v3973 = vsel %vm339, %v3950, %v3970
    %v3974 = vsel %vm339, %v3954, %v3969
    %s3975 = scalar_lea.vmem %s7, 1056
    %v3976 = vld [vmem:[%s3975] sm:$0xff]
    %v3977 = vld [vmem:[%s3975 + $0x8] sm:$0xff]
    %v3978 = vld [vmem:[%s3975 + $0x10] sm:$0xff]
    %v3979 = vld [vmem:[%s3975 + $0x18] sm:$0xff]
    %v3980 = vld [vmem:[%s3975 + $0x20] sm:$0xff]
    %v3981 = vld [vmem:[%s3975 + $0x28] sm:$0xff]
    %v3982 = vld [vmem:[%s3975 + $0x30] sm:$0xff]
    %v3983 = vld [vmem:[%s3975 + $0x38] sm:$0xff]
    %v3984 = vld [vmem:[%s3975 + $0x40] sm:$0xff]
    %v3985 = vld [vmem:[%s3975 + $0x48] sm:$0xff]
    %v3986 = vld [vmem:[%s3975 + $0x50] sm:$0xff]
    %v3987 = vld [vmem:[%s3975 + $0x58] sm:$0xff]
    %v3988 = vld [vmem:[%s3975 + $0x60] sm:$0xff]
    %v3989 = vld [vmem:[%s3975 + $0x68] sm:$0xff]
    %v3990 = vld [vmem:[%s3975 + $0x70] sm:$0xff]
    %v3991 = vld [vmem:[%s3975 + $0x78] sm:$0xff]
    %v3992 = vld [vmem:[%s3975 + $0x80] sm:$0xff]
    %v3993 = vld [vmem:[%s3975 + $0x88] sm:$0xff]
    %v3994 = vld [vmem:[%s3975 + $0x90] sm:$0xff]
    %v3995 = vld [vmem:[%s3975 + $0x98] sm:$0xff]
    %v3996 = vld [vmem:[%s3975 + $0xa0] sm:$0xff]
    %v3997 = vld [vmem:[%s3975 + $0xa8] sm:$0xf]
    %v3999 = vsel %vm3261, %v3974, 0
    %v4002 = vsel %vm3265, %v3997, 0
    %4004 = vmatprep.subr.mxu0 0.0
    %4005 = vmatpush1.msra.mxu0 %v3976
    %4006 = vmatprep.subr.mxu0 0.0
    %4007 = vmatpush1.msra.mxu0 %v3977
    %4008 = vmatprep.subr.mxu0 0.0
    %4009 = vmatpush1.msra.mxu0 %v3978
    %4010 = vmatprep.subr.mxu0 0.0
    %4011 = vmatpush1.msra.mxu0 %v3979
    %4012 = vmatprep.subr.mxu0 0.0
    %4013 = vmatpush1.msra.mxu0 %v3980
    %4014 = vmatprep.subr.mxu0 0.0
    %4015 = vmatpush1.msra.mxu0 %v3981
    %4016 = vmatprep.subr.mxu0 0.0
    %4017 = vmatpush1.msra.mxu0 %v3982
    %4018 = vmatprep.subr.mxu0 0.0
    %4019 = vmatpush1.msra.mxu0 %v3983
    %4020 = vmatprep.subr.mxu0 0.0
    %4021 = vmatpush1.msra.mxu0 %v3984
    %4022 = vmatprep.subr.mxu0 0.0
    %4023 = vmatpush1.msra.mxu0 %v3985
    %4024 = vmatprep.subr.mxu0 0.0
    %4025 = vmatpush1.msra.mxu0 %v3986
    %4026 = vmatprep.subr.mxu0 0.0
    %4027 = vmatpush1.msra.mxu0 %v3987
    %4028 = vmatprep.subr.mxu0 0.0
    %4029 = vmatpush1.msra.mxu0 %v3988
    %4030 = vmatprep.subr.mxu0 0.0
    %4031 = vmatpush1.msra.mxu0 %v3989
    %4032 = vmatprep.subr.mxu0 0.0
    %4033 = vmatpush1.msra.mxu0 %v3990
    %4034 = vmatprep.subr.mxu0 0.0
    %4035 = vmatpush1.msra.mxu0 %v3991
    %4036 = vmatprep.subr.mxu0 0.0
    %4037 = vmatpush1.msra.mxu0 %v3992
    %4038 = vmatprep.subr.mxu0 0.0
    %4039 = vmatpush1.msra.mxu0 %v3993
    %4040 = vmatprep.subr.mxu0 0.0
    %4041 = vmatpush1.msra.mxu0 %v3994
    %4042 = vmatprep.subr.mxu0 0.0
    %4043 = vmatpush1.msra.mxu0 %v3995
    %4044 = vmatprep.subr.mxu0 0.0
    %4045 = vmatpush1.msra.mxu0 %v3996
    %4046 = vmatprep.subr.mxu0 0.0
    %4047 = vmatpush1.msra.mxu0 %v4002
    %4048 = vmatprep.subr.mxu0 0.0
    %4049 = vmatpush1.msra.mxu0 0.0
    %4050 = vmatprep.subr.mxu0 0.0
    %4051 = vmatpush1.msra.mxu0 0.0
    %4052 = vmatprep.subr.mxu0 0.0
    %4053 = vmatpush1.msra.mxu0 0.0
    %4054 = vmatprep.subr.mxu0 0.0
    %4055 = vmatpush1.msra.mxu0 0.0
    %4056 = vmatprep.subr.mxu0 0.0
    %4057 = vmatpush1.msra.mxu0 0.0
    %4058 = vmatprep.subr.mxu0 0.0
    %4059 = vmatpush1.msra.mxu0 0.0
    %4060 = vmatprep.subr.mxu0 0.0
    %4061 = vmatpush1.msra.mxu0 0.0
    %4062 = vmatprep.subr.mxu0 0.0
    %4063 = vmatpush1.msra.mxu0 0.0
    %4064 = vmatprep.subr.mxu0 0.0
    %4065 = vmatpush1.msra.mxu0 0.0
    %4066 = vmatprep.subr.mxu0 0.0
    %4067 = vmatpush1.msra.mxu0 0.0
    %4068 = vmatprep.mubr.f32.mxu0 %v3999
    %4069 = vmatmul.mubr.f32.gmra.mrb[0].mxu0 %v3973
    %v4070 = vpop.f32.mrb[0].mxu0
    %v4071 = vadd.f32 0.0, %v4070
    %v4072 = vpop.f32.mrb[0].mxu0
    %4073 = vdwg.mxu0
    %v4074 = vadd.f32 %v3942, %v4071
    %v4075 = vld [vmem:[%s118] ss:$8 sm:$0x3]
    %s4076 = scalar_lea.vmem [#allocation2], 23
    %v4077 = vld [vmem:[%s4076] ss:$8 sm:$0x3]
    %v4079 = vlaneseq
    %v4080 = vshrl.u32 %v4079, 7
    %v4081 = vsub.s32 0, %v4080
    %v4082 = vrot.slane %v4075, %v4081
    %v4083 = vlaneseq
    %v4084 = vshrl.u32 %v4083, 7
    %v4085 = vsub.s32 1, %v4084
    %v4086 = vrot.slane %v4075, %v4085
    %v4090 = vlaneseq
    %v4091 = vshrl.u32 %v4090, 7
    %v4092 = vsub.s32 0, %v4091
    %v4093 = vrot.slane %v4077, %v4092
    %v4094 = vlaneseq
    %v4095 = vshrl.u32 %v4094, 7
    %v4096 = vsub.s32 1, %v4095
    %v4097 = vrot.slane %v4077, %v4096
    %4098 = vrot.lane.b32.xlu0 %v4093, 60
    %v4099 = vpop.permute.xlu0 %4098
    %4100 = vrot.lane.b32.xlu0 %v4097, 60
    %v4101 = vpop.permute.xlu0 %4100
    %v4102 = vsel %vm651, %v4099, %v4101
    %v4105 = vsel %vm339, %v4082, %v4102
    %v4106 = vsel %vm339, %v4086, %v4101
    %s4107 = scalar_lea.vmem %s7, 1232
    %v4108 = vld [vmem:[%s4107] sm:$0xff]
    %v4109 = vld [vmem:[%s4107 + $0x8] sm:$0xff]
    %v4110 = vld [vmem:[%s4107 + $0x10] sm:$0xff]
    %v4111 = vld [vmem:[%s4107 + $0x18] sm:$0xff]
    %v4112 = vld [vmem:[%s4107 + $0x20] sm:$0xff]
    %v4113 = vld [vmem:[%s4107 + $0x28] sm:$0xff]
    %v4114 = vld [vmem:[%s4107 + $0x30] sm:$0xff]
    %v4115 = vld [vmem:[%s4107 + $0x38] sm:$0xff]
    %v4116 = vld [vmem:[%s4107 + $0x40] sm:$0xff]
    %v4117 = vld [vmem:[%s4107 + $0x48] sm:$0xff]
    %v4118 = vld [vmem:[%s4107 + $0x50] sm:$0xff]
    %v4119 = vld [vmem:[%s4107 + $0x58] sm:$0xff]
    %v4120 = vld [vmem:[%s4107 + $0x60] sm:$0xff]
    %v4121 = vld [vmem:[%s4107 + $0x68] sm:$0xff]
    %v4122 = vld [vmem:[%s4107 + $0x70] sm:$0xff]
    %v4123 = vld [vmem:[%s4107 + $0x78] sm:$0xff]
    %v4124 = vld [vmem:[%s4107 + $0x80] sm:$0xff]
    %v4125 = vld [vmem:[%s4107 + $0x88] sm:$0xff]
    %v4126 = vld [vmem:[%s4107 + $0x90] sm:$0xff]
    %v4127 = vld [vmem:[%s4107 + $0x98] sm:$0xff]
    %v4128 = vld [vmem:[%s4107 + $0xa0] sm:$0xff]
    %v4129 = vld [vmem:[%s4107 + $0xa8] sm:$0xf]
    %v4131 = vsel %vm3261, %v4106, 0
    %v4134 = vsel %vm3265, %v4129, 0
    %4136 = vmatprep.subr.mxu0 0.0
    %4137 = vmatpush1.msra.mxu0 %v4108
    %4138 = vmatprep.subr.mxu0 0.0
    %4139 = vmatpush1.msra.mxu0 %v4109
    %4140 = vmatprep.subr.mxu0 0.0
    %4141 = vmatpush1.msra.mxu0 %v4110
    %4142 = vmatprep.subr.mxu0 0.0
    %4143 = vmatpush1.msra.mxu0 %v4111
    %4144 = vmatprep.subr.mxu0 0.0
    %4145 = vmatpush1.msra.mxu0 %v4112
    %4146 = vmatprep.subr.mxu0 0.0
    %4147 = vmatpush1.msra.mxu0 %v4113
    %4148 = vmatprep.subr.mxu0 0.0
    %4149 = vmatpush1.msra.mxu0 %v4114
    %4150 = vmatprep.subr.mxu0 0.0
    %4151 = vmatpush1.msra.mxu0 %v4115
    %4152 = vmatprep.subr.mxu0 0.0
    %4153 = vmatpush1.msra.mxu0 %v4116
    %4154 = vmatprep.subr.mxu0 0.0
    %4155 = vmatpush1.msra.mxu0 %v4117
    %4156 = vmatprep.subr.mxu0 0.0
    %4157 = vmatpush1.msra.mxu0 %v4118
    %4158 = vmatprep.subr.mxu0 0.0
    %4159 = vmatpush1.msra.mxu0 %v4119
    %4160 = vmatprep.subr.mxu0 0.0
    %4161 = vmatpush1.msra.mxu0 %v4120
    %4162 = vmatprep.subr.mxu0 0.0
    %4163 = vmatpush1.msra.mxu0 %v4121
    %4164 = vmatprep.subr.mxu0 0.0
    %4165 = vmatpush1.msra.mxu0 %v4122
    %4166 = vmatprep.subr.mxu0 0.0
    %4167 = vmatpush1.msra.mxu0 %v4123
    %4168 = vmatprep.subr.mxu0 0.0
    %4169 = vmatpush1.msra.mxu0 %v4124
    %4170 = vmatprep.subr.mxu0 0.0
    %4171 = vmatpush1.msra.mxu0 %v4125
    %4172 = vmatprep.subr.mxu0 0.0
    %4173 = vmatpush1.msra.mxu0 %v4126
    %4174 = vmatprep.subr.mxu0 0.0
    %4175 = vmatpush1.msra.mxu0 %v4127
    %4176 = vmatprep.subr.mxu0 0.0
    %4177 = vmatpush1.msra.mxu0 %v4128
    %4178 = vmatprep.subr.mxu0 0.0
    %4179 = vmatpush1.msra.mxu0 %v4134
    %4180 = vmatprep.subr.mxu0 0.0
    %4181 = vmatpush1.msra.mxu0 0.0
    %4182 = vmatprep.subr.mxu0 0.0
    %4183 = vmatpush1.msra.mxu0 0.0
    %4184 = vmatprep.subr.mxu0 0.0
    %4185 = vmatpush1.msra.mxu0 0.0
    %4186 = vmatprep.subr.mxu0 0.0
    %4187 = vmatpush1.msra.mxu0 0.0
    %4188 = vmatprep.subr.mxu0 0.0
    %4189 = vmatpush1.msra.mxu0 0.0
    %4190 = vmatprep.subr.mxu0 0.0
    %4191 = vmatpush1.msra.mxu0 0.0
    %4192 = vmatprep.subr.mxu0 0.0
    %4193 = vmatpush1.msra.mxu0 0.0
    %4194 = vmatprep.subr.mxu0 0.0
    %4195 = vmatpush1.msra.mxu0 0.0
    %4196 = vmatprep.subr.mxu0 0.0
    %4197 = vmatpush1.msra.mxu0 0.0
    %4198 = vmatprep.subr.mxu0 0.0
    %4199 = vmatpush1.msra.mxu0 0.0
    %4200 = vmatprep.mubr.f32.mxu0 %v4131
    %4201 = vmatmul.mubr.f32.gmra.mrb[0].mxu0 %v4105
    %v4202 = vpop.f32.mrb[0].mxu0
    %v4203 = vadd.f32 0.0, %v4202
    %v4204 = vpop.f32.mrb[0].mxu0
    %4205 = vdwg.mxu0
    %v4206 = vadd.f32 %v4074, %v4203
    %v4207 = vld [vmem:[%s8] sm:$0x1]
    %v4209 = vlaneseq
    %v4210 = vshrl.u32 %v4209, 7
    %v4211 = vsub.s32 0, %v4210
    %v4212 = vrot.slane %v4207, %v4211
    %v4214 = vadd.f32 %v4206, %v4212
    %vm4215 = vcmask 74752
    %4216 = vst.msk [vmem:[#allocation5] sm:$0x3] %vm4215, %v4214
    // Predicated region
    $region42: #{convnet_forward.1} parent=1 // pred_check
      _
    $region43: #{convnet_forward.1} parent=1 // pred_check_branch
      %4218 = sbr.rel (0) target = $region45
    $region44: #{convnet_forward.1} parent=1 // pred_region
      %s4220 = ssub.s32 32, 32
      %4221 = vsyncadd [#allocation6], %s4220
      %s4223 = sshll.u32 [#allocation5], 4
      %s4224 = int_to_ptr.vmem [resolvable:$true] %s4223
      %4226 = dma.vmem_to_hbm [thread:$0]  %s4224, 32, %s10, [#allocation6]
    $region45: #{convnet_forward.1} parent=1 // pred_fallthru
      _
    // Predicated region
    $region46: #{convnet_forward.1} parent=1 // pred_check
      _
    $region47: #{convnet_forward.1} parent=1 // pred_check_branch
      %4228 = sbr.rel (0) target = $region49
    $region48: #{convnet_forward.1} parent=1 // pred_region
      %4229 = dma.done [#allocation6], 32
    $region49: #{convnet_forward.1} parent=1 // pred_fallthru
      _
    %4230 = vsyncpa [#allocation6], 1

</llo_original>
